<compile_context>
chip_gen: v7x
topology: tpu7x:2x2x1
jax: 0.10.0
libtpu: 0.0.40
codegen_flags: <defaults>
</compile_context>

<pallas_src>
import numpy as np
import jax
import jax.numpy as jnp
from jax.experimental import pallas as pl
from jax.experimental.pallas import tpu as pltpu

# ----------------------- small-shape configuration -------------------------
IMG_RES     = 128    # stands in for image_resolution = 1024
DOWN_RES    = 32     # stands in for down_sample_size = 224
C_IN        = 3
NUM_QUERIES = 4      # stands in for 101
N_GROUND    = 2      # number of grounding queries appended by the decoder
D_MASK      = 32     # mask-embedding dim
D_CAP       = 32     # caption / class embedding dim (512 in the real model)
MASK_HW     = 16     # spatial size of decoder mask logits
SEQ_LEN     = 8      # stands in for 77 text tokens
VOCAB       = 64

# output-row tile for the upsample/threshold kernel (256 at real scale so
# grid count stays a multiple of 2 for v7x megacore balance; 64 here so the
# output lane width is >= 128 and stores stay unmasked).
ROW_TILE = 256 if IMG_RES % 256 == 0 else max(8, IMG_RES // 2)
assert IMG_RES % ROW_TILE == 0 and ROW_TILE % 8 == 0

# downsampled-output row block for the preprocess kernel
HD_BLK = DOWN_RES // 2 if (DOWN_RES // 2) % 8 == 0 else DOWN_RES
assert DOWN_RES % HD_BLK == 0 and HD_BLK % 8 == 0

VMEM_LIMIT = 32 * 1024 * 1024   # explicit scoped-VMEM limit (safe on v7x 64 MiB)


# --------------------- interpolation / pooling matrices ---------------------
def bilinear_matrix(out_size, in_size):
    """W (out, in) s.t. y = W @ x reproduces F.interpolate(mode='bilinear',
    align_corners=False, antialias=False) along one axis."""
    i = np.arange(out_size, dtype=np.float64)
    src = (i + 0.5) * (in_size / out_size) - 0.5
    src = np.clip(src, 0.0, None)
    i0 = np.clip(np.floor(src).astype(np.int64), 0, in_size - 1)
    i1 = np.minimum(i0 + 1, in_size - 1)
    w1 = np.clip(src - i0, 0.0, 1.0)
    w0 = 1.0 - w1
    W = np.zeros((out_size, in_size), dtype=np.float32)
    W[np.arange(out_size), i0] += w0.astype(np.float32)
    W[np.arange(out_size), i1] += w1.astype(np.float32)
    return jnp.asarray(W)


def avgpool_matrix(out_size, in_size):
    """Averaging matrix for the synthetic backbone's spatial pooling."""
    f = in_size // out_size
    W = np.zeros((out_size, in_size), dtype=np.float32)
    for i in range(out_size):
        W[i, i * f:(i + 1) * f] = 1.0 / f
    return jnp.asarray(W)


# ------------------------------ kernel 1: preprocess -------------------------
def _preprocess_kernel(mean_ref, inv_std_ref, img_ref, wy_ref, wxT_ref, out_ref):
    # mean / 1/std: (C,) in SMEM; img block: (1, H, W) bf16 (full channel,
    # reused across the row-block axis); wy: (HD_BLK, H) bf16 row-interp tile;
    # wxT: (W, Wd) bf16 col-interp.  Row-interp first so nothing is recomputed
    # across output-row blocks.
    c = pl.program_id(0)
    x = img_ref[0]                                                     # (H, W) bf16
    t = jnp.dot(wy_ref[...], x, preferred_element_type=jnp.float32)   # (HD_BLK, W)
    y = jnp.dot(t.astype(jnp.bfloat16), wxT_ref[...],
                preferred_element_type=jnp.float32)                   # (HD_BLK, Wd)
    # normalize AFTER the resize (interp rows sum to 1, so it commutes);
    # multiply by precomputed 1/std instead of dividing.
    out_ref[0] = (y - mean_ref[c]) * inv_std_ref[c]


def preprocess_pallas(image, params):
    """Bilinear resize (bf16 MXU matmuls, f32 acc) then (x - mean) * inv_std.
    image: (C, H, W) bf16.  Grid (C, row-blocks), both parallel, so v7x
    megacore gets a balanced split (6 steps -> 3/3)."""
    C, H, W = image.shape
    wy, wxT = params["wy_down"], params["wxT_down"]
    Hd, Wd = wy.shape[0], wxT.shape[1]
    nrb = Hd // HD_BLK
    return pl.pallas_call(
        _preprocess_kernel,
        out_shape=jax.ShapeDtypeStruct((C, Hd, Wd), jnp.float32),
        grid=(C, nrb),
        in_specs=[
            pl.BlockSpec(memory_space=pltpu.MemorySpace.SMEM),        # pixel_mean
            pl.BlockSpec(memory_space=pltpu.MemorySpace.SMEM),        # 1 / pixel_std
            pl.BlockSpec((1, H, W), lambda c, r: (c, 0, 0)),          # channel (bf16)
            pl.BlockSpec((HD_BLK, H), lambda c, r: (r, 0)),           # row-interp tile
            pl.BlockSpec((W, Wd), lambda c, r: (0, 0)),               # col-interp^T
        ],
        out_specs=pl.BlockSpec((1, HD_BLK, Wd), lambda c, r: (c, r, 0)),
        compiler_params=pltpu.CompilerParams(
            dimension_semantics=("parallel", "parallel"),
            vmem_limit_bytes=VMEM_LIMIT),
    )(params["pixel_mean"], params["pixel_inv_std"], image, wy, wxT)


# ------------------- kernel 2: lang encoder (single-step gather) -------------
def _lang_encode_kernel(ids_ref, mask_ref, embed_hbm, out_ref, rows, sems):
    # ids: (T,) int32 scalar prefetch (SMEM); mask: (T, 1) f32 in VMEM;
    # embed_hbm: (VOCAB, D) f32 left in HBM (memory_space=pl.ANY);
    # rows: (T, D) VMEM scratch; sems: (T,) DMA semaphores.
    T = rows.shape[0]
    copies = []
    for t in range(T):                                   # issue all gathers back-to-back
        cp = pltpu.make_async_copy(embed_hbm.at[pl.ds(ids_ref[t], 1)],
                                   rows.at[pl.ds(t, 1)], sems.at[t])
        cp.start()
        copies.append(cp)
    for cp in copies:
        cp.wait()

    w = mask_ref[...]                                    # (T, 1) f32
    cnt = jnp.maximum(jnp.sum(w), 1.0)                   # exact mask sum
    s = jnp.sum(rows[...] * w, axis=0, keepdims=True)    # (1, D) masked sum
    out_ref[...] = s / cnt


def lang_encode_pallas(input_ids, attn_mask_col, embed):
    """Masked-mean of gathered token embeddings -> class_emb (1, D_CAP).
    Single grid step: the embedding table stays in HBM and exactly T rows are
    DMA'd (manual async copies, single wait), instead of T pipeline steps."""
    T = input_ids.shape[0]
    _, D = embed.shape
    return pl.pallas_call(
        _lang_encode_kernel,
        out_shape=jax.ShapeDtypeStruct((1, D), jnp.float32),
        grid_spec=pltpu.PrefetchScalarGridSpec(
            num_scalar_prefetch=1,
            grid=(1,),
            in_specs=[pl.BlockSpec((T, 1), lambda i, ids: (0, 0)),     # attention mask
                      pl.BlockSpec(memory_space=pl.ANY)],              # embedding table (HBM)
            out_specs=pl.BlockSpec((1, D), lambda i, ids: (0, 0)),
            scratch_shapes=[pltpu.VMEM((T, D), jnp.float32),
                            pltpu.SemaphoreType.DMA((T,))],
        ),
        compiler_params=pltpu.CompilerParams(
            dimension_semantics=("arbitrary",),
            vmem_limit_bytes=VMEM_LIMIT),
    )(input_ids, attn_mask_col, embed)


# ---- kernel 3a: grid-invariant decode head (queries, match, projection, t1) --
def _decode_head_kernel(img_ref, py_ref, pxT_ref, w_pix_ref, b_pix_ref,
                        cls_ref, w_ground_ref, gq_ref, w_cap_ref,
                        temp_ref, wxT_up_ref, t1_ref):
    f32, bf16 = jnp.float32, jnp.bfloat16

    # --- synthetic mask decoder: grounding queries only (the synthetic decoder
    #     has no cross-query mixing, so [:, num_queries:] == only these) ---
    cls = cls_ref[...]                                                         # (1, D_CAP)
    g_proj = jnp.dot(cls, w_ground_ref[...], preferred_element_type=f32)       # (1, D_MASK)
    ground_q = gq_ref[...] + g_proj                                            # (G, D_MASK)
    captions = jnp.dot(ground_q, w_cap_ref[...], preferred_element_type=f32)   # (G, D_CAP)

    # --- post_processing: L2 normalize (+1e-7 as in the reference),
    #     vl_similarity, argmax match over queries ---
    v = captions / (jnp.sqrt(jnp.sum(captions * captions, -1, keepdims=True)) + 1e-7)
    t = cls / (jnp.sqrt(jnp.sum(cls * cls, -1, keepdims=True)) + 1e-7)
    scale = jnp.minimum(jnp.exp(temp_ref[...]), 100.0)                         # (1, 1)
    logits = jnp.sum(v * t, -1, keepdims=True) * scale                         # (G, 1)

    g = logits.shape[0]
    iota_g = jax.lax.broadcasted_iota(jnp.int32, (g, 1), 0)
    matched = jnp.min(jnp.where(logits == jnp.max(logits), iota_g, g))         # first argmax
    onehot = (iota_g == matched).astype(f32)                                   # (G, 1)
    q_sel = jnp.sum(ground_q * onehot, axis=0, keepdims=True)                  # (1, D_MASK)

    # --- synthetic backbone / pixel decoder fused with the matched query:
    #     sel = q_sel @ (W_pix^T @ pooled + b)
    #         = py @ ( (sum_c (q_sel.w_pix[c]) * img[c]) @ pxT ) + (q_sel.b)
    #     One VPU weighted channel combine + ONE bf16 matmul pair. ---
    w0 = jnp.sum(q_sel * w_pix_ref[0:1, :], axis=-1, keepdims=True)            # (1, 1)
    xw = w0 * img_ref[0]                                                       # (Hd, Wd) f32
    for c in range(1, C_IN):
        w_c = jnp.sum(q_sel * w_pix_ref[c:c + 1, :], axis=-1, keepdims=True)
        xw = xw + w_c * img_ref[c]
    bias = jnp.sum(q_sel * b_pix_ref[...], axis=-1, keepdims=True)             # (1, 1)
    cols = jnp.dot(xw.astype(bf16), pxT_ref[...], preferred_element_type=f32)  # (Hd, MASK_HW)
    pooled = jnp.dot(py_ref[...], cols.astype(bf16),
                     preferred_element_type=f32)                               # (MASK_HW, MASK_HW)
    sel2d = pooled + bias

    # --- grid-invariant half of the bilinear upsample: t1 = sel2d @ wxT_up.
    #     Kept in f32 operands (K = MASK_HW is tiny) so the downstream >= 0
    #     threshold is not perturbed by bf16 rounding near the boundary. ---
    t1_ref[...] = jnp.dot(sel2d, wxT_up_ref[...], preferred_element_type=f32)  # (MASK_HW, Wimg)


# ------------- kernel 3b: per-row-tile upsample + threshold (parallel) -------
def _upsample_threshold_kernel(wy_ref, t1_ref, out_ref):
    up = jnp.dot(wy_ref[...], t1_ref[...], preferred_element_type=jnp.float32)
    out_ref[...] = (up >= 0.0).astype(out_ref.dtype)


def decode_and_postprocess_pallas(images, class_emb, params, out_dtype=jnp.float32):
    """Two-call split (per review): a single-step head kernel computes all
    grid-invariant work once; the tiled kernel only does wy_tile @ t1 and the
    threshold.  out_dtype=f32 matches the reference's .float(); switching to
    bf16 (values {0,1} are exact) halves the writeback when the mask feeds
    further jitted computation that the upcast can fuse into."""
    C, Hd, Wd = images.shape
    wy_up, wxT_up = params["wy_up"], params["wxT_up"]
    Himg, Wimg = wy_up.shape[0], wxT_up.shape[1]

    # (a) grid-invariant head -> t1 (MASK_HW, Wimg), one invocation, no grid.
    t1 = pl.pallas_call(
        _decode_head_kernel,
        out_shape=jax.ShapeDtypeStruct((MASK_HW, Wimg), jnp.float32),
        compiler_params=pltpu.CompilerParams(vmem_limit_bytes=VMEM_LIMIT),
    )(images, params["pool_y"], params["pool_xT"], params["w_pix"],
      params["b_pix"], class_emb, params["w_ground"], params["ground_queries"],
      params["w_caption"], params["logit_scale"], wxT_up)

    # (b) row-tiled upsample + threshold; "parallel" so v7x megacore splits it.
    return pl.pallas_call(
        _upsample_threshold_kernel,
        out_shape=jax.ShapeDtypeStruct((Himg, Wimg), out_dtype),
        grid=(Himg // ROW_TILE,),
        in_specs=[pl.BlockSpec((ROW_TILE, MASK_HW), lambda i: (i, 0)),   # wy_up row tile
                  pl.BlockSpec((MASK_HW, Wimg), lambda i: (0, 0))],      # t1 (grid-invariant)
        out_specs=pl.BlockSpec((ROW_TILE, Wimg), lambda i: (i, 0)),
        compiler_params=pltpu.CompilerParams(
            dimension_semantics=("parallel",),
            vmem_limit_bytes=VMEM_LIMIT),
    )(wy_up, t1)


# ------------------------------ XDecoder forward ----------------------------
def xdecoder_forward(params, image_input, text_input):
    # pre_processing (Pallas): bilinear downsample + normalize.
    image = image_input[0]                                    # (3, H, W)
    if image.dtype != jnp.bfloat16:
        # raw 0..255 integer pixel values are exactly representable in bf16
        image = image.astype(jnp.bfloat16)
    images = preprocess_pallas(image, params)                 # (3, Hd, Wd) f32

    # lang encoder (synthetic, Pallas manual gather): class_emb == grounding token
    input_ids = text_input[0, 0].astype(jnp.int32)            # (T,)
    attn_col = text_input[1, 0].astype(jnp.float32).reshape(-1, 1)   # (T, 1)
    class_emb = lang_encode_pallas(input_ids, attn_col, params["embed"])  # (1, D_CAP)

    # synthetic backbone + mask decoder + post_processing:
    # normalize, vl_similarity, argmax match, matched-mask projection,
    # bilinear upsample to IMG_RES, threshold >= 0.
    top1_mask = decode_and_postprocess_pallas(images, class_emb, params)
    return top1_mask                                           # (IMG_RES, IMG_RES) f32 {0,1}


def init_params(key):
    ks = jax.random.split(key, 6)
    wy_down = bilinear_matrix(DOWN_RES, IMG_RES)
    wy_up = bilinear_matrix(IMG_RES, MASK_HW)
    py = avgpool_matrix(MASK_HW, DOWN_RES)
    bf16 = jnp.bfloat16
    std = jnp.array([58.395, 57.12, 57.375], jnp.float32)
    return {
        "pixel_mean": jnp.array([123.675, 116.28, 103.53], jnp.float32),
        "pixel_inv_std": 1.0 / std,                       # multiply, never divide in-kernel
        # big downsample / pool matrices in bf16 for the MXU
        "wy_down": wy_down.astype(bf16),
        "wxT_down": wy_down.T.astype(bf16),
        "pool_y": py.astype(bf16),
        "pool_xT": py.T.astype(bf16),
        # small upsample matrices kept in f32 (K=MASK_HW tiny; protects the
        # >= 0 threshold from bf16 rounding at the decision boundary)
        "wy_up": wy_up,
        "wxT_up": wy_up.T,
        # synthetic submodule weights
        "w_pix": 0.1 * jax.random.normal(ks[0], (C_IN, D_MASK), jnp.float32),
        "b_pix": jnp.zeros((1, D_MASK), jnp.float32),
        "embed": 0.1 * jax.random.normal(ks[1], (VOCAB, D_CAP), jnp.float32),
        "w_ground": 0.1 * jax.random.normal(ks[2], (D_CAP, D_MASK), jnp.float32),
        "ground_queries": 0.1 * jax.random.normal(ks[3], (N_GROUND, D_MASK), jnp.float32),
        # learned (non-grounding) queries: unused by the grounding output path
        # of the synthetic decoder (no cross-query attention), kept for structure.
        "learned_queries": 0.1 * jax.random.normal(ks[4], (NUM_QUERIES, D_MASK), jnp.float32),
        "w_caption": 0.1 * jax.random.normal(ks[5], (D_MASK, D_CAP), jnp.float32),
        "logit_scale": jnp.full((1, 1), float(np.log(1.0 / 0.07)), jnp.float32),
    }


if __name__ == "__main__":
    key = jax.random.PRNGKey(0)
    k_img, k_ids, k_par = jax.random.split(key, 3)

    # integer-valued 0..255 pixels, stored in bf16 on the host side (exact)
    image_f32 = jnp.round(jax.random.uniform(
        k_img, (1, C_IN, IMG_RES, IMG_RES), jnp.float32) * 255.0)
    image_input = image_f32.astype(jnp.bfloat16)
    input_ids = jax.random.randint(k_ids, (1, SEQ_LEN), 0, VOCAB, dtype=jnp.int32)
    attention_mask = jnp.ones((1, SEQ_LEN), jnp.int32)
    text_input = jnp.stack([input_ids, attention_mask], axis=0)      # (2, 1, T) int32

    params = init_params(k_par)

    fwd = jax.jit(xdecoder_forward)
    out = jax.block_until_ready(fwd(params, image_input, text_input))

    assert out.shape == (IMG_RES, IMG_RES)
    assert out.dtype == jnp.float32
    assert bool(jnp.all(jnp.isfinite(out)))
    assert bool(jnp.all((out == 0.0) | (out == 1.0)))
    print("KERNEL_OK")
</pallas_src>

<mosaic_0001>
module attributes {stable_mosaic.version = 11 : i64} {
  func.func @_preprocess_kernel(%arg0: i32, %arg1: i32, %arg2: memref<3xf32, #tpu.memory_space<smem>>, %arg3: memref<3xf32, #tpu.memory_space<smem>>, %arg4: memref<1x128x128xbf16, #tpu.memory_space<vmem>>, %arg5: memref<16x128xbf16, #tpu.memory_space<vmem>>, %arg6: memref<128x32xbf16, #tpu.memory_space<vmem>>, %arg7: memref<1x16x32xf32, #tpu.memory_space<vmem>>) attributes {dimension_semantics = [#tpu.dimension_semantics<parallel>, #tpu.dimension_semantics<parallel>], iteration_bounds = array<i64: 3, 2>, scalar_prefetch = 0 : i64, scratch_operands = 0 : i64, tpu.core_type = #tpu.core_type<tc>, window_params = [{transform_indices = @transform_0, window_bounds = array<i64: 3>}, {transform_indices = @transform_1, window_bounds = array<i64: 3>}, {transform_indices = @transform_2, window_bounds = array<i64: 1, 128, 128>}, {transform_indices = @transform_3, window_bounds = array<i64: 16, 128>}, {pipeline_mode = #tpu.pipeline_mode<synchronous>, transform_indices = @transform_4, window_bounds = array<i64: 128, 32>}, {transform_indices = @transform_5, window_bounds = array<i64: 1, 16, 32>}]} {
    %c0 = arith.constant 0 : index
    %c0_0 = arith.constant 0 : index
    %c0_1 = arith.constant 0 : index
    %0 = vector.load %arg4[%c0, %c0_0, %c0_1] : memref<1x128x128xbf16, #tpu.memory_space<vmem>>, vector<1x128x128xbf16>
    %1 = vector.shape_cast %0 : vector<1x128x128xbf16> to vector<128x128xbf16>
    %c0_2 = arith.constant 0 : index
    %c0_3 = arith.constant 0 : index
    %2 = vector.load %arg5[%c0_2, %c0_3] : memref<16x128xbf16, #tpu.memory_space<vmem>>, vector<16x128xbf16>
    %cst = arith.constant dense<0.000000e+00> : vector<16x128xf32>
    %3 = tpu.matmul %2, %1, %cst {dimension_numbers = #tpu.dot_dimension_numbers<[1], [0], [0], [1], [0, 0, 1, 1], [], []>} : vector<16x128xbf16>, vector<128x128xbf16>, vector<16x128xf32> -> vector<16x128xf32>
    %4 = arith.truncf %3 : vector<16x128xf32> to vector<16x128xbf16>
    %c0_4 = arith.constant 0 : index
    %c0_5 = arith.constant 0 : index
    %5 = vector.load %arg6[%c0_4, %c0_5] : memref<128x32xbf16, #tpu.memory_space<vmem>>, vector<128x32xbf16>
    %cst_6 = arith.constant dense<0.000000e+00> : vector<16x32xf32>
    %6 = tpu.matmul %4, %5, %cst_6 {dimension_numbers = #tpu.dot_dimension_numbers<[1], [0], [0], [1], [0, 0, 1, 1], [], []>} : vector<16x128xbf16>, vector<128x32xbf16>, vector<16x32xf32> -> vector<16x32xf32>
    %7 = arith.index_cast %arg0 : i32 to index
    %8 = memref.load %arg2[%7] : memref<3xf32, #tpu.memory_space<smem>>
    %9 = vector.broadcast %8 : f32 to vector<16x32xf32>
    %10 = arith.subf %6, %9 : vector<16x32xf32>
    %11 = arith.index_cast %arg0 : i32 to index
    %12 = memref.load %arg3[%11] : memref<3xf32, #tpu.memory_space<smem>>
    %13 = vector.broadcast %12 : f32 to vector<16x32xf32>
    %14 = arith.mulf %10, %13 : vector<16x32xf32>
    %c0_7 = arith.constant 0 : index
    %c0_8 = arith.constant 0 : index
    %c0_9 = arith.constant 0 : index
    %15 = vector.load %arg7[%c0_7, %c0_8, %c0_9] : memref<1x16x32xf32, #tpu.memory_space<vmem>>, vector<1x16x32xf32>
    %16 = vector.shape_cast %15 : vector<1x16x32xf32> to vector<16x32xf32>
    %17 = vector.shape_cast %14 : vector<16x32xf32> to vector<1x16x32xf32>
    tpu.vector_store %arg7[%c0_7, %c0_8, %c0_9], %17 {strides = array<i32>} : memref<1x16x32xf32, #tpu.memory_space<vmem>>, vector<1x16x32xf32>,
    return
  }
  func.func @transform_0(%arg0: i32, %arg1: i32) -> i32 {
    %c0_i32 = arith.constant 0 : i32
    %c0_i32_0 = arith.constant 0 : i32
    return %c0_i32 : i32
  }
  func.func @transform_1(%arg0: i32, %arg1: i32) -> i32 {
    %c0_i32 = arith.constant 0 : i32
    %c0_i32_0 = arith.constant 0 : i32
    return %c0_i32 : i32
  }
  func.func @transform_2(%arg0: i32, %arg1: i32) -> (i32, i32, i32) {
    %c0_i32 = arith.constant 0 : i32
    %c0_i32_0 = arith.constant 0 : i32
    %c0_i32_1 = arith.constant 0 : i32
    return %arg0, %c0_i32, %c0_i32_0 : i32, i32, i32
  }
  func.func @transform_3(%arg0: i32, %arg1: i32) -> (i32, i32) {
    %c0_i32 = arith.constant 0 : i32
    %c0_i32_0 = arith.constant 0 : i32
    return %arg1, %c0_i32 : i32, i32
  }
  func.func @transform_4(%arg0: i32, %arg1: i32) -> (i32, i32) {
    %c0_i32 = arith.constant 0 : i32
    %c0_i32_0 = arith.constant 0 : i32
    %c0_i32_1 = arith.constant 0 : i32
    return %c0_i32, %c0_i32_0 : i32, i32
  }
  func.func @transform_5(%arg0: i32, %arg1: i32) -> (i32, i32, i32) {
    %c0_i32 = arith.constant 0 : i32
    %c0_i32_0 = arith.constant 0 : i32
    return %arg0, %arg1, %c0_i32 : i32, i32, i32
  }
}

module attributes {stable_mosaic.version = 11 : i64} {
  func.func @_lang_encode_kernel(%arg0: i32, %arg1: memref<8xi32, #tpu.memory_space<smem>>, %arg2: memref<8x1xf32, #tpu.memory_space<vmem>>, %arg3: memref<64x32xf32, #tpu.memory_space<any>>, %arg4: memref<1x32xf32, #tpu.memory_space<vmem>>, %arg5: memref<8x32xf32, #tpu.memory_space<vmem>>, %arg6: memref<8x!tpu.dma_semaphore, #tpu.memory_space<semaphore_mem>>) attributes {dimension_semantics = [#tpu.dimension_semantics<arbitrary>], iteration_bounds = array<i64: 1>, scalar_prefetch = 1 : i64, scratch_operands = 2 : i64, tpu.core_type = #tpu.core_type<tc>, window_params = [{pipeline_mode = #tpu.pipeline_mode<synchronous>, transform_indices = @transform_0, window_bounds = array<i64: 8, 1>}, {}, {pipeline_mode = #tpu.pipeline_mode<synchronous>, transform_indices = @transform_2, window_bounds = array<i64: 1, 32>}]} {
    %c0 = arith.constant 0 : index
    %0 = memref.load %arg1[%c0] : memref<8xi32, #tpu.memory_space<smem>>
    %c0_i32 = arith.constant 0 : i32
    %c0_i32_0 = arith.constant 0 : i32
    %1 = tpu.memref_slice %arg3[%0, %c0_i32_0] : memref<64x32xf32, #tpu.memory_space<any>> -> memref<1x32xf32, #tpu.memory_space<any>>
    %c0_i32_1 = arith.constant 0 : i32
    %c0_i32_2 = arith.constant 0 : i32
    %2 = tpu.memref_slice %arg5[%c0_i32_1, %c0_i32_2] : memref<8x32xf32, #tpu.memory_space<vmem>> -> memref<1x32xf32, #tpu.memory_space<vmem>>
    %3 = tpu.memref_slice %arg6[%c0_i32] : memref<8x!tpu.dma_semaphore, #tpu.memory_space<semaphore_mem>> -> memref<1x!tpu.dma_semaphore, #tpu.memory_space<semaphore_mem>>
    %4 = tpu.memref_squeeze %3 : memref<1x!tpu.dma_semaphore, #tpu.memory_space<semaphore_mem>> -> memref<!tpu.dma_semaphore, #tpu.memory_space<semaphore_mem>>
    tpu.enqueue_dma source(%1 : memref<1x32xf32, #tpu.memory_space<any>>) target(%2 : memref<1x32xf32, #tpu.memory_space<vmem>>) target_semaphore(%4 : memref<!tpu.dma_semaphore, #tpu.memory_space<semaphore_mem>>)
    %c1 = arith.constant 1 : index
    %5 = memref.load %arg1[%c1] : memref<8xi32, #tpu.memory_space<smem>>
    %c1_i32 = arith.constant 1 : i32
    %c0_i32_3 = arith.constant 0 : i32
    %6 = tpu.memref_slice %arg3[%5, %c0_i32_3] : memref<64x32xf32, #tpu.memory_space<any>> -> memref<1x32xf32, #tpu.memory_space<any>>
    %c1_i32_4 = arith.constant 1 : i32
    %c0_i32_5 = arith.constant 0 : i32
    %7 = tpu.memref_slice %arg5[%c1_i32_4, %c0_i32_5] : memref<8x32xf32, #tpu.memory_space<vmem>> -> memref<1x32xf32, #tpu.memory_space<vmem>>
    %8 = tpu.memref_slice %arg6[%c1_i32] : memref<8x!tpu.dma_semaphore, #tpu.memory_space<semaphore_mem>> -> memref<1x!tpu.dma_semaphore, #tpu.memory_space<semaphore_mem>>
    %9 = tpu.memref_squeeze %8 : memref<1x!tpu.dma_semaphore, #tpu.memory_space<semaphore_mem>> -> memref<!tpu.dma_semaphore, #tpu.memory_space<semaphore_mem>>
    tpu.enqueue_dma source(%6 : memref<1x32xf32, #tpu.memory_space<any>>) target(%7 : memref<1x32xf32, #tpu.memory_space<vmem>>) target_semaphore(%9 : memref<!tpu.dma_semaphore, #tpu.memory_space<semaphore_mem>>)
    %c2 = arith.constant 2 : index
    %10 = memref.load %arg1[%c2] : memref<8xi32, #tpu.memory_space<smem>>
    %c2_i32 = arith.constant 2 : i32
    %c0_i32_6 = arith.constant 0 : i32
    %11 = tpu.memref_slice %arg3[%10, %c0_i32_6] : memref<64x32xf32, #tpu.memory_space<any>> -> memref<1x32xf32, #tpu.memory_space<any>>
    %c2_i32_7 = arith.constant 2 : i32
    %c0_i32_8 = arith.constant 0 : i32
    %12 = tpu.memref_slice %arg5[%c2_i32_7, %c0_i32_8] : memref<8x32xf32, #tpu.memory_space<vmem>> -> memref<1x32xf32, #tpu.memory_space<vmem>>
    %13 = tpu.memref_slice %arg6[%c2_i32] : memref<8x!tpu.dma_semaphore, #tpu.memory_space<semaphore_mem>> -> memref<1x!tpu.dma_semaphore, #tpu.memory_space<semaphore_mem>>
    %14 = tpu.memref_squeeze %13 : memref<1x!tpu.dma_semaphore, #tpu.memory_space<semaphore_mem>> -> memref<!tpu.dma_semaphore, #tpu.memory_space<semaphore_mem>>
    tpu.enqueue_dma source(%11 : memref<1x32xf32, #tpu.memory_space<any>>) target(%12 : memref<1x32xf32, #tpu.memory_space<vmem>>) target_semaphore(%14 : memref<!tpu.dma_semaphore, #tpu.memory_space<semaphore_mem>>)
    %c3 = arith.constant 3 : index
    %15 = memref.load %arg1[%c3] : memref<8xi32, #tpu.memory_space<smem>>
    %c3_i32 = arith.constant 3 : i32
    %c0_i32_9 = arith.constant 0 : i32
    %16 = tpu.memref_slice %arg3[%15, %c0_i32_9] : memref<64x32xf32, #tpu.memory_space<any>> -> memref<1x32xf32, #tpu.memory_space<any>>
    %c3_i32_10 = arith.constant 3 : i32
    %c0_i32_11 = arith.constant 0 : i32
    %17 = tpu.memref_slice %arg5[%c3_i32_10, %c0_i32_11] : memref<8x32xf32, #tpu.memory_space<vmem>> -> memref<1x32xf32, #tpu.memory_space<vmem>>
    %18 = tpu.memref_slice %arg6[%c3_i32] : memref<8x!tpu.dma_semaphore, #tpu.memory_space<semaphore_mem>> -> memref<1x!tpu.dma_semaphore, #tpu.memory_space<semaphore_mem>>
    %19 = tpu.memref_squeeze %18 : memref<1x!tpu.dma_semaphore, #tpu.memory_space<semaphore_mem>> -> memref<!tpu.dma_semaphore, #tpu.memory_space<semaphore_mem>>
    tpu.enqueue_dma source(%16 : memref<1x32xf32, #tpu.memory_space<any>>) target(%17 : memref<1x32xf32, #tpu.memory_space<vmem>>) target_semaphore(%19 : memref<!tpu.dma_semaphore, #tpu.memory_space<semaphore_mem>>)
    %c4 = arith.constant 4 : index
    %20 = memref.load %arg1[%c4] : memref<8xi32, #tpu.memory_space<smem>>
    %c4_i32 = arith.constant 4 : i32
    %c0_i32_12 = arith.constant 0 : i32
    %21 = tpu.memref_slice %arg3[%20, %c0_i32_12] : memref<64x32xf32, #tpu.memory_space<any>> -> memref<1x32xf32, #tpu.memory_space<any>>
    %c4_i32_13 = arith.constant 4 : i32
    %c0_i32_14 = arith.constant 0 : i32
    %22 = tpu.memref_slice %arg5[%c4_i32_13, %c0_i32_14] : memref<8x32xf32, #tpu.memory_space<vmem>> -> memref<1x32xf32, #tpu.memory_space<vmem>>
    %23 = tpu.memref_slice %arg6[%c4_i32] : memref<8x!tpu.dma_semaphore, #tpu.memory_space<semaphore_mem>> -> memref<1x!tpu.dma_semaphore, #tpu.memory_space<semaphore_mem>>
    %24 = tpu.memref_squeeze %23 : memref<1x!tpu.dma_semaphore, #tpu.memory_space<semaphore_mem>> -> memref<!tpu.dma_semaphore, #tpu.memory_space<semaphore_mem>>
    tpu.enqueue_dma source(%21 : memref<1x32xf32, #tpu.memory_space<any>>) target(%22 : memref<1x32xf32, #tpu.memory_space<vmem>>) target_semaphore(%24 : memref<!tpu.dma_semaphore, #tpu.memory_space<semaphore_mem>>)
    %c5 = arith.constant 5 : index
    %25 = memref.load %arg1[%c5] : memref<8xi32, #tpu.memory_space<smem>>
    %c5_i32 = arith.constant 5 : i32
    %c0_i32_15 = arith.constant 0 : i32
    %26 = tpu.memref_slice %arg3[%25, %c0_i32_15] : memref<64x32xf32, #tpu.memory_space<any>> -> memref<1x32xf32, #tpu.memory_space<any>>
    %c5_i32_16 = arith.constant 5 : i32
    %c0_i32_17 = arith.constant 0 : i32
    %27 = tpu.memref_slice %arg5[%c5_i32_16, %c0_i32_17] : memref<8x32xf32, #tpu.memory_space<vmem>> -> memref<1x32xf32, #tpu.memory_space<vmem>>
    %28 = tpu.memref_slice %arg6[%c5_i32] : memref<8x!tpu.dma_semaphore, #tpu.memory_space<semaphore_mem>> -> memref<1x!tpu.dma_semaphore, #tpu.memory_space<semaphore_mem>>
    %29 = tpu.memref_squeeze %28 : memref<1x!tpu.dma_semaphore, #tpu.memory_space<semaphore_mem>> -> memref<!tpu.dma_semaphore, #tpu.memory_space<semaphore_mem>>
    tpu.enqueue_dma source(%26 : memref<1x32xf32, #tpu.memory_space<any>>) target(%27 : memref<1x32xf32, #tpu.memory_space<vmem>>) target_semaphore(%29 : memref<!tpu.dma_semaphore, #tpu.memory_space<semaphore_mem>>)
    %c6 = arith.constant 6 : index
    %30 = memref.load %arg1[%c6] : memref<8xi32, #tpu.memory_space<smem>>
    %c6_i32 = arith.constant 6 : i32
    %c0_i32_18 = arith.constant 0 : i32
    %31 = tpu.memref_slice %arg3[%30, %c0_i32_18] : memref<64x32xf32, #tpu.memory_space<any>> -> memref<1x32xf32, #tpu.memory_space<any>>
    %c6_i32_19 = arith.constant 6 : i32
    %c0_i32_20 = arith.constant 0 : i32
    %32 = tpu.memref_slice %arg5[%c6_i32_19, %c0_i32_20] : memref<8x32xf32, #tpu.memory_space<vmem>> -> memref<1x32xf32, #tpu.memory_space<vmem>>
    %33 = tpu.memref_slice %arg6[%c6_i32] : memref<8x!tpu.dma_semaphore, #tpu.memory_space<semaphore_mem>> -> memref<1x!tpu.dma_semaphore, #tpu.memory_space<semaphore_mem>>
    %34 = tpu.memref_squeeze %33 : memref<1x!tpu.dma_semaphore, #tpu.memory_space<semaphore_mem>> -> memref<!tpu.dma_semaphore, #tpu.memory_space<semaphore_mem>>
    tpu.enqueue_dma source(%31 : memref<1x32xf32, #tpu.memory_space<any>>) target(%32 : memref<1x32xf32, #tpu.memory_space<vmem>>) target_semaphore(%34 : memref<!tpu.dma_semaphore, #tpu.memory_space<semaphore_mem>>)
    %c7 = arith.constant 7 : index
    %35 = memref.load %arg1[%c7] : memref<8xi32, #tpu.memory_space<smem>>
    %c7_i32 = arith.constant 7 : i32
    %c0_i32_21 = arith.constant 0 : i32
    %36 = tpu.memref_slice %arg3[%35, %c0_i32_21] : memref<64x32xf32, #tpu.memory_space<any>> -> memref<1x32xf32, #tpu.memory_space<any>>
    %c7_i32_22 = arith.constant 7 : i32
    %c0_i32_23 = arith.constant 0 : i32
    %37 = tpu.memref_slice %arg5[%c7_i32_22, %c0_i32_23] : memref<8x32xf32, #tpu.memory_space<vmem>> -> memref<1x32xf32, #tpu.memory_space<vmem>>
    %38 = tpu.memref_slice %arg6[%c7_i32] : memref<8x!tpu.dma_semaphore, #tpu.memory_space<semaphore_mem>> -> memref<1x!tpu.dma_semaphore, #tpu.memory_space<semaphore_mem>>
    %39 = tpu.memref_squeeze %38 : memref<1x!tpu.dma_semaphore, #tpu.memory_space<semaphore_mem>> -> memref<!tpu.dma_semaphore, #tpu.memory_space<semaphore_mem>>
    tpu.enqueue_dma source(%36 : memref<1x32xf32, #tpu.memory_space<any>>) target(%37 : memref<1x32xf32, #tpu.memory_space<vmem>>) target_semaphore(%39 : memref<!tpu.dma_semaphore, #tpu.memory_space<semaphore_mem>>)
    %c0_i32_24 = arith.constant 0 : i32
    %c0_i32_25 = arith.constant 0 : i32
    %40 = tpu.memref_slice %arg3[%0, %c0_i32_25] : memref<64x32xf32, #tpu.memory_space<any>> -> memref<1x32xf32, #tpu.memory_space<any>>
    %c0_i32_26 = arith.constant 0 : i32
    %c0_i32_27 = arith.constant 0 : i32
    %41 = tpu.memref_slice %arg5[%c0_i32_26, %c0_i32_27] : memref<8x32xf32, #tpu.memory_space<vmem>> -> memref<1x32xf32, #tpu.memory_space<vmem>>
    %42 = tpu.memref_slice %arg6[%c0_i32_24] : memref<8x!tpu.dma_semaphore, #tpu.memory_space<semaphore_mem>> -> memref<1x!tpu.dma_semaphore, #tpu.memory_space<semaphore_mem>>
    %43 = tpu.memref_squeeze %42 : memref<1x!tpu.dma_semaphore, #tpu.memory_space<semaphore_mem>> -> memref<!tpu.dma_semaphore, #tpu.memory_space<semaphore_mem>>
    tpu.wait_dma2 semaphore(%43 : memref<!tpu.dma_semaphore, #tpu.memory_space<semaphore_mem>>) src(%40 : memref<1x32xf32, #tpu.memory_space<any>>) dst(%41 : memref<1x32xf32, #tpu.memory_space<vmem>>)
    %c1_i32_28 = arith.constant 1 : i32
    %c0_i32_29 = arith.constant 0 : i32
    %44 = tpu.memref_slice %arg3[%5, %c0_i32_29] : memref<64x32xf32, #tpu.memory_space<any>> -> memref<1x32xf32, #tpu.memory_space<any>>
    %c1_i32_30 = arith.constant 1 : i32
    %c0_i32_31 = arith.constant 0 : i32
    %45 = tpu.memref_slice %arg5[%c1_i32_30, %c0_i32_31] : memref<8x32xf32, #tpu.memory_space<vmem>> -> memref<1x32xf32, #tpu.memory_space<vmem>>
    %46 = tpu.memref_slice %arg6[%c1_i32_28] : memref<8x!tpu.dma_semaphore, #tpu.memory_space<semaphore_mem>> -> memref<1x!tpu.dma_semaphore, #tpu.memory_space<semaphore_mem>>
    %47 = tpu.memref_squeeze %46 : memref<1x!tpu.dma_semaphore, #tpu.memory_space<semaphore_mem>> -> memref<!tpu.dma_semaphore, #tpu.memory_space<semaphore_mem>>
    tpu.wait_dma2 semaphore(%47 : memref<!tpu.dma_semaphore, #tpu.memory_space<semaphore_mem>>) src(%44 : memref<1x32xf32, #tpu.memory_space<any>>) dst(%45 : memref<1x32xf32, #tpu.memory_space<vmem>>)
    %c2_i32_32 = arith.constant 2 : i32
    %c0_i32_33 = arith.constant 0 : i32
    %48 = tpu.memref_slice %arg3[%10, %c0_i32_33] : memref<64x32xf32, #tpu.memory_space<any>> -> memref<1x32xf32, #tpu.memory_space<any>>
    %c2_i32_34 = arith.constant 2 : i32
    %c0_i32_35 = arith.constant 0 : i32
    %49 = tpu.memref_slice %arg5[%c2_i32_34, %c0_i32_35] : memref<8x32xf32, #tpu.memory_space<vmem>> -> memref<1x32xf32, #tpu.memory_space<vmem>>
    %50 = tpu.memref_slice %arg6[%c2_i32_32] : memref<8x!tpu.dma_semaphore, #tpu.memory_space<semaphore_mem>> -> memref<1x!tpu.dma_semaphore, #tpu.memory_space<semaphore_mem>>
    %51 = tpu.memref_squeeze %50 : memref<1x!tpu.dma_semaphore, #tpu.memory_space<semaphore_mem>> -> memref<!tpu.dma_semaphore, #tpu.memory_space<semaphore_mem>>
    tpu.wait_dma2 semaphore(%51 : memref<!tpu.dma_semaphore, #tpu.memory_space<semaphore_mem>>) src(%48 : memref<1x32xf32, #tpu.memory_space<any>>) dst(%49 : memref<1x32xf32, #tpu.memory_space<vmem>>)
    %c3_i32_36 = arith.constant 3 : i32
    %c0_i32_37 = arith.constant 0 : i32
    %52 = tpu.memref_slice %arg3[%15, %c0_i32_37] : memref<64x32xf32, #tpu.memory_space<any>> -> memref<1x32xf32, #tpu.memory_space<any>>
    %c3_i32_38 = arith.constant 3 : i32
    %c0_i32_39 = arith.constant 0 : i32
    %53 = tpu.memref_slice %arg5[%c3_i32_38, %c0_i32_39] : memref<8x32xf32, #tpu.memory_space<vmem>> -> memref<1x32xf32, #tpu.memory_space<vmem>>
    %54 = tpu.memref_slice %arg6[%c3_i32_36] : memref<8x!tpu.dma_semaphore, #tpu.memory_space<semaphore_mem>> -> memref<1x!tpu.dma_semaphore, #tpu.memory_space<semaphore_mem>>
    %55 = tpu.memref_squeeze %54 : memref<1x!tpu.dma_semaphore, #tpu.memory_space<semaphore_mem>> -> memref<!tpu.dma_semaphore, #tpu.memory_space<semaphore_mem>>
    tpu.wait_dma2 semaphore(%55 : memref<!tpu.dma_semaphore, #tpu.memory_space<semaphore_mem>>) src(%52 : memref<1x32xf32, #tpu.memory_space<any>>) dst(%53 : memref<1x32xf32, #tpu.memory_space<vmem>>)
    %c4_i32_40 = arith.constant 4 : i32
    %c0_i32_41 = arith.constant 0 : i32
    %56 = tpu.memref_slice %arg3[%20, %c0_i32_41] : memref<64x32xf32, #tpu.memory_space<any>> -> memref<1x32xf32, #tpu.memory_space<any>>
    %c4_i32_42 = arith.constant 4 : i32
    %c0_i32_43 = arith.constant 0 : i32
    %57 = tpu.memref_slice %arg5[%c4_i32_42, %c0_i32_43] : memref<8x32xf32, #tpu.memory_space<vmem>> -> memref<1x32xf32, #tpu.memory_space<vmem>>
    %58 = tpu.memref_slice %arg6[%c4_i32_40] : memref<8x!tpu.dma_semaphore, #tpu.memory_space<semaphore_mem>> -> memref<1x!tpu.dma_semaphore, #tpu.memory_space<semaphore_mem>>
    %59 = tpu.memref_squeeze %58 : memref<1x!tpu.dma_semaphore, #tpu.memory_space<semaphore_mem>> -> memref<!tpu.dma_semaphore, #tpu.memory_space<semaphore_mem>>
    tpu.wait_dma2 semaphore(%59 : memref<!tpu.dma_semaphore, #tpu.memory_space<semaphore_mem>>) src(%56 : memref<1x32xf32, #tpu.memory_space<any>>) dst(%57 : memref<1x32xf32, #tpu.memory_space<vmem>>)
    %c5_i32_44 = arith.constant 5 : i32
    %c0_i32_45 = arith.constant 0 : i32
    %60 = tpu.memref_slice %arg3[%25, %c0_i32_45] : memref<64x32xf32, #tpu.memory_space<any>> -> memref<1x32xf32, #tpu.memory_space<any>>
    %c5_i32_46 = arith.constant 5 : i32
    %c0_i32_47 = arith.constant 0 : i32
    %61 = tpu.memref_slice %arg5[%c5_i32_46, %c0_i32_47] : memref<8x32xf32, #tpu.memory_space<vmem>> -> memref<1x32xf32, #tpu.memory_space<vmem>>
    %62 = tpu.memref_slice %arg6[%c5_i32_44] : memref<8x!tpu.dma_semaphore, #tpu.memory_space<semaphore_mem>> -> memref<1x!tpu.dma_semaphore, #tpu.memory_space<semaphore_mem>>
    %63 = tpu.memref_squeeze %62 : memref<1x!tpu.dma_semaphore, #tpu.memory_space<semaphore_mem>> -> memref<!tpu.dma_semaphore, #tpu.memory_space<semaphore_mem>>
    tpu.wait_dma2 semaphore(%63 : memref<!tpu.dma_semaphore, #tpu.memory_space<semaphore_mem>>) src(%60 : memref<1x32xf32, #tpu.memory_space<any>>) dst(%61 : memref<1x32xf32, #tpu.memory_space<vmem>>)
    %c6_i32_48 = arith.constant 6 : i32
    %c0_i32_49 = arith.constant 0 : i32
    %64 = tpu.memref_slice %arg3[%30, %c0_i32_49] : memref<64x32xf32, #tpu.memory_space<any>> -> memref<1x32xf32, #tpu.memory_space<any>>
    %c6_i32_50 = arith.constant 6 : i32
    %c0_i32_51 = arith.constant 0 : i32
    %65 = tpu.memref_slice %arg5[%c6_i32_50, %c0_i32_51] : memref<8x32xf32, #tpu.memory_space<vmem>> -> memref<1x32xf32, #tpu.memory_space<vmem>>
    %66 = tpu.memref_slice %arg6[%c6_i32_48] : memref<8x!tpu.dma_semaphore, #tpu.memory_space<semaphore_mem>> -> memref<1x!tpu.dma_semaphore, #tpu.memory_space<semaphore_mem>>
    %67 = tpu.memref_squeeze %66 : memref<1x!tpu.dma_semaphore, #tpu.memory_space<semaphore_mem>> -> memref<!tpu.dma_semaphore, #tpu.memory_space<semaphore_mem>>
    tpu.wait_dma2 semaphore(%67 : memref<!tpu.dma_semaphore, #tpu.memory_space<semaphore_mem>>) src(%64 : memref<1x32xf32, #tpu.memory_space<any>>) dst(%65 : memref<1x32xf32, #tpu.memory_space<vmem>>)
    %c7_i32_52 = arith.constant 7 : i32
    %c0_i32_53 = arith.constant 0 : i32
    %68 = tpu.memref_slice %arg3[%35, %c0_i32_53] : memref<64x32xf32, #tpu.memory_space<any>> -> memref<1x32xf32, #tpu.memory_space<any>>
    %c7_i32_54 = arith.constant 7 : i32
    %c0_i32_55 = arith.constant 0 : i32
    %69 = tpu.memref_slice %arg5[%c7_i32_54, %c0_i32_55] : memref<8x32xf32, #tpu.memory_space<vmem>> -> memref<1x32xf32, #tpu.memory_space<vmem>>
    %70 = tpu.memref_slice %arg6[%c7_i32_52] : memref<8x!tpu.dma_semaphore, #tpu.memory_space<semaphore_mem>> -> memref<1x!tpu.dma_semaphore, #tpu.memory_space<semaphore_mem>>
    %71 = tpu.memref_squeeze %70 : memref<1x!tpu.dma_semaphore, #tpu.memory_space<semaphore_mem>> -> memref<!tpu.dma_semaphore, #tpu.memory_space<semaphore_mem>>
    tpu.wait_dma2 semaphore(%71 : memref<!tpu.dma_semaphore, #tpu.memory_space<semaphore_mem>>) src(%68 : memref<1x32xf32, #tpu.memory_space<any>>) dst(%69 : memref<1x32xf32, #tpu.memory_space<vmem>>)
    %c0_56 = arith.constant 0 : index
    %c0_57 = arith.constant 0 : index
    %72 = vector.load %arg2[%c0_56, %c0_57] : memref<8x1xf32, #tpu.memory_space<vmem>>, vector<8x1xf32>
    %73 = vector.shape_cast %72 : vector<8x1xf32> to vector<1x8x1xf32>
    %cst = arith.constant dense<0.000000e+00> : vector<1xf32>
    %74 = vector.multi_reduction <add>, %73, %cst [1, 2] : vector<1x8x1xf32> to vector<1xf32>
    %75 = vector.shape_cast %74 : vector<1xf32> to vector<1x1x1xf32>
    %76 = vector.extract %75[0, 0, 0] : f32 from vector<1x1x1xf32>
    %cst_58 = arith.constant 1.000000e+00 : f32
    %77 = arith.maximumf %76, %cst_58 : f32
    %c0_59 = arith.constant 0 : index
    %c0_60 = arith.constant 0 : index
    %78 = vector.load %arg5[%c0_59, %c0_60] : memref<8x32xf32, #tpu.memory_space<vmem>>, vector<8x32xf32>
    %79 = vector.broadcast %72 : vector<8x1xf32> to vector<8x32xf32>
    %80 = arith.mulf %78, %79 : vector<8x32xf32>
    %cst_61 = arith.constant dense<0.000000e+00> : vector<32xf32>
    %81 = vector.multi_reduction <add>, %80, %cst_61 [0] : vector<8x32xf32> to vector<32xf32>
    %82 = vector.shape_cast %81 : vector<32xf32> to vector<1x32xf32>
    %83 = vector.broadcast %77 : f32 to vector<1x32xf32>
    %84 = arith.divf %82, %83 : vector<1x32xf32>
    %c0_62 = arith.constant 0 : index
    %c0_63 = arith.constant 0 : index
    %85 = vector.load %arg4[%c0_62, %c0_63] : memref<1x32xf32, #tpu.memory_space<vmem>>, vector<1x32xf32>
    tpu.vector_store %arg4[%c0_62, %c0_63], %84 {strides = array<i32>} : memref<1x32xf32, #tpu.memory_space<vmem>>, vector<1x32xf32>,
    return
  }
  func.func @transform_0(%arg0: i32, %arg1: memref<8xi32, #tpu.memory_space<smem>>) -> (i32, i32) {
    %c0_i32 = arith.constant 0 : i32
    %c0_i32_0 = arith.constant 0 : i32
    %c0_i32_1 = arith.constant 0 : i32
    return %c0_i32, %c0_i32_0 : i32, i32
  }
  func.func @transform_2(%arg0: i32, %arg1: memref<8xi32, #tpu.memory_space<smem>>) -> (i32, i32) {
    %c0_i32 = arith.constant 0 : i32
    %c0_i32_0 = arith.constant 0 : i32
    %c0_i32_1 = arith.constant 0 : i32
    return %c0_i32, %c0_i32_0 : i32, i32
  }
}

module attributes {stable_mosaic.version = 11 : i64} {
  func.func @_decode_head_kernel(%arg0: memref<3x32x32xf32, #tpu.memory_space<vmem>>, %arg1: memref<16x32xbf16, #tpu.memory_space<vmem>>, %arg2: memref<32x16xbf16, #tpu.memory_space<vmem>>, %arg3: memref<3x32xf32, #tpu.memory_space<vmem>>, %arg4: memref<1x32xf32, #tpu.memory_space<vmem>>, %arg5: memref<1x32xf32, #tpu.memory_space<vmem>>, %arg6: memref<32x32xf32, #tpu.memory_space<vmem>>, %arg7: memref<2x32xf32, #tpu.memory_space<vmem>>, %arg8: memref<32x32xf32, #tpu.memory_space<vmem>>, %arg9: memref<1x1xf32, #tpu.memory_space<vmem>>, %arg10: memref<16x128xf32, #tpu.memory_space<vmem>>, %arg11: memref<16x128xf32, #tpu.memory_space<vmem>>) attributes {dimension_semantics = [], scalar_prefetch = 0 : i64, scratch_operands = 0 : i64, tpu.core_type = #tpu.core_type<tc>} {
    %c0 = arith.constant 0 : index
    %c0_0 = arith.constant 0 : index
    %0 = vector.load %arg5[%c0, %c0_0] : memref<1x32xf32, #tpu.memory_space<vmem>>, vector<1x32xf32>
    %c0_1 = arith.constant 0 : index
    %c0_2 = arith.constant 0 : index
    %1 = vector.load %arg6[%c0_1, %c0_2] : memref<32x32xf32, #tpu.memory_space<vmem>>, vector<32x32xf32>
    %cst = arith.constant dense<0.000000e+00> : vector<1x32xf32>
    %2 = tpu.matmul %0, %1, %cst {dimension_numbers = #tpu.dot_dimension_numbers<[1], [0], [0], [1], [0, 0, 1, 1], [], []>} : vector<1x32xf32>, vector<32x32xf32>, vector<1x32xf32> -> vector<1x32xf32>
    %c0_3 = arith.constant 0 : index
    %c0_4 = arith.constant 0 : index
    %3 = vector.load %arg7[%c0_3, %c0_4] : memref<2x32xf32, #tpu.memory_space<vmem>>, vector<2x32xf32>
    %4 = vector.broadcast %2 : vector<1x32xf32> to vector<2x32xf32>
    %5 = arith.addf %3, %4 : vector<2x32xf32>
    %c0_5 = arith.constant 0 : index
    %c0_6 = arith.constant 0 : index
    %6 = vector.load %arg8[%c0_5, %c0_6] : memref<32x32xf32, #tpu.memory_space<vmem>>, vector<32x32xf32>
    %cst_7 = arith.constant dense<0.000000e+00> : vector<2x32xf32>
    %7 = tpu.matmul %5, %6, %cst_7 {dimension_numbers = #tpu.dot_dimension_numbers<[1], [0], [0], [1], [0, 0, 1, 1], [], []>} : vector<2x32xf32>, vector<32x32xf32>, vector<2x32xf32> -> vector<2x32xf32>
    %8 = arith.mulf %7, %7 : vector<2x32xf32>
    %cst_8 = arith.constant dense<0.000000e+00> : vector<2xf32>
    %9 = vector.multi_reduction <add>, %8, %cst_8 [1] : vector<2x32xf32> to vector<2xf32>
    %10 = vector.shape_cast %9 : vector<2xf32> to vector<2x1xf32>
    %11 = math.sqrt %10 : vector<2x1xf32>
    %cst_9 = arith.constant 1.000000e-07 : f32
    %12 = vector.broadcast %cst_9 : f32 to vector<2x1xf32>
    %13 = arith.addf %11, %12 : vector<2x1xf32>
    %14 = vector.broadcast %13 : vector<2x1xf32> to vector<2x32xf32>
    %15 = arith.divf %7, %14 : vector<2x32xf32>
    %16 = arith.mulf %0, %0 : vector<1x32xf32>
    %cst_10 = arith.constant dense<0.000000e+00> : vector<1xf32>
    %17 = vector.multi_reduction <add>, %16, %cst_10 [1] : vector<1x32xf32> to vector<1xf32>
    %18 = vector.shape_cast %17 : vector<1xf32> to vector<1x1xf32>
    %19 = math.sqrt %18 : vector<1x1xf32>
    %cst_11 = arith.constant 1.000000e-07 : f32
    %20 = vector.broadcast %cst_11 : f32 to vector<1x1xf32>
    %21 = arith.addf %19, %20 : vector<1x1xf32>
    %22 = vector.broadcast %21 : vector<1x1xf32> to vector<1x32xf32>
    %23 = arith.divf %0, %22 : vector<1x32xf32>
    %c0_12 = arith.constant 0 : index
    %c0_13 = arith.constant 0 : index
    %24 = vector.load %arg9[%c0_12, %c0_13] : memref<1x1xf32, #tpu.memory_space<vmem>>, vector<1x1xf32>
    %25 = math.exp %24 : vector<1x1xf32>
    %cst_14 = arith.constant 1.000000e+02 : f32
    %26 = vector.broadcast %cst_14 : f32 to vector<1x1xf32>
    %27 = arith.minimumf %25, %26 : vector<1x1xf32>
    %28 = vector.broadcast %23 : vector<1x32xf32> to vector<2x32xf32>
    %29 = arith.mulf %15, %28 : vector<2x32xf32>
    %cst_15 = arith.constant dense<0.000000e+00> : vector<2xf32>
    %30 = vector.multi_reduction <add>, %29, %cst_15 [1] : vector<2x32xf32> to vector<2xf32>
    %31 = vector.shape_cast %30 : vector<2xf32> to vector<2x1xf32>
    %32 = vector.broadcast %27 : vector<1x1xf32> to vector<2x1xf32>
    %33 = arith.mulf %31, %32 : vector<2x1xf32>
    %34 = tpu.iota {dimensions = array<i32: 0>} : vector<2x1xi32>
    %35 = vector.shape_cast %33 : vector<2x1xf32> to vector<1x2x1xf32>
    %cst_16 = arith.constant dense<0xFF800000> : vector<1xf32>
    %36 = vector.multi_reduction <maximumf>, %35, %cst_16 [1, 2] : vector<1x2x1xf32> to vector<1xf32>
    %37 = vector.shape_cast %36 : vector<1xf32> to vector<1x1x1xf32>
    %38 = vector.extract %37[0, 0, 0] : f32 from vector<1x1x1xf32>
    %39 = vector.broadcast %38 : f32 to vector<2x1xf32>
    %40 = arith.cmpf oeq, %33, %39 : vector<2x1xf32>
    %c2_i32 = arith.constant 2 : i32
    %41 = vector.broadcast %c2_i32 : i32 to vector<2x1xi32>
    %42 = arith.select %40, %34, %41 : vector<2x1xi1>, vector<2x1xi32>
    %43 = vector.shape_cast %42 : vector<2x1xi32> to vector<1x2x1xi32>
    %cst_17 = arith.constant dense<2147483647> : vector<1xi32>
    %44 = vector.multi_reduction <minsi>, %43, %cst_17 [1, 2] : vector<1x2x1xi32> to vector<1xi32>
    %45 = vector.shape_cast %44 : vector<1xi32> to vector<1x1x1xi32>
    %46 = vector.extract %45[0, 0, 0] : i32 from vector<1x1x1xi32>
    %47 = vector.broadcast %46 : i32 to vector<2x1xi32>
    %48 = arith.cmpi eq, %34, %47 : vector<2x1xi32>
    %49 = arith.extui %48 : vector<2x1xi1> to vector<2x1xi32>
    %50 = arith.sitofp %49 : vector<2x1xi32> to vector<2x1xf32>
    %51 = vector.broadcast %50 : vector<2x1xf32> to vector<2x32xf32>
    %52 = arith.mulf %5, %51 : vector<2x32xf32>
    %cst_18 = arith.constant dense<0.000000e+00> : vector<32xf32>
    %53 = vector.multi_reduction <add>, %52, %cst_18 [0] : vector<2x32xf32> to vector<32xf32>
    %54 = vector.shape_cast %53 : vector<32xf32> to vector<1x32xf32>
    %c0_19 = arith.constant 0 : index
    %c0_20 = arith.constant 0 : index
    %55 = vector.load %arg3[%c0_19, %c0_20] : memref<3x32xf32, #tpu.memory_space<vmem>>, vector<1x32xf32>
    %56 = arith.mulf %54, %55 : vector<1x32xf32>
    %cst_21 = arith.constant dense<0.000000e+00> : vector<1xf32>
    %57 = vector.multi_reduction <add>, %56, %cst_21 [1] : vector<1x32xf32> to vector<1xf32>
    %58 = vector.shape_cast %57 : vector<1xf32> to vector<1x1xf32>
    %c0_22 = arith.constant 0 : index
    %c0_23 = arith.constant 0 : index
    %c0_24 = arith.constant 0 : index
    %59 = vector.load %arg0[%c0_22, %c0_23, %c0_24] : memref<3x32x32xf32, #tpu.memory_space<vmem>>, vector<1x32x32xf32>
    %60 = vector.shape_cast %59 : vector<1x32x32xf32> to vector<32x32xf32>
    %61 = vector.broadcast %58 : vector<1x1xf32> to vector<32x32xf32>
    %62 = arith.mulf %61, %60 : vector<32x32xf32>
    %c1 = arith.constant 1 : index
    %c0_25 = arith.constant 0 : index
    %63 = vector.load %arg3[%c1, %c0_25] : memref<3x32xf32, #tpu.memory_space<vmem>>, vector<1x32xf32>
    %64 = arith.mulf %54, %63 : vector<1x32xf32>
    %cst_26 = arith.constant dense<0.000000e+00> : vector<1xf32>
    %65 = vector.multi_reduction <add>, %64, %cst_26 [1] : vector<1x32xf32> to vector<1xf32>
    %66 = vector.shape_cast %65 : vector<1xf32> to vector<1x1xf32>
    %c1_27 = arith.constant 1 : index
    %c0_28 = arith.constant 0 : index
    %c0_29 = arith.constant 0 : index
    %67 = vector.load %arg0[%c1_27, %c0_28, %c0_29] : memref<3x32x32xf32, #tpu.memory_space<vmem>>, vector<1x32x32xf32>
    %68 = vector.shape_cast %67 : vector<1x32x32xf32> to vector<32x32xf32>
    %69 = vector.broadcast %66 : vector<1x1xf32> to vector<32x32xf32>
    %70 = arith.mulf %69, %68 : vector<32x32xf32>
    %71 = arith.addf %62, %70 : vector<32x32xf32>
    %c2 = arith.constant 2 : index
    %c0_30 = arith.constant 0 : index
    %72 = vector.load %arg3[%c2, %c0_30] : memref<3x32xf32, #tpu.memory_space<vmem>>, vector<1x32xf32>
    %73 = arith.mulf %54, %72 : vector<1x32xf32>
    %cst_31 = arith.constant dense<0.000000e+00> : vector<1xf32>
    %74 = vector.multi_reduction <add>, %73, %cst_31 [1] : vector<1x32xf32> to vector<1xf32>
    %75 = vector.shape_cast %74 : vector<1xf32> to vector<1x1xf32>
    %c2_32 = arith.constant 2 : index
    %c0_33 = arith.constant 0 : index
    %c0_34 = arith.constant 0 : index
    %76 = vector.load %arg0[%c2_32, %c0_33, %c0_34] : memref<3x32x32xf32, #tpu.memory_space<vmem>>, vector<1x32x32xf32>
    %77 = vector.shape_cast %76 : vector<1x32x32xf32> to vector<32x32xf32>
    %78 = vector.broadcast %75 : vector<1x1xf32> to vector<32x32xf32>
    %79 = arith.mulf %78, %77 : vector<32x32xf32>
    %80 = arith.addf %71, %79 : vector<32x32xf32>
    %c0_35 = arith.constant 0 : index
    %c0_36 = arith.constant 0 : index
    %81 = vector.load %arg4[%c0_35, %c0_36] : memref<1x32xf32, #tpu.memory_space<vmem>>, vector<1x32xf32>
    %82 = arith.mulf %54, %81 : vector<1x32xf32>
    %cst_37 = arith.constant dense<0.000000e+00> : vector<1xf32>
    %83 = vector.multi_reduction <add>, %82, %cst_37 [1] : vector<1x32xf32> to vector<1xf32>
    %84 = vector.shape_cast %83 : vector<1xf32> to vector<1x1xf32>
    %85 = arith.truncf %80 : vector<32x32xf32> to vector<32x32xbf16>
    %c0_38 = arith.constant 0 : index
    %c0_39 = arith.constant 0 : index
    %86 = vector.load %arg2[%c0_38, %c0_39] : memref<32x16xbf16, #tpu.memory_space<vmem>>, vector<32x16xbf16>
    %cst_40 = arith.constant dense<0.000000e+00> : vector<32x16xf32>
    %87 = tpu.matmul %85, %86, %cst_40 {dimension_numbers = #tpu.dot_dimension_numbers<[1], [0], [0], [1], [0, 0, 1, 1], [], []>} : vector<32x32xbf16>, vector<32x16xbf16>, vector<32x16xf32> -> vector<32x16xf32>
    %c0_41 = arith.constant 0 : index
    %c0_42 = arith.constant 0 : index
    %88 = vector.load %arg1[%c0_41, %c0_42] : memref<16x32xbf16, #tpu.memory_space<vmem>>, vector<16x32xbf16>
    %89 = arith.truncf %87 : vector<32x16xf32> to vector<32x16xbf16>
    %cst_43 = arith.constant dense<0.000000e+00> : vector<16x16xf32>
    %90 = tpu.matmul %88, %89, %cst_43 {dimension_numbers = #tpu.dot_dimension_numbers<[1], [0], [0], [1], [0, 0, 1, 1], [], []>} : vector<16x32xbf16>, vector<32x16xbf16>, vector<16x16xf32> -> vector<16x16xf32>
    %91 = vector.broadcast %84 : vector<1x1xf32> to vector<16x16xf32>
    %92 = arith.addf %90, %91 : vector<16x16xf32>
    %c0_44 = arith.constant 0 : index
    %c0_45 = arith.constant 0 : index
    %93 = vector.load %arg10[%c0_44, %c0_45] : memref<16x128xf32, #tpu.memory_space<vmem>>, vector<16x128xf32>
    %cst_46 = arith.constant dense<0.000000e+00> : vector<16x128xf32>
    %94 = tpu.matmul %92, %93, %cst_46 {dimension_numbers = #tpu.dot_dimension_numbers<[1], [0], [0], [1], [0, 0, 1, 1], [], []>} : vector<16x16xf32>, vector<16x128xf32>, vector<16x128xf32> -> vector<16x128xf32>
    %c0_47 = arith.constant 0 : index
    %c0_48 = arith.constant 0 : index
    %95 = vector.load %arg11[%c0_47, %c0_48] : memref<16x128xf32, #tpu.memory_space<vmem>>, vector<16x128xf32>
    tpu.vector_store %arg11[%c0_47, %c0_48], %94 {strides = array<i32>} : memref<16x128xf32, #tpu.memory_space<vmem>>, vector<16x128xf32>,
    return
  }
}

module attributes {stable_mosaic.version = 11 : i64} {
  func.func @_upsample_threshold_kernel(%arg0: i32, %arg1: memref<64x16xf32, #tpu.memory_space<vmem>>, %arg2: memref<16x128xf32, #tpu.memory_space<vmem>>, %arg3: memref<64x128xf32, #tpu.memory_space<vmem>>) attributes {dimension_semantics = [#tpu.dimension_semantics<parallel>], iteration_bounds = array<i64: 2>, scalar_prefetch = 0 : i64, scratch_operands = 0 : i64, tpu.core_type = #tpu.core_type<tc>, window_params = [{transform_indices = @transform_0, window_bounds = array<i64: 64, 16>}, {pipeline_mode = #tpu.pipeline_mode<synchronous>, transform_indices = @transform_1, window_bounds = array<i64: 16, 128>}, {transform_indices = @transform_2, window_bounds = array<i64: 64, 128>}]} {
    %c0 = arith.constant 0 : index
    %c0_0 = arith.constant 0 : index
    %0 = vector.load %arg1[%c0, %c0_0] : memref<64x16xf32, #tpu.memory_space<vmem>>, vector<64x16xf32>
    %c0_1 = arith.constant 0 : index
    %c0_2 = arith.constant 0 : index
    %1 = vector.load %arg2[%c0_1, %c0_2] : memref<16x128xf32, #tpu.memory_space<vmem>>, vector<16x128xf32>
    %cst = arith.constant dense<0.000000e+00> : vector<64x128xf32>
    %2 = tpu.matmul %0, %1, %cst {dimension_numbers = #tpu.dot_dimension_numbers<[1], [0], [0], [1], [0, 0, 1, 1], [], []>} : vector<64x16xf32>, vector<16x128xf32>, vector<64x128xf32> -> vector<64x128xf32>
    %cst_3 = arith.constant 0.000000e+00 : f32
    %3 = vector.broadcast %cst_3 : f32 to vector<64x128xf32>
    %4 = arith.cmpf oge, %2, %3 : vector<64x128xf32>
    %5 = arith.extui %4 : vector<64x128xi1> to vector<64x128xi32>
    %6 = arith.sitofp %5 : vector<64x128xi32> to vector<64x128xf32>
    %c0_4 = arith.constant 0 : index
    %c0_5 = arith.constant 0 : index
    %7 = vector.load %arg3[%c0_4, %c0_5] : memref<64x128xf32, #tpu.memory_space<vmem>>, vector<64x128xf32>
    tpu.vector_store %arg3[%c0_4, %c0_5], %6 {strides = array<i32>} : memref<64x128xf32, #tpu.memory_space<vmem>>, vector<64x128xf32>,
    return
  }
  func.func @transform_0(%arg0: i32) -> (i32, i32) {
    %c0_i32 = arith.constant 0 : i32
    %c0_i32_0 = arith.constant 0 : i32
    return %arg0, %c0_i32 : i32, i32
  }
  func.func @transform_1(%arg0: i32) -> (i32, i32) {
    %c0_i32 = arith.constant 0 : i32
    %c0_i32_0 = arith.constant 0 : i32
    %c0_i32_1 = arith.constant 0 : i32
    return %c0_i32, %c0_i32_0 : i32, i32
  }
  func.func @transform_2(%arg0: i32) -> (i32, i32) {
    %c0_i32 = arith.constant 0 : i32
    %c0_i32_0 = arith.constant 0 : i32
    return %arg0, %c0_i32 : i32, i32
  }
}

</mosaic_0001>

<llo_original>
// kernel: xdecoder_forward.4
$region0: #{xdecoder_forward.4}
  #allocation0 [shape = 'u32[]', space=smem, size = 0x4, offset = 0x4, fixed_abs, tag = 'smem constant byte address 0x4 - core index']
  #allocation1 [shape = 'u32[144,128]{1,0:T(1,128)}', space=vmem, size = 0x12000, scoped, tag = 'internal scratch']
  %s0 = inlined_call_operand.vmem [shape: f32[3], index: 0, kind: input, shape index: {}]
  %s1 = inlined_call_operand.vmem [shape: f32[3], index: 1, kind: input, shape index: {}]
  %s2 = inlined_call_operand.vmem [shape: bf16[3,128,128], index: 2, kind: input, shape index: {}]
  %s3 = inlined_call_operand.vmem [shape: bf16[32,128], index: 3, kind: input, shape index: {}]
  %s4 = inlined_call_operand.vmem [shape: bf16[128,32], index: 4, kind: input, shape index: {}]
  %s5 = inlined_call_operand.vmem [shape: f32[3,32,32], index: 5, kind: output, shape index: {}]
  %s6 = sld [smem:[#allocation0]]
  $region61: #{xdecoder_forward.4} parent=0
    _
  %s8 = ssub.s32 1, %s6
  %s9 = scalar_select 0, %s8, %s6
  $region1: #{xdecoder_forward.4} parent=0
    #allocation2 [shape = 'u8[512]{0}', space=smem, size = 0x200, scoped, tag = 'input window, operand 0, single buffered']
    #allocation3 [shape = 's32[2]{0}', space=sflag, size = 0x8, scoped, tag = 'scoped memory for xdecoder_forward.4']
    #allocation4 [shape = 'u8[512]{0}', space=smem, size = 0x200, scoped, tag = 'input window, operand 1, single buffered']
    #allocation5 [shape = 's32[1]{0}', space=sflag, size = 0x4, scoped, tag = 'scoped memory for xdecoder_forward.4']
    %10 = vsyncpa [#allocation3], 0
    %11 = vsyncpa [#allocation5], 0
    loop: start=0, step=1, limit=8
    $region2: #{xdecoder_forward.4} parent=1 // loop_pre_header
      _
    $region3: #{xdecoder_forward.4} parent=1 // loop_header
      %s13 = sphi 0, %s17
      %p14 = scmp.ge.s32.totalorder %s13, 8
      %s20 = sphi 0, %s32
      %s21 = sphi 0, %s28
      %s22 = sphi 0, %s20
      %s23 = sphi 0, %s21
      %s24 = sphi 0, %s22
      %s25 = sphi 0, %s23
      %s33 = sphi 0, %s33
      %s35 = sphi 0, %s33
      %s36 = sphi 0, %s35
      %s50 = sphi 0, %s36
      %s54 = sphi 0, %s54
      %s56 = sphi 0, %s54
      %s57 = sphi 0, %s56
      %s71 = sphi 0, %s57
      %s77 = sphi 0, %s79
      %s80 = sphi 0, %s77
      %s81 = sphi 0, %s80
      %s97 = sphi 0, %s81
      %s103 = sphi 0, %s105
      %s106 = sphi 0, %s103
      %s107 = sphi 0, %s106
      %s123 = sphi 0, %s107
      %s127 = sphi 0, %s127
      %s129 = sphi 0, %s127
      %s130 = sphi 0, %s129
      %s144 = sphi 0, %s130
      %s152 = sphi 0, %s154
      %s155 = sphi 0, %s152
      %s156 = sphi 0, %s155
      %s172 = sphi 0, %s156
    $region4: #{xdecoder_forward.4} parent=1 // loop_header_branch
      %16 = sbr.rel (%p14) target = $region8
    $region5: #{xdecoder_forward.4} parent=1 // loop_body
      %s18 = ssub.s32 %s13, 1
      %s19 = ssub.s32 %s13, 2
      %s26 = sadd.s32 1, %s21
      %p27 = scmp.ge.s32.totalorder %s26, 2
      %s28 = scalar_select %p27, 0, %s26
      %s29 = sadd.s32 1, %s20
      %s30 = scalar_select %p27, %s29, %s20
      %p31 = scmp.ge.s32.totalorder %s30, 3
      %s32 = scalar_select %p31, 0, %s30
      %s34 = sadd.s32 %s33, 1
      %p37 = scmp.eq.s32.totalorder %s13, 5
      %p38 = scmp.ne.s32.totalorder %s33, %s35
      %p39 = scmp.eq.s32.totalorder %s13, 0
      %p40 = por %p38, %p39
      %p41 = scmp.ne.s32.totalorder %s33, %s35
      %p42 = scmp.eq.s32.totalorder %s18, 5
      %p43 = por %p41, %p42
      %p44 = scmp.ne.s32.totalorder %s35, %s36
      %p45 = scmp.eq.s32.totalorder %s18, 0
      %p46 = por %p44, %p45
      %p47 = scmp.ne.s32.totalorder %s35, %s36
      %p48 = scmp.eq.s32.totalorder %s19, 5
      %p49 = por %p47, %p48
      %p51 = scmp.ne.s32.totalorder %s36, %s50
      %p52 = scmp.eq.s32.totalorder %s19, 0
      %p53 = por %p51, %p52
      %s55 = sadd.s32 %s54, 1
      %p58 = scmp.eq.s32.totalorder %s13, 5
      %p59 = scmp.ne.s32.totalorder %s54, %s56
      %p60 = scmp.eq.s32.totalorder %s13, 0
      %p61 = por %p59, %p60
      %p62 = scmp.ne.s32.totalorder %s54, %s56
      %p63 = scmp.eq.s32.totalorder %s18, 5
      %p64 = por %p62, %p63
      %p65 = scmp.ne.s32.totalorder %s56, %s57
      %p66 = scmp.eq.s32.totalorder %s18, 0
      %p67 = por %p65, %p66
      %p68 = scmp.ne.s32.totalorder %s56, %s57
      %p69 = scmp.eq.s32.totalorder %s19, 5
      %p70 = por %p68, %p69
      %p72 = scmp.ne.s32.totalorder %s57, %s71
      %p73 = scmp.eq.s32.totalorder %s19, 0
      %p74 = por %p72, %p73
      %s75 = ssub.s32 %s20, %s32
      %p76 = scmp.eq.s32.totalorder %s75, 0
      %s78 = sadd.s32 %s77, 1
      %s79 = scalar_select %p76, %s77, %s78
      %p82 = pneg %p76
      %p83 = scmp.eq.s32.totalorder %s13, 5
      %p84 = por %p82, %p83
      %p85 = scmp.ne.s32.totalorder %s77, %s80
      %p86 = scmp.eq.s32.totalorder %s13, 0
      %p87 = por %p85, %p86
      %p88 = scmp.ne.s32.totalorder %s77, %s80
      %p89 = scmp.eq.s32.totalorder %s18, 5
      %p90 = por %p88, %p89
      %p91 = scmp.ne.s32.totalorder %s80, %s81
      %p92 = scmp.eq.s32.totalorder %s18, 0
      %p93 = por %p91, %p92
      %p94 = scmp.ne.s32.totalorder %s80, %s81
      %p95 = scmp.eq.s32.totalorder %s19, 5
      %p96 = por %p94, %p95
      %p98 = scmp.ne.s32.totalorder %s81, %s97
      %p99 = scmp.eq.s32.totalorder %s19, 0
      %p100 = por %p98, %p99
      %s101 = ssub.s32 %s21, %s28
      %p102 = scmp.eq.s32.totalorder %s101, 0
      %s104 = sadd.s32 %s103, 1
      %s105 = scalar_select %p102, %s103, %s104
      %p108 = pneg %p102
      %p109 = scmp.eq.s32.totalorder %s13, 5
      %p110 = por %p108, %p109
      %p111 = scmp.ne.s32.totalorder %s103, %s106
      %p112 = scmp.eq.s32.totalorder %s13, 0
      %p113 = por %p111, %p112
      %p114 = scmp.ne.s32.totalorder %s103, %s106
      %p115 = scmp.eq.s32.totalorder %s18, 5
      %p116 = por %p114, %p115
      %p117 = scmp.ne.s32.totalorder %s106, %s107
      %p118 = scmp.eq.s32.totalorder %s18, 0
      %p119 = por %p117, %p118
      %p120 = scmp.ne.s32.totalorder %s106, %s107
      %p121 = scmp.eq.s32.totalorder %s19, 5
      %p122 = por %p120, %p121
      %p124 = scmp.ne.s32.totalorder %s107, %s123
      %p125 = scmp.eq.s32.totalorder %s19, 0
      %p126 = por %p124, %p125
      %s128 = sadd.s32 %s127, 1
      %p131 = scmp.eq.s32.totalorder %s13, 5
      %p132 = scmp.ne.s32.totalorder %s127, %s129
      %p133 = scmp.eq.s32.totalorder %s13, 0
      %p134 = por %p132, %p133
      %p135 = scmp.ne.s32.totalorder %s127, %s129
      %p136 = scmp.eq.s32.totalorder %s18, 5
      %p137 = por %p135, %p136
      %p138 = scmp.ne.s32.totalorder %s129, %s130
      %p139 = scmp.eq.s32.totalorder %s18, 0
      %p140 = por %p138, %p139
      %p141 = scmp.ne.s32.totalorder %s129, %s130
      %p142 = scmp.eq.s32.totalorder %s19, 5
      %p143 = por %p141, %p142
      %p145 = scmp.ne.s32.totalorder %s130, %s144
      %p146 = scmp.eq.s32.totalorder %s19, 0
      %p147 = por %p145, %p146
      %s148 = ssub.s32 %s20, %s32
      %s149 = ssub.s32 %s21, %s28
      %s150 = sor.u32 %s148, %s149
      %p151 = scmp.eq.s32.totalorder %s150, 0
      %s153 = sadd.s32 %s152, 1
      %s154 = scalar_select %p151, %s152, %s153
      %p157 = pneg %p151
      %p158 = scmp.eq.s32.totalorder %s13, 5
      %p159 = por %p157, %p158
      %p160 = scmp.ne.s32.totalorder %s152, %s155
      %p161 = scmp.eq.s32.totalorder %s13, 0
      %p162 = por %p160, %p161
      %p163 = scmp.ne.s32.totalorder %s152, %s155
      %p164 = scmp.eq.s32.totalorder %s18, 5
      %p165 = por %p163, %p164
      %p166 = scmp.ne.s32.totalorder %s155, %s156
      %p167 = scmp.eq.s32.totalorder %s18, 0
      %p168 = por %p166, %p167
      %p169 = scmp.ne.s32.totalorder %s155, %s156
      %p170 = scmp.eq.s32.totalorder %s19, 5
      %p171 = por %p169, %p170
      %p173 = scmp.ne.s32.totalorder %s156, %s172
      %p174 = scmp.eq.s32.totalorder %s19, 0
      %p175 = por %p173, %p174
      %p176 = scmp.le.s32.totalorder 1, %s13
      %p177 = scmp.lt.s32.totalorder %s13, 7
      %p178 = pnand %p176, %p177
      %p179 = pneg %p178
      // Predicated region
      $region9: #{xdecoder_forward.4} parent=5 // pred_check
        _
      $region10: #{xdecoder_forward.4} parent=5 // pred_check_branch
        %181 = sbr.rel (%p178) target = $region12
      $region11: #{xdecoder_forward.4} parent=5 // pred_region
        %s182 = ssub.s32 %s13, 1
        // Predicated region
        $region13: #{xdecoder_forward.4} parent=11 // pred_check
          %p183 = pneg %p46
        $region14: #{xdecoder_forward.4} parent=11 // pred_check_branch
          %185 = sbr.rel (%p183) target = $region16
        $region15: #{xdecoder_forward.4} parent=11 // pred_region
          %s187 = ssub.s32 16, 16
          %188 = vsyncadd [#allocation3], %s187
          %s190 = sshll.u32 %s0, 4
          %s191 = int_to_ptr.vmem [resolvable:$true] %s190
          %193 = dma.vmem_to_smem %s191, 16, [#allocation2], [#allocation3]
        $region16: #{xdecoder_forward.4} parent=11 // pred_fallthru
          _
        // Predicated region
        $region17: #{xdecoder_forward.4} parent=11 // pred_check
          %p194 = pneg %p67
        $region18: #{xdecoder_forward.4} parent=11 // pred_check_branch
          %196 = sbr.rel (%p194) target = $region20
        $region19: #{xdecoder_forward.4} parent=11 // pred_region
          %s198 = ssub.s32 16, 16
          %199 = vsyncadd [#allocation5], %s198
          %s201 = sshll.u32 %s1, 4
          %s202 = int_to_ptr.vmem [resolvable:$true] %s201
          %204 = dma.vmem_to_smem %s202, 16, [#allocation4], [#allocation5]
        $region20: #{xdecoder_forward.4} parent=11 // pred_fallthru
          _
        // Predicated region
        $region21: #{xdecoder_forward.4} parent=11 // pred_check
          %p205 = pneg %p140
        $region22: #{xdecoder_forward.4} parent=11 // pred_check_branch
          %207 = sbr.rel (%p205) target = $region24
        $region23: #{xdecoder_forward.4} parent=11 // pred_region
          _
        $region24: #{xdecoder_forward.4} parent=11 // pred_fallthru
          _
      $region12: #{xdecoder_forward.4} parent=5 // pred_fallthru
        _
      %p208 = scmp.lt.s32.totalorder %s13, 6
      // Predicated region
      $region25: #{xdecoder_forward.4} parent=5 // pred_check
        %p209 = pneg %p208
      $region26: #{xdecoder_forward.4} parent=5 // pred_check_branch
        %211 = sbr.rel (%p209) target = $region28
      $region27: #{xdecoder_forward.4} parent=5 // pred_region
        // Predicated region
        $region29: #{xdecoder_forward.4} parent=27 // pred_check
          %p212 = pneg %p87
        $region30: #{xdecoder_forward.4} parent=27 // pred_check_branch
          %214 = sbr.rel (%p212) target = $region32
        $region31: #{xdecoder_forward.4} parent=27 // pred_region
          %p215 = scmp.lt.s32.totalorder %s20, 2
          %s216 = scalar_select %p215, %s20, 2
          %s217 = smul.addr %s216, 16
          %s218 = smul.addr %s217, 4
          %s219 = scalar_lea.vmem %s2, %s218
        $region32: #{xdecoder_forward.4} parent=27 // pred_fallthru
          _
        // Predicated region
        $region33: #{xdecoder_forward.4} parent=27 // pred_check
          %p220 = pneg %p113
        $region34: #{xdecoder_forward.4} parent=27 // pred_check_branch
          %222 = sbr.rel (%p220) target = $region36
        $region35: #{xdecoder_forward.4} parent=27 // pred_region
          %s223 = smul.u32 2, %s21
          %p224 = scmp.lt.s32.totalorder %s223, 3
          %s225 = scalar_select %p224, %s223, 3
          %s226 = smul.addr %s225, 4
          %s227 = scalar_lea.vmem %s3, %s226
          %s228 = smul.u32 2, %s21
        $region36: #{xdecoder_forward.4} parent=27 // pred_fallthru
          _
      $region28: #{xdecoder_forward.4} parent=5 // pred_fallthru
        _
      %p229 = scmp.le.s32.totalorder 1, %s13
      %p230 = scmp.lt.s32.totalorder %s13, 7
      %p231 = pnand %p229, %p230
      %p232 = pneg %p231
      // Predicated region
      $region37: #{xdecoder_forward.4} parent=5 // pred_check
        _
      $region38: #{xdecoder_forward.4} parent=5 // pred_check_branch
        %234 = sbr.rel (%p231) target = $region40
      $region39: #{xdecoder_forward.4} parent=5 // pred_region
        %s235 = ssub.s32 %s13, 1
        // Predicated region
        $region41: #{xdecoder_forward.4} parent=39 // pred_check
          %p236 = pneg %p46
        $region42: #{xdecoder_forward.4} parent=39 // pred_check_branch
          %238 = sbr.rel (%p236) target = $region44
        $region43: #{xdecoder_forward.4} parent=39 // pred_region
          %239 = dma.done [#allocation3], 16
        $region44: #{xdecoder_forward.4} parent=39 // pred_fallthru
          _
        // Predicated region
        $region45: #{xdecoder_forward.4} parent=39 // pred_check
          %p240 = pneg %p67
        $region46: #{xdecoder_forward.4} parent=39 // pred_check_branch
          %242 = sbr.rel (%p240) target = $region48
        $region47: #{xdecoder_forward.4} parent=39 // pred_region
          %243 = dma.done [#allocation5], 16
        $region48: #{xdecoder_forward.4} parent=39 // pred_fallthru
          _
        %244 = sfence
        %p245 = pneg %p46
        %p246 = pneg %p43
        %p247 = pneg %p67
        %p248 = pneg %p64
        %p249 = scmp.lt.s32.totalorder %s22, 2
        %s250 = scalar_select %p249, %s22, 2
        %s251 = smul.addr %s250, 16
        %s252 = smul.addr %s251, 4
        %s253 = scalar_lea.vmem %s2, %s252
        %p254 = pneg %p93
        %p255 = pneg %p90
        %s256 = smul.u32 2, %s23
        %p257 = scmp.lt.s32.totalorder %s256, 3
        %s258 = scalar_select %p257, %s256, 3
        %s259 = smul.addr %s258, 4
        %s260 = scalar_lea.vmem %s3, %s259
        %p261 = pneg %p119
        %p262 = pneg %p116
        %p263 = pneg %p140
        %p264 = pneg %p137
        %p265 = pneg %p168
        %p266 = pneg %p165
        %s267 = smul.u32 2, %s23
        %p268 = scmp.lt.s32.totalorder %s22, 2
        %s269 = scalar_select %p268, %s22, 2
        %p270 = scmp.lt.s32.totalorder %s267, 3
        %s271 = scalar_select %p270, %s267, 3
        %s272 = smul.addr %s269, 4
        %s273 = sadd.s32 %s271, %s272
        %s274 = smul.addr %s273, 8
        %s275 = scalar_lea.vmem %s5, %s274
        %p276 = scmp.lt.s32.totalorder %s22, 2
        %s277 = scalar_select %p276, %s22, 2
        %s278 = smul.addr %s277, 16
        %s279 = smul.addr %s278, 4
        %s280 = scalar_lea.vmem %s2, %s279
        %s281 = smul.u32 2, %s23
        %p282 = scmp.lt.s32.totalorder %s281, 3
        %s283 = scalar_select %p282, %s281, 3
        %s284 = smul.addr %s283, 4
        %s285 = scalar_lea.vmem %s3, %s284
        %s286 = smul.u32 2, %s23
        %s287 = smul.u32 2, %s23
        %p288 = scmp.lt.s32.totalorder %s22, 2
        %s289 = scalar_select %p288, %s22, 2
        %p290 = scmp.lt.s32.totalorder %s287, 3
        %s291 = scalar_select %p290, %s287, 3
        %s292 = smul.addr %s289, 4
        %s293 = sadd.s32 %s291, %s292
        %s294 = smul.addr %s293, 8
        %s295 = scalar_lea.vmem %s5, %s294
        %s296 = smul.u32 2, %s23
        %v298 = vld [vmem:[%s280] sm:$0xf]
        %v299 = vld [vmem:[%s280 + $0x4] sm:$0xf]
        %v300 = vld [vmem:[%s280 + $0x8] sm:$0xf]
        %v301 = vld [vmem:[%s280 + $0xc] sm:$0xf]
        %v302 = vld [vmem:[%s280 + $0x10] sm:$0xf]
        %v303 = vld [vmem:[%s280 + $0x14] sm:$0xf]
        %v304 = vld [vmem:[%s280 + $0x18] sm:$0xf]
        %v305 = vld [vmem:[%s280 + $0x1c] sm:$0xf]
        %v306 = vld [vmem:[%s280 + $0x20] sm:$0xf]
        %v307 = vld [vmem:[%s280 + $0x24] sm:$0xf]
        %v308 = vld [vmem:[%s280 + $0x28] sm:$0xf]
        %v309 = vld [vmem:[%s280 + $0x2c] sm:$0xf]
        %v310 = vld [vmem:[%s280 + $0x30] sm:$0xf]
        %v311 = vld [vmem:[%s280 + $0x34] sm:$0xf]
        %v312 = vld [vmem:[%s280 + $0x38] sm:$0xf]
        %v313 = vld [vmem:[%s280 + $0x3c] sm:$0xf]
        %v314 = vld [vmem:[%s285] sm:$0xf]
        %v315 = vld [vmem:[%s285 + $0x4] sm:$0xf]
        %v318 = vunpack.c.l.b16 %v314
        %v319 = vunpack.c.l.b16 %v315
        %v320 = vpack.c.b16 %v319, %v318
        %v338 = vunpack.c.l.b16 %v298
        %v339 = vunpack.c.l.b16 %v299
        %v340 = vunpack.c.l.b16 %v300
        %v341 = vunpack.c.l.b16 %v301
        %v342 = vunpack.c.l.b16 %v302
        %v343 = vunpack.c.l.b16 %v303
        %v344 = vunpack.c.l.b16 %v304
        %v345 = vunpack.c.l.b16 %v305
        %v346 = vunpack.c.l.b16 %v306
        %v347 = vunpack.c.l.b16 %v307
        %v348 = vunpack.c.l.b16 %v308
        %v349 = vunpack.c.l.b16 %v309
        %v350 = vunpack.c.l.b16 %v310
        %v351 = vunpack.c.l.b16 %v311
        %v352 = vunpack.c.l.b16 %v312
        %v353 = vunpack.c.l.b16 %v313
        %v354 = vpack.c.b16 %v339, %v338
        %v355 = vpack.c.b16 %v341, %v340
        %v356 = vpack.c.b16 %v343, %v342
        %v357 = vpack.c.b16 %v345, %v344
        %v358 = vpack.c.b16 %v347, %v346
        %v359 = vpack.c.b16 %v349, %v348
        %v360 = vpack.c.b16 %v351, %v350
        %v361 = vpack.c.b16 %v353, %v352
        %370 = vmatprep.subr.bf16.mxu0 0
        %371 = vmatpush1.bf16.msra.mxu0 %v354
        %372 = vmatprep.subr.bf16.mxu0 0
        %373 = vmatpush1.bf16.msra.mxu0 %v355
        %374 = vmatprep.subr.bf16.mxu0 0
        %375 = vmatpush1.bf16.msra.mxu0 %v356
        %376 = vmatprep.subr.bf16.mxu0 0
        %377 = vmatpush1.bf16.msra.mxu0 %v357
        %378 = vmatprep.subr.bf16.mxu0 0
        %379 = vmatpush1.bf16.msra.mxu0 %v358
        %380 = vmatprep.subr.bf16.mxu0 0
        %381 = vmatpush1.bf16.msra.mxu0 %v359
        %382 = vmatprep.subr.bf16.mxu0 0
        %383 = vmatpush1.bf16.msra.mxu0 %v360
        %384 = vmatprep.subr.bf16.mxu0 0
        %385 = vmatpush1.bf16.msra.mxu0 %v361
        %386 = vmatprep.subr.bf16.mxu0 0
        %387 = vmatpush1.bf16.msra.mxu0 0
        %388 = vmatprep.subr.bf16.mxu0 0
        %389 = vmatpush1.bf16.msra.mxu0 0
        %390 = vmatprep.subr.bf16.mxu0 0
        %391 = vmatpush1.bf16.msra.mxu0 0
        %392 = vmatprep.subr.bf16.mxu0 0
        %393 = vmatpush1.bf16.msra.mxu0 0
        %394 = vmatprep.subr.bf16.mxu0 0
        %395 = vmatpush1.bf16.msra.mxu0 0
        %396 = vmatprep.subr.bf16.mxu0 0
        %397 = vmatpush1.bf16.msra.mxu0 0
        %398 = vmatprep.subr.bf16.mxu0 0
        %399 = vmatpush1.bf16.msra.mxu0 0
        %400 = vmatprep.subr.bf16.mxu0 0
        %401 = vmatpush1.bf16.msra.mxu0 0
        %402 = vmatprep.mubr.bf16.mxu0 0
        %403 = vmatmul.mubr.bf16.gmra.mrb[0].mxu0 %v320
        %v404 = vpop.f32.mrb[0].mxu0
        %v405 = vadd.f32 0.0, %v404
        %v406 = vpop.f32.mrb[0].mxu0
        %v407 = vpop.f32.mrb[0].mxu0
        %v408 = vadd.f32 0.0, %v407
        %v409 = vpop.f32.mrb[0].mxu0
        %410 = vdwg.mxu0
        %v411 = vpack.c.bf16 %v408, %v405
        %v412 = vld [vmem:[%s4] sm:$0xf]
        %v413 = vld [vmem:[%s4 + $0x4] sm:$0xf]
        %v414 = vld [vmem:[%s4 + $0x8] sm:$0xf]
        %v415 = vld [vmem:[%s4 + $0xc] sm:$0xf]
        %v416 = vld [vmem:[%s4 + $0x10] sm:$0xf]
        %v417 = vld [vmem:[%s4 + $0x14] sm:$0xf]
        %v418 = vld [vmem:[%s4 + $0x18] sm:$0xf]
        %v419 = vld [vmem:[%s4 + $0x1c] sm:$0xf]
        %v420 = vld [vmem:[%s4 + $0x20] sm:$0xf]
        %v421 = vld [vmem:[%s4 + $0x24] sm:$0xf]
        %v422 = vld [vmem:[%s4 + $0x28] sm:$0xf]
        %v423 = vld [vmem:[%s4 + $0x2c] sm:$0xf]
        %v424 = vld [vmem:[%s4 + $0x30] sm:$0xf]
        %v425 = vld [vmem:[%s4 + $0x34] sm:$0xf]
        %v426 = vld [vmem:[%s4 + $0x38] sm:$0xf]
        %v427 = vld [vmem:[%s4 + $0x3c] sm:$0xf]
        %v444 = vunpack.c.l.b16 %v412
        %v445 = vunpack.c.l.b16 %v413
        %v446 = vunpack.c.l.b16 %v414
        %v447 = vunpack.c.l.b16 %v415
        %v448 = vunpack.c.l.b16 %v416
        %v449 = vunpack.c.l.b16 %v417
        %v450 = vunpack.c.l.b16 %v418
        %v451 = vunpack.c.l.b16 %v419
        %v452 = vunpack.c.l.b16 %v420
        %v453 = vunpack.c.l.b16 %v421
        %v454 = vunpack.c.l.b16 %v422
        %v455 = vunpack.c.l.b16 %v423
        %v456 = vunpack.c.l.b16 %v424
        %v457 = vunpack.c.l.b16 %v425
        %v458 = vunpack.c.l.b16 %v426
        %v459 = vunpack.c.l.b16 %v427
        %v460 = vpack.c.b16 %v445, %v444
        %v461 = vpack.c.b16 %v447, %v446
        %v462 = vpack.c.b16 %v449, %v448
        %v463 = vpack.c.b16 %v451, %v450
        %v464 = vpack.c.b16 %v453, %v452
        %v465 = vpack.c.b16 %v455, %v454
        %v466 = vpack.c.b16 %v457, %v456
        %v467 = vpack.c.b16 %v459, %v458
        %476 = vmatprep.subr.bf16.mxu0 0
        %477 = vmatpush1.bf16.msra.mxu0 %v460
        %478 = vmatprep.subr.bf16.mxu0 0
        %479 = vmatpush1.bf16.msra.mxu0 %v461
        %480 = vmatprep.subr.bf16.mxu0 0
        %481 = vmatpush1.bf16.msra.mxu0 %v462
        %482 = vmatprep.subr.bf16.mxu0 0
        %483 = vmatpush1.bf16.msra.mxu0 %v463
        %484 = vmatprep.subr.bf16.mxu0 0
        %485 = vmatpush1.bf16.msra.mxu0 %v464
        %486 = vmatprep.subr.bf16.mxu0 0
        %487 = vmatpush1.bf16.msra.mxu0 %v465
        %488 = vmatprep.subr.bf16.mxu0 0
        %489 = vmatpush1.bf16.msra.mxu0 %v466
        %490 = vmatprep.subr.bf16.mxu0 0
        %491 = vmatpush1.bf16.msra.mxu0 %v467
        %492 = vmatprep.subr.bf16.mxu0 0
        %493 = vmatpush1.bf16.msra.mxu0 0
        %494 = vmatprep.subr.bf16.mxu0 0
        %495 = vmatpush1.bf16.msra.mxu0 0
        %496 = vmatprep.subr.bf16.mxu0 0
        %497 = vmatpush1.bf16.msra.mxu0 0
        %498 = vmatprep.subr.bf16.mxu0 0
        %499 = vmatpush1.bf16.msra.mxu0 0
        %500 = vmatprep.subr.bf16.mxu0 0
        %501 = vmatpush1.bf16.msra.mxu0 0
        %502 = vmatprep.subr.bf16.mxu0 0
        %503 = vmatpush1.bf16.msra.mxu0 0
        %504 = vmatprep.subr.bf16.mxu0 0
        %505 = vmatpush1.bf16.msra.mxu0 0
        %506 = vmatprep.subr.bf16.mxu0 0
        %507 = vmatpush1.bf16.msra.mxu0 0
        %508 = vmatprep.mubr.bf16.mxu0 0
        %509 = vmatmul.mubr.bf16.gmra.mrb[0].mxu0 %v411
        %v510 = vpop.f32.mrb[0].mxu0
        %v511 = vadd.f32 0.0, %v510
        %v512 = vpop.f32.mrb[0].mxu0
        %v513 = vpop.f32.mrb[0].mxu0
        %v514 = vadd.f32 0.0, %v513
        %v515 = vpop.f32.mrb[0].mxu0
        %516 = vdwg.mxu0
        %s517 = sld [smem:[#allocation2 + %s22]]
        %v518 = vstv %s517
        %v519 = vsub.f32 %v511, %v518
        %v520 = vsub.f32 %v514, %v518
        %s521 = sld [smem:[#allocation4 + %s22]]
        %v522 = vstv %s521
        %v523 = vmul.f32 %v519, %v522
        %v524 = vmul.f32 %v520, %v522
        %vm525 = vcmask 261120
        %526 = vst.msk [vmem:[%s295] sm:$0xff] %vm525, %v523
        %527 = vst.msk [vmem:[%s295 + $0x8] sm:$0xff] %vm525, %v524
        %s528 = smul.u32 2, %s23
        %p529 = scmp.lt.s32.totalorder %s22, 2
        %s530 = scalar_select %p529, %s22, 2
        %p531 = scmp.lt.s32.totalorder %s528, 3
        %s532 = scalar_select %p531, %s528, 3
        %s533 = smul.addr %s530, 4
        %s534 = sadd.s32 %s532, %s533
        %s535 = smul.addr %s534, 8
        %s536 = scalar_lea.vmem %s5, %s535
        // Predicated region
        $region49: #{xdecoder_forward.4} parent=39 // pred_check
          %p537 = pneg %p165
        $region50: #{xdecoder_forward.4} parent=39 // pred_check_branch
          %539 = sbr.rel (%p537) target = $region52
        $region51: #{xdecoder_forward.4} parent=39 // pred_region
          %s540 = smul.u32 2, %s23
        $region52: #{xdecoder_forward.4} parent=39 // pred_fallthru
          _
      $region40: #{xdecoder_forward.4} parent=5 // pred_fallthru
        _
      %p541 = scmp.le.s32.totalorder 2, %s13
      // Predicated region
      $region53: #{xdecoder_forward.4} parent=5 // pred_check
        %p542 = pneg %p541
      $region54: #{xdecoder_forward.4} parent=5 // pred_check_branch
        %544 = sbr.rel (%p542) target = $region56
      $region55: #{xdecoder_forward.4} parent=5 // pred_region
        %s545 = ssub.s32 %s13, 2
        // Predicated region
        $region57: #{xdecoder_forward.4} parent=55 // pred_check
          %p546 = pneg %p171
        $region58: #{xdecoder_forward.4} parent=55 // pred_check_branch
          %548 = sbr.rel (%p546) target = $region60
        $region59: #{xdecoder_forward.4} parent=55 // pred_region
          %s549 = smul.u32 2, %s25
          %p550 = scmp.lt.s32.totalorder %s24, 2
          %s551 = scalar_select %p550, %s24, 2
          %p552 = scmp.lt.s32.totalorder %s549, 3
          %s553 = scalar_select %p552, %s549, 3
          %s554 = smul.addr %s551, 4
          %s555 = sadd.s32 %s553, %s554
          %s556 = smul.addr %s555, 8
          %s557 = scalar_lea.vmem %s5, %s556
        $region60: #{xdecoder_forward.4} parent=55 // pred_fallthru
          _
      $region56: #{xdecoder_forward.4} parent=5 // pred_fallthru
        _
    $region6: #{xdecoder_forward.4} parent=1 // loop_footer
      %s17 = sadd.s32 1, %s13
    $region7: #{xdecoder_forward.4} parent=1 // loop_footer_branch
      %12 = sbr.rel target = $region3
    $region8: #{xdecoder_forward.4} parent=1 // loop_exit
      _
    %558 = vsyncpa [#allocation3], 1
    %s559 = scalar_lea.sflag [#allocation3], 1
    %560 = vsyncpa %s559, 1
    %561 = vsyncpa [#allocation5], 1

// kernel: xdecoder_forward.5
$region0: #{xdecoder_forward.5}
  #allocation0 [shape = 'u32[]', space=smem, size = 0x4, offset = 0x4, fixed_abs, tag = 'smem constant byte address 0x4 - core index']
  #allocation1 [shape = 'u32[144,128]{1,0:T(1,128)}', space=vmem, size = 0x12000, scoped, tag = 'internal scratch']
  #allocation2 [shape = 'f32[8,32]{1,0:T(8,128)}', space=vmem, size = 0x1000, scoped, tag = 'scratch operand']
  #allocation3 [shape = 's32[8]{0}', space=sflag, size = 0x20, scoped, tag = 'scratch operand']
  #allocation4 [shape = 's32[1]{0}', space=sflag, size = 0x4, scoped, tag = 'scoped memory for xdecoder_forward.5']
  #allocation5 [shape = 'u8[512]{0}', space=smem, size = 0x200, scoped, tag = 'prefetched SMEM operand 0']
  #allocation6 [shape = 's32[]', space=sflag, size = 0x4, offset = 0, fixed_abs, tag = 'sflag constant byte address 0x0 - dummy sync flag']
  #allocation7 [shape = 's32[]', space=sflag, size = 0x4, offset = 0, fixed_abs, tag = 'sflag constant byte address 0x0 - dummy sync flag']
  #allocation8 [shape = 's32[]', space=sflag, size = 0x4, offset = 0, fixed_abs, tag = 'sflag constant byte address 0x0 - dummy sync flag']
  #allocation9 [shape = 's32[]', space=sflag, size = 0x4, offset = 0, fixed_abs, tag = 'sflag constant byte address 0x0 - dummy sync flag']
  #allocation10 [shape = 's32[]', space=sflag, size = 0x4, offset = 0, fixed_abs, tag = 'sflag constant byte address 0x0 - dummy sync flag']
  #allocation11 [shape = 's32[]', space=sflag, size = 0x4, offset = 0, fixed_abs, tag = 'sflag constant byte address 0x0 - dummy sync flag']
  #allocation12 [shape = 's32[]', space=sflag, size = 0x4, offset = 0, fixed_abs, tag = 'sflag constant byte address 0x0 - dummy sync flag']
  #allocation13 [shape = 's32[]', space=sflag, size = 0x4, offset = 0, fixed_abs, tag = 'sflag constant byte address 0x0 - dummy sync flag']
  %s0 = inlined_call_operand.vmem [shape: s32[8], index: 0, kind: input, shape index: {}]
  %s1 = inlined_call_operand.vmem [shape: f32[8,1], index: 1, kind: input, shape index: {}]
  %s2 = inlined_call_operand.vmem [shape: f32[64,32], index: 2, kind: input, shape index: {}]
  %s3 = inlined_call_operand.vmem [shape: f32[1,32], index: 3, kind: output, shape index: {}]
  %s4 = sld [smem:[#allocation0]]
  $region254: #{xdecoder_forward.5} parent=0
    _
  %s6 = ssub.s32 1, %s4
  %s7 = scalar_select 0, %s6, %s4
  %s8 = sshll.u32 %s0, 4
  %s9 = int_to_ptr.vmem [resolvable:$true] %s8
  %11 = dma.vmem_to_smem %s9, 16, [#allocation5], [#allocation4]
  %12 = dma.done [#allocation4], 16
  %13 = sfence
  // Predicated region
  $region2: #{xdecoder_forward.5} parent=0 // pred_check
    _
  $region3: #{xdecoder_forward.5} parent=0 // pred_check_branch
    %15 = sbr.rel (0) target = $region5
  $region4: #{xdecoder_forward.5} parent=0 // pred_region
    _
  $region5: #{xdecoder_forward.5} parent=0 // pred_fallthru
    _
  %s16 = sld [smem:[#allocation5]]
  %s17 = scalar_lea.vmem %s2, %s16
  %p19 = scmp.lt.u32.totalorder 1, 8
  %p20 = pneg %p19
  // Predicated region
  $region6: #{xdecoder_forward.5} parent=0 // pred_check
    _
  $region7: #{xdecoder_forward.5} parent=0 // pred_check_branch
    %22 = sbr.rel (%p19) target = $region9
  $region8: #{xdecoder_forward.5} parent=0 // pred_region
    %s37 = sand.u32 1, 7
    %p38 = scmp.eq.s32.totalorder %s37, 0
    %p39 = pneg %p38
    // Predicated region
    $region21: #{xdecoder_forward.5} parent=8 // pred_check
      _
    $region22: #{xdecoder_forward.5} parent=8 // pred_check_branch
      %41 = sbr.rel (%p38) target = $region24
    $region23: #{xdecoder_forward.5} parent=8 // pred_region
      %s42 = sand.u32 1, 7
      %s43 = ssub.s32 1, %s42
      %s44 = scalar_lea.vmem %s17, %s43
      %s45 = ssub.s32 1, %s42
      %s46 = scalar_lea.vmem [#allocation2], %s45
      %s47 = sshllo.u32 0, %s42
      loop: start=0, step=1, limit=1
      $region25: #{xdecoder_forward.5} parent=23 // loop_pre_header
        _
      $region26: #{xdecoder_forward.5} parent=23 // loop_header
        %s49 = sphi 0, %s53
        %p50 = scmp.ge.s32.totalorder %s49, 1
        %s54 = sphi %s44, %s44
        %s55 = sphi %s46, %s46
      $region27: #{xdecoder_forward.5} parent=23 // loop_header_branch
        %52 = sbr.rel (%p50) target = $region31
      $region28: #{xdecoder_forward.5} parent=23 // loop_body
        %v56 = vld [vmem:[%s54] sm:%s47]
        %57 = vst [vmem:[%s55] sm:%s47] %v56
      $region29: #{xdecoder_forward.5} parent=23 // loop_footer
        %s53 = sadd.s32 1, %s49
      $region30: #{xdecoder_forward.5} parent=23 // loop_footer_branch
        %48 = sbr.rel target = $region26
      $region31: #{xdecoder_forward.5} parent=23 // loop_exit
        _
    $region24: #{xdecoder_forward.5} parent=8 // pred_fallthru
      _
  $region9: #{xdecoder_forward.5} parent=0 // pred_fallthru
    _
  // Predicated region
  $region10: #{xdecoder_forward.5} parent=0 // pred_check
    %p23 = pneg %p19
  $region11: #{xdecoder_forward.5} parent=0 // pred_check_branch
    %25 = sbr.rel (%p23) target = $region13
  $region12: #{xdecoder_forward.5} parent=0 // pred_region
    %s26 = sshllo.u32 0, 1
    loop: start=0, step=1, limit=1
    $region14: #{xdecoder_forward.5} parent=12 // loop_pre_header
      _
    $region15: #{xdecoder_forward.5} parent=12 // loop_header
      %s28 = sphi 0, %s32
      %p29 = scmp.ge.s32.totalorder %s28, 1
      %s33 = sphi %s17, %s17
      %s34 = sphi [#allocation2], [#allocation2]
    $region16: #{xdecoder_forward.5} parent=12 // loop_header_branch
      %31 = sbr.rel (%p29) target = $region20
    $region17: #{xdecoder_forward.5} parent=12 // loop_body
      %v35 = vld [vmem:[%s33] sm:%s26]
      %36 = vst [vmem:[%s34] sm:%s26] %v35
    $region18: #{xdecoder_forward.5} parent=12 // loop_footer
      %s32 = sadd.s32 1, %s28
    $region19: #{xdecoder_forward.5} parent=12 // loop_footer_branch
      %27 = sbr.rel target = $region15
    $region20: #{xdecoder_forward.5} parent=12 // loop_exit
      _
  $region13: #{xdecoder_forward.5} parent=0 // pred_fallthru
    _
  // Predicated region
  $region32: #{xdecoder_forward.5} parent=0 // pred_check
    _
  $region33: #{xdecoder_forward.5} parent=0 // pred_check_branch
    %60 = sbr.rel (0) target = $region35
  $region34: #{xdecoder_forward.5} parent=0 // pred_region
    %61 = vsyncadd [#allocation3], 16
  $region35: #{xdecoder_forward.5} parent=0 // pred_fallthru
    _
  %s62 = sld [smem:[#allocation5 + $0x1]]
  %s63 = scalar_lea.vmem %s2, %s62
  %s64 = scalar_lea.vmem [#allocation2], 1
  %s65 = scalar_lea.sflag [#allocation3], 1
  %p67 = scmp.lt.u32.totalorder 1, 8
  %p68 = pneg %p67
  // Predicated region
  $region36: #{xdecoder_forward.5} parent=0 // pred_check
    _
  $region37: #{xdecoder_forward.5} parent=0 // pred_check_branch
    %70 = sbr.rel (%p67) target = $region39
  $region38: #{xdecoder_forward.5} parent=0 // pred_region
    %s85 = sand.u32 1, 7
    %p86 = scmp.eq.s32.totalorder %s85, 0
    %p87 = pneg %p86
    // Predicated region
    $region51: #{xdecoder_forward.5} parent=38 // pred_check
      _
    $region52: #{xdecoder_forward.5} parent=38 // pred_check_branch
      %89 = sbr.rel (%p86) target = $region54
    $region53: #{xdecoder_forward.5} parent=38 // pred_region
      %s90 = sand.u32 1, 7
      %s91 = ssub.s32 1, %s90
      %s92 = scalar_lea.vmem %s63, %s91
      %s93 = ssub.s32 1, %s90
      %s94 = scalar_lea.vmem %s64, %s93 [#allocation2]
      %s95 = sshllo.u32 0, %s90
      loop: start=0, step=1, limit=1
      $region55: #{xdecoder_forward.5} parent=53 // loop_pre_header
        _
      $region56: #{xdecoder_forward.5} parent=53 // loop_header
        %s97 = sphi 0, %s101
        %p98 = scmp.ge.s32.totalorder %s97, 1
        %s102 = sphi %s92, %s92
        %s103 = sphi %s94, %s94
      $region57: #{xdecoder_forward.5} parent=53 // loop_header_branch
        %100 = sbr.rel (%p98) target = $region61
      $region58: #{xdecoder_forward.5} parent=53 // loop_body
        %v104 = vld [vmem:[%s102] sm:%s95]
        %105 = vst [vmem:[%s103] sm:%s95] %v104
      $region59: #{xdecoder_forward.5} parent=53 // loop_footer
        %s101 = sadd.s32 1, %s97
      $region60: #{xdecoder_forward.5} parent=53 // loop_footer_branch
        %96 = sbr.rel target = $region56
      $region61: #{xdecoder_forward.5} parent=53 // loop_exit
        _
    $region54: #{xdecoder_forward.5} parent=38 // pred_fallthru
      _
  $region39: #{xdecoder_forward.5} parent=0 // pred_fallthru
    _
  // Predicated region
  $region40: #{xdecoder_forward.5} parent=0 // pred_check
    %p71 = pneg %p67
  $region41: #{xdecoder_forward.5} parent=0 // pred_check_branch
    %73 = sbr.rel (%p71) target = $region43
  $region42: #{xdecoder_forward.5} parent=0 // pred_region
    %s74 = sshllo.u32 0, 1
    loop: start=0, step=1, limit=1
    $region44: #{xdecoder_forward.5} parent=42 // loop_pre_header
      _
    $region45: #{xdecoder_forward.5} parent=42 // loop_header
      %s76 = sphi 0, %s80
      %p77 = scmp.ge.s32.totalorder %s76, 1
      %s81 = sphi %s63, %s63
      %s82 = sphi %s64, %s64
    $region46: #{xdecoder_forward.5} parent=42 // loop_header_branch
      %79 = sbr.rel (%p77) target = $region50
    $region47: #{xdecoder_forward.5} parent=42 // loop_body
      %v83 = vld [vmem:[%s81] sm:%s74]
      %84 = vst [vmem:[%s82] sm:%s74] %v83
    $region48: #{xdecoder_forward.5} parent=42 // loop_footer
      %s80 = sadd.s32 1, %s76
    $region49: #{xdecoder_forward.5} parent=42 // loop_footer_branch
      %75 = sbr.rel target = $region45
    $region50: #{xdecoder_forward.5} parent=42 // loop_exit
      _
  $region43: #{xdecoder_forward.5} parent=0 // pred_fallthru
    _
  // Predicated region
  $region62: #{xdecoder_forward.5} parent=0 // pred_check
    _
  $region63: #{xdecoder_forward.5} parent=0 // pred_check_branch
    %108 = sbr.rel (0) target = $region65
  $region64: #{xdecoder_forward.5} parent=0 // pred_region
    %109 = vsyncadd %s65, 16
  $region65: #{xdecoder_forward.5} parent=0 // pred_fallthru
    _
  %s110 = sld [smem:[#allocation5 + $0x2]]
  %s111 = scalar_lea.vmem %s2, %s110
  %s112 = scalar_lea.vmem [#allocation2], 2
  %s113 = scalar_lea.sflag [#allocation3], 2
  %p115 = scmp.lt.u32.totalorder 1, 8
  %p116 = pneg %p115
  // Predicated region
  $region66: #{xdecoder_forward.5} parent=0 // pred_check
    _
  $region67: #{xdecoder_forward.5} parent=0 // pred_check_branch
    %118 = sbr.rel (%p115) target = $region69
  $region68: #{xdecoder_forward.5} parent=0 // pred_region
    %s133 = sand.u32 1, 7
    %p134 = scmp.eq.s32.totalorder %s133, 0
    %p135 = pneg %p134
    // Predicated region
    $region81: #{xdecoder_forward.5} parent=68 // pred_check
      _
    $region82: #{xdecoder_forward.5} parent=68 // pred_check_branch
      %137 = sbr.rel (%p134) target = $region84
    $region83: #{xdecoder_forward.5} parent=68 // pred_region
      %s138 = sand.u32 1, 7
      %s139 = ssub.s32 1, %s138
      %s140 = scalar_lea.vmem %s111, %s139
      %s141 = ssub.s32 1, %s138
      %s142 = scalar_lea.vmem %s112, %s141 [#allocation2]
      %s143 = sshllo.u32 0, %s138
      loop: start=0, step=1, limit=1
      $region85: #{xdecoder_forward.5} parent=83 // loop_pre_header
        _
      $region86: #{xdecoder_forward.5} parent=83 // loop_header
        %s145 = sphi 0, %s149
        %p146 = scmp.ge.s32.totalorder %s145, 1
        %s150 = sphi %s140, %s140
        %s151 = sphi %s142, %s142
      $region87: #{xdecoder_forward.5} parent=83 // loop_header_branch
        %148 = sbr.rel (%p146) target = $region91
      $region88: #{xdecoder_forward.5} parent=83 // loop_body
        %v152 = vld [vmem:[%s150] sm:%s143]
        %153 = vst [vmem:[%s151] sm:%s143] %v152
      $region89: #{xdecoder_forward.5} parent=83 // loop_footer
        %s149 = sadd.s32 1, %s145
      $region90: #{xdecoder_forward.5} parent=83 // loop_footer_branch
        %144 = sbr.rel target = $region86
      $region91: #{xdecoder_forward.5} parent=83 // loop_exit
        _
    $region84: #{xdecoder_forward.5} parent=68 // pred_fallthru
      _
  $region69: #{xdecoder_forward.5} parent=0 // pred_fallthru
    _
  // Predicated region
  $region70: #{xdecoder_forward.5} parent=0 // pred_check
    %p119 = pneg %p115
  $region71: #{xdecoder_forward.5} parent=0 // pred_check_branch
    %121 = sbr.rel (%p119) target = $region73
  $region72: #{xdecoder_forward.5} parent=0 // pred_region
    %s122 = sshllo.u32 0, 1
    loop: start=0, step=1, limit=1
    $region74: #{xdecoder_forward.5} parent=72 // loop_pre_header
      _
    $region75: #{xdecoder_forward.5} parent=72 // loop_header
      %s124 = sphi 0, %s128
      %p125 = scmp.ge.s32.totalorder %s124, 1
      %s129 = sphi %s111, %s111
      %s130 = sphi %s112, %s112
    $region76: #{xdecoder_forward.5} parent=72 // loop_header_branch
      %127 = sbr.rel (%p125) target = $region80
    $region77: #{xdecoder_forward.5} parent=72 // loop_body
      %v131 = vld [vmem:[%s129] sm:%s122]
      %132 = vst [vmem:[%s130] sm:%s122] %v131
    $region78: #{xdecoder_forward.5} parent=72 // loop_footer
      %s128 = sadd.s32 1, %s124
    $region79: #{xdecoder_forward.5} parent=72 // loop_footer_branch
      %123 = sbr.rel target = $region75
    $region80: #{xdecoder_forward.5} parent=72 // loop_exit
      _
  $region73: #{xdecoder_forward.5} parent=0 // pred_fallthru
    _
  // Predicated region
  $region92: #{xdecoder_forward.5} parent=0 // pred_check
    _
  $region93: #{xdecoder_forward.5} parent=0 // pred_check_branch
    %156 = sbr.rel (0) target = $region95
  $region94: #{xdecoder_forward.5} parent=0 // pred_region
    %157 = vsyncadd %s113, 16
  $region95: #{xdecoder_forward.5} parent=0 // pred_fallthru
    _
  %s158 = sld [smem:[#allocation5 + $0x3]]
  %s159 = scalar_lea.vmem %s2, %s158
  %s160 = scalar_lea.vmem [#allocation2], 3
  %s161 = scalar_lea.sflag [#allocation3], 3
  %p163 = scmp.lt.u32.totalorder 1, 8
  %p164 = pneg %p163
  // Predicated region
  $region96: #{xdecoder_forward.5} parent=0 // pred_check
    _
  $region97: #{xdecoder_forward.5} parent=0 // pred_check_branch
    %166 = sbr.rel (%p163) target = $region99
  $region98: #{xdecoder_forward.5} parent=0 // pred_region
    %s181 = sand.u32 1, 7
    %p182 = scmp.eq.s32.totalorder %s181, 0
    %p183 = pneg %p182
    // Predicated region
    $region111: #{xdecoder_forward.5} parent=98 // pred_check
      _
    $region112: #{xdecoder_forward.5} parent=98 // pred_check_branch
      %185 = sbr.rel (%p182) target = $region114
    $region113: #{xdecoder_forward.5} parent=98 // pred_region
      %s186 = sand.u32 1, 7
      %s187 = ssub.s32 1, %s186
      %s188 = scalar_lea.vmem %s159, %s187
      %s189 = ssub.s32 1, %s186
      %s190 = scalar_lea.vmem %s160, %s189 [#allocation2]
      %s191 = sshllo.u32 0, %s186
      loop: start=0, step=1, limit=1
      $region115: #{xdecoder_forward.5} parent=113 // loop_pre_header
        _
      $region116: #{xdecoder_forward.5} parent=113 // loop_header
        %s193 = sphi 0, %s197
        %p194 = scmp.ge.s32.totalorder %s193, 1
        %s198 = sphi %s188, %s188
        %s199 = sphi %s190, %s190
      $region117: #{xdecoder_forward.5} parent=113 // loop_header_branch
        %196 = sbr.rel (%p194) target = $region121
      $region118: #{xdecoder_forward.5} parent=113 // loop_body
        %v200 = vld [vmem:[%s198] sm:%s191]
        %201 = vst [vmem:[%s199] sm:%s191] %v200
      $region119: #{xdecoder_forward.5} parent=113 // loop_footer
        %s197 = sadd.s32 1, %s193
      $region120: #{xdecoder_forward.5} parent=113 // loop_footer_branch
        %192 = sbr.rel target = $region116
      $region121: #{xdecoder_forward.5} parent=113 // loop_exit
        _
    $region114: #{xdecoder_forward.5} parent=98 // pred_fallthru
      _
  $region99: #{xdecoder_forward.5} parent=0 // pred_fallthru
    _
  // Predicated region
  $region100: #{xdecoder_forward.5} parent=0 // pred_check
    %p167 = pneg %p163
  $region101: #{xdecoder_forward.5} parent=0 // pred_check_branch
    %169 = sbr.rel (%p167) target = $region103
  $region102: #{xdecoder_forward.5} parent=0 // pred_region
    %s170 = sshllo.u32 0, 1
    loop: start=0, step=1, limit=1
    $region104: #{xdecoder_forward.5} parent=102 // loop_pre_header
      _
    $region105: #{xdecoder_forward.5} parent=102 // loop_header
      %s172 = sphi 0, %s176
      %p173 = scmp.ge.s32.totalorder %s172, 1
      %s177 = sphi %s159, %s159
      %s178 = sphi %s160, %s160
    $region106: #{xdecoder_forward.5} parent=102 // loop_header_branch
      %175 = sbr.rel (%p173) target = $region110
    $region107: #{xdecoder_forward.5} parent=102 // loop_body
      %v179 = vld [vmem:[%s177] sm:%s170]
      %180 = vst [vmem:[%s178] sm:%s170] %v179
    $region108: #{xdecoder_forward.5} parent=102 // loop_footer
      %s176 = sadd.s32 1, %s172
    $region109: #{xdecoder_forward.5} parent=102 // loop_footer_branch
      %171 = sbr.rel target = $region105
    $region110: #{xdecoder_forward.5} parent=102 // loop_exit
      _
  $region103: #{xdecoder_forward.5} parent=0 // pred_fallthru
    _
  // Predicated region
  $region122: #{xdecoder_forward.5} parent=0 // pred_check
    _
  $region123: #{xdecoder_forward.5} parent=0 // pred_check_branch
    %204 = sbr.rel (0) target = $region125
  $region124: #{xdecoder_forward.5} parent=0 // pred_region
    %205 = vsyncadd %s161, 16
  $region125: #{xdecoder_forward.5} parent=0 // pred_fallthru
    _
  %s206 = sld [smem:[#allocation5 + $0x4]]
  %s207 = scalar_lea.vmem %s2, %s206
  %s208 = scalar_lea.vmem [#allocation2], 4
  %s209 = scalar_lea.sflag [#allocation3], 4
  %p211 = scmp.lt.u32.totalorder 1, 8
  %p212 = pneg %p211
  // Predicated region
  $region126: #{xdecoder_forward.5} parent=0 // pred_check
    _
  $region127: #{xdecoder_forward.5} parent=0 // pred_check_branch
    %214 = sbr.rel (%p211) target = $region129
  $region128: #{xdecoder_forward.5} parent=0 // pred_region
    %s229 = sand.u32 1, 7
    %p230 = scmp.eq.s32.totalorder %s229, 0
    %p231 = pneg %p230
    // Predicated region
    $region141: #{xdecoder_forward.5} parent=128 // pred_check
      _
    $region142: #{xdecoder_forward.5} parent=128 // pred_check_branch
      %233 = sbr.rel (%p230) target = $region144
    $region143: #{xdecoder_forward.5} parent=128 // pred_region
      %s234 = sand.u32 1, 7
      %s235 = ssub.s32 1, %s234
      %s236 = scalar_lea.vmem %s207, %s235
      %s237 = ssub.s32 1, %s234
      %s238 = scalar_lea.vmem %s208, %s237 [#allocation2]
      %s239 = sshllo.u32 0, %s234
      loop: start=0, step=1, limit=1
      $region145: #{xdecoder_forward.5} parent=143 // loop_pre_header
        _
      $region146: #{xdecoder_forward.5} parent=143 // loop_header
        %s241 = sphi 0, %s245
        %p242 = scmp.ge.s32.totalorder %s241, 1
        %s246 = sphi %s236, %s236
        %s247 = sphi %s238, %s238
      $region147: #{xdecoder_forward.5} parent=143 // loop_header_branch
        %244 = sbr.rel (%p242) target = $region151
      $region148: #{xdecoder_forward.5} parent=143 // loop_body
        %v248 = vld [vmem:[%s246] sm:%s239]
        %249 = vst [vmem:[%s247] sm:%s239] %v248
      $region149: #{xdecoder_forward.5} parent=143 // loop_footer
        %s245 = sadd.s32 1, %s241
      $region150: #{xdecoder_forward.5} parent=143 // loop_footer_branch
        %240 = sbr.rel target = $region146
      $region151: #{xdecoder_forward.5} parent=143 // loop_exit
        _
    $region144: #{xdecoder_forward.5} parent=128 // pred_fallthru
      _
  $region129: #{xdecoder_forward.5} parent=0 // pred_fallthru
    _
  // Predicated region
  $region130: #{xdecoder_forward.5} parent=0 // pred_check
    %p215 = pneg %p211
  $region131: #{xdecoder_forward.5} parent=0 // pred_check_branch
    %217 = sbr.rel (%p215) target = $region133
  $region132: #{xdecoder_forward.5} parent=0 // pred_region
    %s218 = sshllo.u32 0, 1
    loop: start=0, step=1, limit=1
    $region134: #{xdecoder_forward.5} parent=132 // loop_pre_header
      _
    $region135: #{xdecoder_forward.5} parent=132 // loop_header
      %s220 = sphi 0, %s224
      %p221 = scmp.ge.s32.totalorder %s220, 1
      %s225 = sphi %s207, %s207
      %s226 = sphi %s208, %s208
    $region136: #{xdecoder_forward.5} parent=132 // loop_header_branch
      %223 = sbr.rel (%p221) target = $region140
    $region137: #{xdecoder_forward.5} parent=132 // loop_body
      %v227 = vld [vmem:[%s225] sm:%s218]
      %228 = vst [vmem:[%s226] sm:%s218] %v227
    $region138: #{xdecoder_forward.5} parent=132 // loop_footer
      %s224 = sadd.s32 1, %s220
    $region139: #{xdecoder_forward.5} parent=132 // loop_footer_branch
      %219 = sbr.rel target = $region135
    $region140: #{xdecoder_forward.5} parent=132 // loop_exit
      _
  $region133: #{xdecoder_forward.5} parent=0 // pred_fallthru
    _
  // Predicated region
  $region152: #{xdecoder_forward.5} parent=0 // pred_check
    _
  $region153: #{xdecoder_forward.5} parent=0 // pred_check_branch
    %252 = sbr.rel (0) target = $region155
  $region154: #{xdecoder_forward.5} parent=0 // pred_region
    %253 = vsyncadd %s209, 16
  $region155: #{xdecoder_forward.5} parent=0 // pred_fallthru
    _
  %s254 = sld [smem:[#allocation5 + $0x5]]
  %s255 = scalar_lea.vmem %s2, %s254
  %s256 = scalar_lea.vmem [#allocation2], 5
  %s257 = scalar_lea.sflag [#allocation3], 5
  %p259 = scmp.lt.u32.totalorder 1, 8
  %p260 = pneg %p259
  // Predicated region
  $region156: #{xdecoder_forward.5} parent=0 // pred_check
    _
  $region157: #{xdecoder_forward.5} parent=0 // pred_check_branch
    %262 = sbr.rel (%p259) target = $region159
  $region158: #{xdecoder_forward.5} parent=0 // pred_region
    %s277 = sand.u32 1, 7
    %p278 = scmp.eq.s32.totalorder %s277, 0
    %p279 = pneg %p278
    // Predicated region
    $region171: #{xdecoder_forward.5} parent=158 // pred_check
      _
    $region172: #{xdecoder_forward.5} parent=158 // pred_check_branch
      %281 = sbr.rel (%p278) target = $region174
    $region173: #{xdecoder_forward.5} parent=158 // pred_region
      %s282 = sand.u32 1, 7
      %s283 = ssub.s32 1, %s282
      %s284 = scalar_lea.vmem %s255, %s283
      %s285 = ssub.s32 1, %s282
      %s286 = scalar_lea.vmem %s256, %s285 [#allocation2]
      %s287 = sshllo.u32 0, %s282
      loop: start=0, step=1, limit=1
      $region175: #{xdecoder_forward.5} parent=173 // loop_pre_header
        _
      $region176: #{xdecoder_forward.5} parent=173 // loop_header
        %s289 = sphi 0, %s293
        %p290 = scmp.ge.s32.totalorder %s289, 1
        %s294 = sphi %s284, %s284
        %s295 = sphi %s286, %s286
      $region177: #{xdecoder_forward.5} parent=173 // loop_header_branch
        %292 = sbr.rel (%p290) target = $region181
      $region178: #{xdecoder_forward.5} parent=173 // loop_body
        %v296 = vld [vmem:[%s294] sm:%s287]
        %297 = vst [vmem:[%s295] sm:%s287] %v296
      $region179: #{xdecoder_forward.5} parent=173 // loop_footer
        %s293 = sadd.s32 1, %s289
      $region180: #{xdecoder_forward.5} parent=173 // loop_footer_branch
        %288 = sbr.rel target = $region176
      $region181: #{xdecoder_forward.5} parent=173 // loop_exit
        _
    $region174: #{xdecoder_forward.5} parent=158 // pred_fallthru
      _
  $region159: #{xdecoder_forward.5} parent=0 // pred_fallthru
    _
  // Predicated region
  $region160: #{xdecoder_forward.5} parent=0 // pred_check
    %p263 = pneg %p259
  $region161: #{xdecoder_forward.5} parent=0 // pred_check_branch
    %265 = sbr.rel (%p263) target = $region163
  $region162: #{xdecoder_forward.5} parent=0 // pred_region
    %s266 = sshllo.u32 0, 1
    loop: start=0, step=1, limit=1
    $region164: #{xdecoder_forward.5} parent=162 // loop_pre_header
      _
    $region165: #{xdecoder_forward.5} parent=162 // loop_header
      %s268 = sphi 0, %s272
      %p269 = scmp.ge.s32.totalorder %s268, 1
      %s273 = sphi %s255, %s255
      %s274 = sphi %s256, %s256
    $region166: #{xdecoder_forward.5} parent=162 // loop_header_branch
      %271 = sbr.rel (%p269) target = $region170
    $region167: #{xdecoder_forward.5} parent=162 // loop_body
      %v275 = vld [vmem:[%s273] sm:%s266]
      %276 = vst [vmem:[%s274] sm:%s266] %v275
    $region168: #{xdecoder_forward.5} parent=162 // loop_footer
      %s272 = sadd.s32 1, %s268
    $region169: #{xdecoder_forward.5} parent=162 // loop_footer_branch
      %267 = sbr.rel target = $region165
    $region170: #{xdecoder_forward.5} parent=162 // loop_exit
      _
  $region163: #{xdecoder_forward.5} parent=0 // pred_fallthru
    _
  // Predicated region
  $region182: #{xdecoder_forward.5} parent=0 // pred_check
    _
  $region183: #{xdecoder_forward.5} parent=0 // pred_check_branch
    %300 = sbr.rel (0) target = $region185
  $region184: #{xdecoder_forward.5} parent=0 // pred_region
    %301 = vsyncadd %s257, 16
  $region185: #{xdecoder_forward.5} parent=0 // pred_fallthru
    _
  %s302 = sld [smem:[#allocation5 + $0x6]]
  %s303 = scalar_lea.vmem %s2, %s302
  %s304 = scalar_lea.vmem [#allocation2], 6
  %s305 = scalar_lea.sflag [#allocation3], 6
  %p307 = scmp.lt.u32.totalorder 1, 8
  %p308 = pneg %p307
  // Predicated region
  $region186: #{xdecoder_forward.5} parent=0 // pred_check
    _
  $region187: #{xdecoder_forward.5} parent=0 // pred_check_branch
    %310 = sbr.rel (%p307) target = $region189
  $region188: #{xdecoder_forward.5} parent=0 // pred_region
    %s325 = sand.u32 1, 7
    %p326 = scmp.eq.s32.totalorder %s325, 0
    %p327 = pneg %p326
    // Predicated region
    $region201: #{xdecoder_forward.5} parent=188 // pred_check
      _
    $region202: #{xdecoder_forward.5} parent=188 // pred_check_branch
      %329 = sbr.rel (%p326) target = $region204
    $region203: #{xdecoder_forward.5} parent=188 // pred_region
      %s330 = sand.u32 1, 7
      %s331 = ssub.s32 1, %s330
      %s332 = scalar_lea.vmem %s303, %s331
      %s333 = ssub.s32 1, %s330
      %s334 = scalar_lea.vmem %s304, %s333 [#allocation2]
      %s335 = sshllo.u32 0, %s330
      loop: start=0, step=1, limit=1
      $region205: #{xdecoder_forward.5} parent=203 // loop_pre_header
        _
      $region206: #{xdecoder_forward.5} parent=203 // loop_header
        %s337 = sphi 0, %s341
        %p338 = scmp.ge.s32.totalorder %s337, 1
        %s342 = sphi %s332, %s332
        %s343 = sphi %s334, %s334
      $region207: #{xdecoder_forward.5} parent=203 // loop_header_branch
        %340 = sbr.rel (%p338) target = $region211
      $region208: #{xdecoder_forward.5} parent=203 // loop_body
        %v344 = vld [vmem:[%s342] sm:%s335]
        %345 = vst [vmem:[%s343] sm:%s335] %v344
      $region209: #{xdecoder_forward.5} parent=203 // loop_footer
        %s341 = sadd.s32 1, %s337
      $region210: #{xdecoder_forward.5} parent=203 // loop_footer_branch
        %336 = sbr.rel target = $region206
      $region211: #{xdecoder_forward.5} parent=203 // loop_exit
        _
    $region204: #{xdecoder_forward.5} parent=188 // pred_fallthru
      _
  $region189: #{xdecoder_forward.5} parent=0 // pred_fallthru
    _
  // Predicated region
  $region190: #{xdecoder_forward.5} parent=0 // pred_check
    %p311 = pneg %p307
  $region191: #{xdecoder_forward.5} parent=0 // pred_check_branch
    %313 = sbr.rel (%p311) target = $region193
  $region192: #{xdecoder_forward.5} parent=0 // pred_region
    %s314 = sshllo.u32 0, 1
    loop: start=0, step=1, limit=1
    $region194: #{xdecoder_forward.5} parent=192 // loop_pre_header
      _
    $region195: #{xdecoder_forward.5} parent=192 // loop_header
      %s316 = sphi 0, %s320
      %p317 = scmp.ge.s32.totalorder %s316, 1
      %s321 = sphi %s303, %s303
      %s322 = sphi %s304, %s304
    $region196: #{xdecoder_forward.5} parent=192 // loop_header_branch
      %319 = sbr.rel (%p317) target = $region200
    $region197: #{xdecoder_forward.5} parent=192 // loop_body
      %v323 = vld [vmem:[%s321] sm:%s314]
      %324 = vst [vmem:[%s322] sm:%s314] %v323
    $region198: #{xdecoder_forward.5} parent=192 // loop_footer
      %s320 = sadd.s32 1, %s316
    $region199: #{xdecoder_forward.5} parent=192 // loop_footer_branch
      %315 = sbr.rel target = $region195
    $region200: #{xdecoder_forward.5} parent=192 // loop_exit
      _
  $region193: #{xdecoder_forward.5} parent=0 // pred_fallthru
    _
  // Predicated region
  $region212: #{xdecoder_forward.5} parent=0 // pred_check
    _
  $region213: #{xdecoder_forward.5} parent=0 // pred_check_branch
    %348 = sbr.rel (0) target = $region215
  $region214: #{xdecoder_forward.5} parent=0 // pred_region
    %349 = vsyncadd %s305, 16
  $region215: #{xdecoder_forward.5} parent=0 // pred_fallthru
    _
  %s350 = sld [smem:[#allocation5 + $0x7]]
  %s351 = scalar_lea.vmem %s2, %s350
  %s352 = scalar_lea.vmem [#allocation2], 7
  %s353 = scalar_lea.sflag [#allocation3], 7
  %p355 = scmp.lt.u32.totalorder 1, 8
  %p356 = pneg %p355
  // Predicated region
  $region216: #{xdecoder_forward.5} parent=0 // pred_check
    _
  $region217: #{xdecoder_forward.5} parent=0 // pred_check_branch
    %358 = sbr.rel (%p355) target = $region219
  $region218: #{xdecoder_forward.5} parent=0 // pred_region
    %s373 = sand.u32 1, 7
    %p374 = scmp.eq.s32.totalorder %s373, 0
    %p375 = pneg %p374
    // Predicated region
    $region231: #{xdecoder_forward.5} parent=218 // pred_check
      _
    $region232: #{xdecoder_forward.5} parent=218 // pred_check_branch
      %377 = sbr.rel (%p374) target = $region234
    $region233: #{xdecoder_forward.5} parent=218 // pred_region
      %s378 = sand.u32 1, 7
      %s379 = ssub.s32 1, %s378
      %s380 = scalar_lea.vmem %s351, %s379
      %s381 = ssub.s32 1, %s378
      %s382 = scalar_lea.vmem %s352, %s381 [#allocation2]
      %s383 = sshllo.u32 0, %s378
      loop: start=0, step=1, limit=1
      $region235: #{xdecoder_forward.5} parent=233 // loop_pre_header
        _
      $region236: #{xdecoder_forward.5} parent=233 // loop_header
        %s385 = sphi 0, %s389
        %p386 = scmp.ge.s32.totalorder %s385, 1
        %s390 = sphi %s380, %s380
        %s391 = sphi %s382, %s382
      $region237: #{xdecoder_forward.5} parent=233 // loop_header_branch
        %388 = sbr.rel (%p386) target = $region241
      $region238: #{xdecoder_forward.5} parent=233 // loop_body
        %v392 = vld [vmem:[%s390] sm:%s383]
        %393 = vst [vmem:[%s391] sm:%s383] %v392
      $region239: #{xdecoder_forward.5} parent=233 // loop_footer
        %s389 = sadd.s32 1, %s385
      $region240: #{xdecoder_forward.5} parent=233 // loop_footer_branch
        %384 = sbr.rel target = $region236
      $region241: #{xdecoder_forward.5} parent=233 // loop_exit
        _
    $region234: #{xdecoder_forward.5} parent=218 // pred_fallthru
      _
  $region219: #{xdecoder_forward.5} parent=0 // pred_fallthru
    _
  // Predicated region
  $region220: #{xdecoder_forward.5} parent=0 // pred_check
    %p359 = pneg %p355
  $region221: #{xdecoder_forward.5} parent=0 // pred_check_branch
    %361 = sbr.rel (%p359) target = $region223
  $region222: #{xdecoder_forward.5} parent=0 // pred_region
    %s362 = sshllo.u32 0, 1
    loop: start=0, step=1, limit=1
    $region224: #{xdecoder_forward.5} parent=222 // loop_pre_header
      _
    $region225: #{xdecoder_forward.5} parent=222 // loop_header
      %s364 = sphi 0, %s368
      %p365 = scmp.ge.s32.totalorder %s364, 1
      %s369 = sphi %s351, %s351
      %s370 = sphi %s352, %s352
    $region226: #{xdecoder_forward.5} parent=222 // loop_header_branch
      %367 = sbr.rel (%p365) target = $region230
    $region227: #{xdecoder_forward.5} parent=222 // loop_body
      %v371 = vld [vmem:[%s369] sm:%s362]
      %372 = vst [vmem:[%s370] sm:%s362] %v371
    $region228: #{xdecoder_forward.5} parent=222 // loop_footer
      %s368 = sadd.s32 1, %s364
    $region229: #{xdecoder_forward.5} parent=222 // loop_footer_branch
      %363 = sbr.rel target = $region225
    $region230: #{xdecoder_forward.5} parent=222 // loop_exit
      _
  $region223: #{xdecoder_forward.5} parent=0 // pred_fallthru
    _
  // Predicated region
  $region242: #{xdecoder_forward.5} parent=0 // pred_check
    _
  $region243: #{xdecoder_forward.5} parent=0 // pred_check_branch
    %396 = sbr.rel (0) target = $region245
  $region244: #{xdecoder_forward.5} parent=0 // pred_region
    %397 = vsyncadd %s353, 16
  $region245: #{xdecoder_forward.5} parent=0 // pred_fallthru
    _
  %s398 = smul.u32 1, 1
  %s399 = sshll.u32 %s398, 4
  %400 = dma.done [#allocation3], %s399
  %s401 = sshll.u32 %s398, 4
  %402 = dma.done %s65, %s401
  %s403 = sshll.u32 %s398, 4
  %404 = dma.done %s113, %s403
  %s405 = sshll.u32 %s398, 4
  %406 = dma.done %s161, %s405
  %s407 = sshll.u32 %s398, 4
  %408 = dma.done %s209, %s407
  %s409 = sshll.u32 %s398, 4
  %410 = dma.done %s257, %s409
  %s411 = sshll.u32 %s398, 4
  %412 = dma.done %s305, %s411
  %s413 = sshll.u32 %s398, 4
  %414 = dma.done %s353, %s413
  %v415 = vld [vmem:[%s1] sm:$0xff]
  %vm416 = vcmask 7168
  %v417 = vsel %vm416, %v415, 0.0
  %418 = vadd.xlane.f32.xlu0 %v417
  %v419 = vpop.xlane.xlu0 %418
  %v420 = vrot.slane %v419, 4
  %v421 = vadd.f32 %v419, %v420
  %v422 = vrot.slane %v421, 2
  %v423 = vadd.f32 %v421, %v422
  %v424 = vrot.slane %v423, 1
  %v425 = vadd.f32 %v423, %v424
  %s426 = vtos %v425
  %s427 = smax.f32 %s426, 1.0
  %v428 = vld [vmem:[#allocation2] sm:$0xff]
  %430 = vset.pattern.permute.xlu0 0
  %431 = vperm.xlu0 %430, %v415
  %v432 = vpop.permute.xlu0 %431
  %v434 = vmul.f32 %v428, %v432
  %vm435 = vcmask 261120
  %v436 = vsel %vm435, %v434, 0.0
  %v437 = vrot.slane %v436, 4
  %v438 = vadd.f32 %v436, %v437
  %v439 = vrot.slane %v438, 2
  %v440 = vadd.f32 %v438, %v439
  %v441 = vrot.slane %v440, 1
  %v442 = vadd.f32 %v440, %v441
  %v443 = vstv %s427
  %v444 = vrcp.pop %v443
  %v445 = vmul.f32 %v442, %v444
  %vm446 = vcmask 253952
  %447 = vst.msk [vmem:[%s3] sm:$0x1] %vm446, %v445
  // Predicated region
  $region246: #{xdecoder_forward.5} parent=0 // pred_check
    _
  $region247: #{xdecoder_forward.5} parent=0 // pred_check_branch
    %449 = sbr.rel (0) target = $region249
  $region248: #{xdecoder_forward.5} parent=0 // pred_region
    _
  $region249: #{xdecoder_forward.5} parent=0 // pred_fallthru
    _
  // Predicated region
  $region250: #{xdecoder_forward.5} parent=0 // pred_check
    _
  $region251: #{xdecoder_forward.5} parent=0 // pred_check_branch
    %451 = sbr.rel (0) target = $region253
  $region252: #{xdecoder_forward.5} parent=0 // pred_region
    _
  $region253: #{xdecoder_forward.5} parent=0 // pred_fallthru
    _
  %452 = vsyncmov [#allocation3]
  %s453 = vpop.sfrf %452
  %p454 = scmp.eq.s32.totalorder %s453, 0
  %p455 = pneg %p454
  %457 = shalt.err (%p455)
  %s458 = scalar_lea.sflag [#allocation3], 1
  %459 = vsyncmov %s458
  %s460 = vpop.sfrf %459
  %p461 = scmp.eq.s32.totalorder %s460, 0
  %p462 = pneg %p461
  %464 = shalt.err (%p462)
  %s465 = scalar_lea.sflag [#allocation3], 2
  %466 = vsyncmov %s465
  %s467 = vpop.sfrf %466
  %p468 = scmp.eq.s32.totalorder %s467, 0
  %p469 = pneg %p468
  %471 = shalt.err (%p469)
  %s472 = scalar_lea.sflag [#allocation3], 3
  %473 = vsyncmov %s472
  %s474 = vpop.sfrf %473
  %p475 = scmp.eq.s32.totalorder %s474, 0
  %p476 = pneg %p475
  %478 = shalt.err (%p476)
  %s479 = scalar_lea.sflag [#allocation3], 4
  %480 = vsyncmov %s479
  %s481 = vpop.sfrf %480
  %p482 = scmp.eq.s32.totalorder %s481, 0
  %p483 = pneg %p482
  %485 = shalt.err (%p483)
  %s486 = scalar_lea.sflag [#allocation3], 5
  %487 = vsyncmov %s486
  %s488 = vpop.sfrf %487
  %p489 = scmp.eq.s32.totalorder %s488, 0
  %p490 = pneg %p489
  %492 = shalt.err (%p490)
  %s493 = scalar_lea.sflag [#allocation3], 6
  %494 = vsyncmov %s493
  %s495 = vpop.sfrf %494
  %p496 = scmp.eq.s32.totalorder %s495, 0
  %p497 = pneg %p496
  %499 = shalt.err (%p497)
  %s500 = scalar_lea.sflag [#allocation3], 7
  %501 = vsyncmov %s500
  %s502 = vpop.sfrf %501
  %p503 = scmp.eq.s32.totalorder %s502, 0
  %p504 = pneg %p503
  %506 = shalt.err (%p504)

// kernel: xdecoder_forward.7
$region0: #{xdecoder_forward.7}
  #allocation0 [shape = 'u32[]', space=smem, size = 0x4, offset = 0x4, fixed_abs, tag = 'smem constant byte address 0x4 - core index']
  #allocation1 [shape = 'u32[144,128]{1,0:T(1,128)}', space=vmem, size = 0x12000, scoped, tag = 'internal scratch']
  %s0 = inlined_call_operand.vmem [shape: f32[128,16], index: 0, kind: input, shape index: {}]
  %s1 = inlined_call_operand.vmem [shape: f32[16,128], index: 1, kind: input, shape index: {}]
  %s2 = inlined_call_operand.hbm [shape: f32[128,128], index: 2, kind: output, shape index: {}]
  %s3 = sld [smem:[#allocation0]]
  $region41: #{xdecoder_forward.7} parent=0
    _
  %s5 = ssub.s32 1, %s3
  %s6 = scalar_select 0, %s5, %s3
  $region1: #{xdecoder_forward.7} parent=0
    #allocation2 [shape = 'u8[65536]{0}', space=vmem, size = 0x10000, scoped, tag = 'output window, operand 0']
    #allocation3 [shape = 's32[2]{0}', space=sflag, size = 0x8, scoped, tag = 'scoped memory for xdecoder_forward.7']
    %7 = vsyncpa [#allocation3], 0
    %s8 = scalar_lea.sflag [#allocation3], 1
    %9 = vsyncpa %s8, 0
    loop: start=0, step=1, limit=4
    $region2: #{xdecoder_forward.7} parent=1 // loop_pre_header
      _
    $region3: #{xdecoder_forward.7} parent=1 // loop_header
      %s11 = sphi 0, %s15
      %p12 = scmp.ge.s32.totalorder %s11, 4
      %s21 = sphi 0, %s23
      %s24 = sphi 0, %s21
      %s25 = sphi 0, %s24
      %s41 = sphi 0, %s25
      %s45 = sphi 0, %s45
      %s47 = sphi 0, %s45
      %s48 = sphi 0, %s47
      %s62 = sphi 0, %s48
      %s68 = sphi 0, %s70
      %s71 = sphi 0, %s68
      %s72 = sphi 0, %s71
      %s88 = sphi 0, %s72
    $region4: #{xdecoder_forward.7} parent=1 // loop_header_branch
      %14 = sbr.rel (%p12) target = $region8
    $region5: #{xdecoder_forward.7} parent=1 // loop_body
      %s16 = ssub.s32 %s11, 1
      %s17 = ssub.s32 %s11, 2
      %s18 = sadd.s32 %s11, 1
      %s19 = ssub.s32 %s11, %s18
      %p20 = scmp.eq.s32.totalorder %s19, 0
      %s22 = sadd.s32 %s21, 1
      %s23 = scalar_select %p20, %s21, %s22
      %p26 = pneg %p20
      %p27 = scmp.eq.s32.totalorder %s11, 1
      %p28 = por %p26, %p27
      %p29 = scmp.ne.s32.totalorder %s21, %s24
      %p30 = scmp.eq.s32.totalorder %s11, 0
      %p31 = por %p29, %p30
      %p32 = scmp.ne.s32.totalorder %s21, %s24
      %p33 = scmp.eq.s32.totalorder %s16, 1
      %p34 = por %p32, %p33
      %p35 = scmp.ne.s32.totalorder %s24, %s25
      %p36 = scmp.eq.s32.totalorder %s16, 0
      %p37 = por %p35, %p36
      %p38 = scmp.ne.s32.totalorder %s24, %s25
      %p39 = scmp.eq.s32.totalorder %s17, 1
      %p40 = por %p38, %p39
      %p42 = scmp.ne.s32.totalorder %s25, %s41
      %p43 = scmp.eq.s32.totalorder %s17, 0
      %p44 = por %p42, %p43
      %s46 = sadd.s32 %s45, 1
      %p49 = scmp.eq.s32.totalorder %s11, 1
      %p50 = scmp.ne.s32.totalorder %s45, %s47
      %p51 = scmp.eq.s32.totalorder %s11, 0
      %p52 = por %p50, %p51
      %p53 = scmp.ne.s32.totalorder %s45, %s47
      %p54 = scmp.eq.s32.totalorder %s16, 1
      %p55 = por %p53, %p54
      %p56 = scmp.ne.s32.totalorder %s47, %s48
      %p57 = scmp.eq.s32.totalorder %s16, 0
      %p58 = por %p56, %p57
      %p59 = scmp.ne.s32.totalorder %s47, %s48
      %p60 = scmp.eq.s32.totalorder %s17, 1
      %p61 = por %p59, %p60
      %p63 = scmp.ne.s32.totalorder %s48, %s62
      %p64 = scmp.eq.s32.totalorder %s17, 0
      %p65 = por %p63, %p64
      %s66 = ssub.s32 %s11, %s18
      %p67 = scmp.eq.s32.totalorder %s66, 0
      %s69 = sadd.s32 %s68, 1
      %s70 = scalar_select %p67, %s68, %s69
      %p73 = pneg %p67
      %p74 = scmp.eq.s32.totalorder %s11, 1
      %p75 = por %p73, %p74
      %p76 = scmp.ne.s32.totalorder %s68, %s71
      %p77 = scmp.eq.s32.totalorder %s11, 0
      %p78 = por %p76, %p77
      %p79 = scmp.ne.s32.totalorder %s68, %s71
      %p80 = scmp.eq.s32.totalorder %s16, 1
      %p81 = por %p79, %p80
      %p82 = scmp.ne.s32.totalorder %s71, %s72
      %p83 = scmp.eq.s32.totalorder %s16, 0
      %p84 = por %p82, %p83
      %p85 = scmp.ne.s32.totalorder %s71, %s72
      %p86 = scmp.eq.s32.totalorder %s17, 1
      %p87 = por %p85, %p86
      %p89 = scmp.ne.s32.totalorder %s72, %s88
      %p90 = scmp.eq.s32.totalorder %s17, 0
      %p91 = por %p89, %p90
      %p92 = scmp.le.s32.totalorder 1, %s11
      %p93 = scmp.lt.s32.totalorder %s11, 3
      %p94 = pnand %p92, %p93
      %p95 = pneg %p94
      // Predicated region
      $region9: #{xdecoder_forward.7} parent=5 // pred_check
        _
      $region10: #{xdecoder_forward.7} parent=5 // pred_check_branch
        %97 = sbr.rel (%p94) target = $region12
      $region11: #{xdecoder_forward.7} parent=5 // pred_region
        %s98 = ssub.s32 %s11, 1
        // Predicated region
        $region13: #{xdecoder_forward.7} parent=11 // pred_check
          %p99 = pneg %p58
        $region14: #{xdecoder_forward.7} parent=11 // pred_check_branch
          %101 = sbr.rel (%p99) target = $region16
        $region15: #{xdecoder_forward.7} parent=11 // pred_region
          _
        $region16: #{xdecoder_forward.7} parent=11 // pred_fallthru
          _
      $region12: #{xdecoder_forward.7} parent=5 // pred_fallthru
        _
      %p102 = scmp.lt.s32.totalorder %s11, 2
      // Predicated region
      $region17: #{xdecoder_forward.7} parent=5 // pred_check
        %p103 = pneg %p102
      $region18: #{xdecoder_forward.7} parent=5 // pred_check_branch
        %105 = sbr.rel (%p103) target = $region20
      $region19: #{xdecoder_forward.7} parent=5 // pred_region
        // Predicated region
        $region21: #{xdecoder_forward.7} parent=19 // pred_check
          %p106 = pneg %p31
        $region22: #{xdecoder_forward.7} parent=19 // pred_check_branch
          %108 = sbr.rel (%p106) target = $region24
        $region23: #{xdecoder_forward.7} parent=19 // pred_region
          %s109 = smul.u32 8, %s11
          %p110 = scmp.lt.s32.totalorder %s109, 15
          %s111 = scalar_select %p110, %s109, 15
          %s112 = smul.addr %s111, 8
          %s113 = scalar_lea.vmem %s0, %s112
          %s114 = smul.u32 8, %s11
        $region24: #{xdecoder_forward.7} parent=19 // pred_fallthru
          _
      $region20: #{xdecoder_forward.7} parent=5 // pred_fallthru
        _
      %p115 = scmp.le.s32.totalorder 1, %s11
      %p116 = scmp.lt.s32.totalorder %s11, 3
      %p117 = pnand %p115, %p116
      %p118 = pneg %p117
      // Predicated region
      $region25: #{xdecoder_forward.7} parent=5 // pred_check
        _
      $region26: #{xdecoder_forward.7} parent=5 // pred_check_branch
        %120 = sbr.rel (%p117) target = $region28
      $region27: #{xdecoder_forward.7} parent=5 // pred_region
        %s121 = ssub.s32 %s11, 1
        %s122 = smul.u32 8, %s16
        %p123 = scmp.lt.s32.totalorder %s122, 15
        %s124 = scalar_select %p123, %s122, 15
        %s125 = smul.addr %s124, 8
        %s126 = scalar_lea.vmem %s0, %s125
        %p127 = pneg %p37
        %p128 = pneg %p34
        %p129 = pneg %p58
        %p130 = pneg %p55
        %p131 = pneg %p84
        %p132 = pneg %p81
        %s133 = sand.u32 %s71, 1
        %s134 = scalar_lea.sflag [#allocation3], %s133
        %s135 = sand.u32 %s71, 1
        %s136 = smul.addr %s135, 64
        %s137 = scalar_lea.vmem [#allocation2], %s136
        %s138 = smul.u32 8, %s16
        %p139 = scmp.lt.s32.totalorder %s138, 15
        %s140 = scalar_select %p139, %s138, 15
        %s141 = smul.addr %s140, 8
        %s142 = scalar_lea.vmem %s0, %s141
        %s143 = smul.u32 8, %s16
        %s144 = smul.u32 8, %s16
        %v145 = vld [vmem:[%s142] sm:$0xff]
        %v146 = vld [vmem:[%s142 + $0x8] sm:$0xff]
        %v147 = vld [vmem:[%s142 + $0x10] sm:$0xff]
        %v148 = vld [vmem:[%s142 + $0x18] sm:$0xff]
        %v149 = vld [vmem:[%s142 + $0x20] sm:$0xff]
        %v150 = vld [vmem:[%s142 + $0x28] sm:$0xff]
        %v151 = vld [vmem:[%s142 + $0x30] sm:$0xff]
        %v152 = vld [vmem:[%s142 + $0x38] sm:$0xff]
        %v153 = vld [vmem:[%s1] sm:$0xff]
        %v154 = vld [vmem:[%s1 + $0x8] sm:$0xff]
        %vm155 = vcmask 130048
        %v157 = vsel %vm155, %v145, 0
        %v160 = vsel %vm155, %v146, 0
        %v163 = vsel %vm155, %v147, 0
        %v166 = vsel %vm155, %v148, 0
        %v169 = vsel %vm155, %v149, 0
        %v172 = vsel %vm155, %v150, 0
        %v175 = vsel %vm155, %v151, 0
        %v178 = vsel %vm155, %v152, 0
        %180 = vmatprep.subr.mxu0 0.0
        %181 = vmatpush1.msra.mxu0 %v153
        %182 = vmatprep.subr.mxu0 0.0
        %183 = vmatpush1.msra.mxu0 %v154
        %184 = vmatprep.subr.mxu0 0.0
        %185 = vmatpush1.msra.mxu0 0.0
        %186 = vmatprep.subr.mxu0 0.0
        %187 = vmatpush1.msra.mxu0 0.0
        %188 = vmatprep.subr.mxu0 0.0
        %189 = vmatpush1.msra.mxu0 0.0
        %190 = vmatprep.subr.mxu0 0.0
        %191 = vmatpush1.msra.mxu0 0.0
        %192 = vmatprep.subr.mxu0 0.0
        %193 = vmatpush1.msra.mxu0 0.0
        %194 = vmatprep.subr.mxu0 0.0
        %195 = vmatpush1.msra.mxu0 0.0
        %196 = vmatprep.subr.mxu0 0.0
        %197 = vmatpush1.msra.mxu0 0.0
        %198 = vmatprep.subr.mxu0 0.0
        %199 = vmatpush1.msra.mxu0 0.0
        %200 = vmatprep.subr.mxu0 0.0
        %201 = vmatpush1.msra.mxu0 0.0
        %202 = vmatprep.subr.mxu0 0.0
        %203 = vmatpush1.msra.mxu0 0.0
        %204 = vmatprep.subr.mxu0 0.0
        %205 = vmatpush1.msra.mxu0 0.0
        %206 = vmatprep.subr.mxu0 0.0
        %207 = vmatpush1.msra.mxu0 0.0
        %208 = vmatprep.subr.mxu0 0.0
        %209 = vmatpush1.msra.mxu0 0.0
        %210 = vmatprep.subr.mxu0 0.0
        %211 = vmatpush1.msra.mxu0 0.0
        %212 = vmatprep.subr.mxu0 0.0
        %213 = vmatpush1.msra.mxu0 0.0
        %214 = vmatprep.subr.mxu0 0.0
        %215 = vmatpush1.msra.mxu0 0.0
        %216 = vmatprep.subr.mxu0 0.0
        %217 = vmatpush1.msra.mxu0 0.0
        %218 = vmatprep.subr.mxu0 0.0
        %219 = vmatpush1.msra.mxu0 0.0
        %220 = vmatprep.subr.mxu0 0.0
        %221 = vmatpush1.msra.mxu0 0.0
        %222 = vmatprep.subr.mxu0 0.0
        %223 = vmatpush1.msra.mxu0 0.0
        %224 = vmatprep.subr.mxu0 0.0
        %225 = vmatpush1.msra.mxu0 0.0
        %226 = vmatprep.subr.mxu0 0.0
        %227 = vmatpush1.msra.mxu0 0.0
        %228 = vmatprep.subr.mxu0 0.0
        %229 = vmatpush1.msra.mxu0 0.0
        %230 = vmatprep.subr.mxu0 0.0
        %231 = vmatpush1.msra.mxu0 0.0
        %232 = vmatprep.subr.mxu0 0.0
        %233 = vmatpush1.msra.mxu0 0.0
        %234 = vmatprep.subr.mxu0 0.0
        %235 = vmatpush1.msra.mxu0 0.0
        %236 = vmatprep.subr.mxu0 0.0
        %237 = vmatpush1.msra.mxu0 0.0
        %238 = vmatprep.subr.mxu0 0.0
        %239 = vmatpush1.msra.mxu0 0.0
        %240 = vmatprep.subr.mxu0 0.0
        %241 = vmatpush1.msra.mxu0 0.0
        %242 = vmatprep.subr.mxu0 0.0
        %243 = vmatpush1.msra.mxu0 0.0
        %244 = vmatprep.mubr.f32.mxu0 0.0
        %245 = vmatmul.mubr.f32.gmra.mrb[0].mxu0 %v157
        %v246 = vpop.f32.mrb[0].mxu0
        %v247 = vadd.f32 0.0, %v246
        %v248 = vpop.f32.mrb[0].mxu0
        %249 = vmatprep.mubr.f32.mxu0 0.0
        %250 = vmatmul.mubr.f32.gmra.mrb[0].mxu0 %v160
        %v251 = vpop.f32.mrb[0].mxu0
        %v252 = vadd.f32 0.0, %v251
        %v253 = vpop.f32.mrb[0].mxu0
        %254 = vmatprep.mubr.f32.mxu0 0.0
        %255 = vmatmul.mubr.f32.gmra.mrb[0].mxu0 %v163
        %v256 = vpop.f32.mrb[0].mxu0
        %v257 = vadd.f32 0.0, %v256
        %v258 = vpop.f32.mrb[0].mxu0
        %259 = vmatprep.mubr.f32.mxu0 0.0
        %260 = vmatmul.mubr.f32.gmra.mrb[0].mxu0 %v166
        %v261 = vpop.f32.mrb[0].mxu0
        %v262 = vadd.f32 0.0, %v261
        %v263 = vpop.f32.mrb[0].mxu0
        %264 = vmatprep.mubr.f32.mxu0 0.0
        %265 = vmatmul.mubr.f32.gmra.mrb[0].mxu0 %v169
        %v266 = vpop.f32.mrb[0].mxu0
        %v267 = vadd.f32 0.0, %v266
        %v268 = vpop.f32.mrb[0].mxu0
        %269 = vmatprep.mubr.f32.mxu0 0.0
        %270 = vmatmul.mubr.f32.gmra.mrb[0].mxu0 %v172
        %v271 = vpop.f32.mrb[0].mxu0
        %v272 = vadd.f32 0.0, %v271
        %v273 = vpop.f32.mrb[0].mxu0
        %274 = vmatprep.mubr.f32.mxu0 0.0
        %275 = vmatmul.mubr.f32.gmra.mrb[0].mxu0 %v175
        %v276 = vpop.f32.mrb[0].mxu0
        %v277 = vadd.f32 0.0, %v276
        %v278 = vpop.f32.mrb[0].mxu0
        %279 = vmatprep.mubr.f32.mxu0 0.0
        %280 = vmatmul.mubr.f32.gmra.mrb[0].mxu0 %v178
        %v281 = vpop.f32.mrb[0].mxu0
        %v282 = vadd.f32 0.0, %v281
        %v283 = vpop.f32.mrb[0].mxu0
        %284 = vdwg.mxu0
        %vm285 = vcmp.ge.f32.partialorder %v247, 0.0
        %vm286 = vcmp.ge.f32.partialorder %v252, 0.0
        %vm287 = vcmp.ge.f32.partialorder %v257, 0.0
        %vm288 = vcmp.ge.f32.partialorder %v262, 0.0
        %vm289 = vcmp.ge.f32.partialorder %v267, 0.0
        %vm290 = vcmp.ge.f32.partialorder %v272, 0.0
        %vm291 = vcmp.ge.f32.partialorder %v277, 0.0
        %vm292 = vcmp.ge.f32.partialorder %v282, 0.0
        %v293 = vsel %vm285, 1, 0
        %v294 = vsel %vm286, 1, 0
        %v295 = vsel %vm287, 1, 0
        %v296 = vsel %vm288, 1, 0
        %v297 = vsel %vm289, 1, 0
        %v298 = vsel %vm290, 1, 0
        %v299 = vsel %vm291, 1, 0
        %v300 = vsel %vm292, 1, 0
        %v301 = vcvt.s32.f32 %v293
        %v302 = vcvt.s32.f32 %v294
        %v303 = vcvt.s32.f32 %v295
        %v304 = vcvt.s32.f32 %v296
        %v305 = vcvt.s32.f32 %v297
        %v306 = vcvt.s32.f32 %v298
        %v307 = vcvt.s32.f32 %v299
        %v308 = vcvt.s32.f32 %v300
        %309 = vst [vmem:[%s137] sm:$0xff] %v301
        %310 = vst [vmem:[%s137 + $0x8] sm:$0xff] %v302
        %311 = vst [vmem:[%s137 + $0x10] sm:$0xff] %v303
        %312 = vst [vmem:[%s137 + $0x18] sm:$0xff] %v304
        %313 = vst [vmem:[%s137 + $0x20] sm:$0xff] %v305
        %314 = vst [vmem:[%s137 + $0x28] sm:$0xff] %v306
        %315 = vst [vmem:[%s137 + $0x30] sm:$0xff] %v307
        %316 = vst [vmem:[%s137 + $0x38] sm:$0xff] %v308
        %s317 = sand.u32 %s71, 1
        %s318 = scalar_lea.sflag [#allocation3], %s317
        %s319 = sand.u32 %s71, 1
        %s320 = smul.addr %s319, 64
        %s321 = scalar_lea.vmem [#allocation2], %s320
        // Predicated region
        $region29: #{xdecoder_forward.7} parent=27 // pred_check
          %p322 = pneg %p81
        $region30: #{xdecoder_forward.7} parent=27 // pred_check_branch
          %324 = sbr.rel (%p322) target = $region32
        $region31: #{xdecoder_forward.7} parent=27 // pred_region
          %s325 = smul.u32 8, %s16
          %s327 = ssub.s32 1024, 1024
          %328 = vsyncadd %s318, %s327
          %s329 = smul.addr %s325, 128
          %s330 = scalar_lea.hbm %s2, %s329
          %s331 = sshll.u32 %s321, 4
          %s332 = int_to_ptr.vmem [resolvable:$true] %s331
          %337 = dma.vmem_to_hbm [thread:$0]  %s332, 1024, %s330, %s318, 128, 128, 8
        $region32: #{xdecoder_forward.7} parent=27 // pred_fallthru
          _
      $region28: #{xdecoder_forward.7} parent=5 // pred_fallthru
        _
      %p338 = scmp.le.s32.totalorder 2, %s11
      // Predicated region
      $region33: #{xdecoder_forward.7} parent=5 // pred_check
        %p339 = pneg %p338
      $region34: #{xdecoder_forward.7} parent=5 // pred_check_branch
        %341 = sbr.rel (%p339) target = $region36
      $region35: #{xdecoder_forward.7} parent=5 // pred_region
        %s342 = ssub.s32 %s11, 2
        // Predicated region
        $region37: #{xdecoder_forward.7} parent=35 // pred_check
          %p343 = pneg %p87
        $region38: #{xdecoder_forward.7} parent=35 // pred_check_branch
          %345 = sbr.rel (%p343) target = $region40
        $region39: #{xdecoder_forward.7} parent=35 // pred_region
          %s346 = sand.u32 %s72, 1
          %s347 = scalar_lea.sflag [#allocation3], %s346
          %s348 = sand.u32 %s72, 1
          %s349 = smul.addr %s348, 64
          %s350 = scalar_lea.vmem [#allocation2], %s349
          %351 = dma.done %s347, 1024
        $region40: #{xdecoder_forward.7} parent=35 // pred_fallthru
          _
      $region36: #{xdecoder_forward.7} parent=5 // pred_fallthru
        _
    $region6: #{xdecoder_forward.7} parent=1 // loop_footer
      %s15 = sadd.s32 1, %s11
    $region7: #{xdecoder_forward.7} parent=1 // loop_footer_branch
      %10 = sbr.rel target = $region3
    $region8: #{xdecoder_forward.7} parent=1 // loop_exit
      _
    %352 = vsyncpa [#allocation3], 1
    %s353 = scalar_lea.sflag [#allocation3], 1
    %354 = vsyncpa %s353, 1

// kernel: xdecoder_forward.6
$region0: #{xdecoder_forward.6}
  #allocation0 [shape = 'u32[]', space=smem, size = 0x4, offset = 0x4, fixed_abs, tag = 'smem constant byte address 0x4 - core index']
  #allocation1 [shape = 'u32[144,128]{1,0:T(1,128)}', space=vmem, size = 0x12000, scoped, tag = 'internal scratch']
  #allocation2 [shape = 'f32[1,1]{1,0:T(1,128)S(1)}', space=vmem, size = 0x200, scoped, tag = 'scoped memory for xdecoder_forward.6']
  %s0 = inlined_call_operand.vmem [shape: f32[3,32,32], index: 0, kind: input, shape index: {}]
  %s1 = inlined_call_operand.vmem [shape: bf16[16,32], index: 1, kind: input, shape index: {}]
  %s2 = inlined_call_operand.vmem [shape: bf16[32,16], index: 2, kind: input, shape index: {}]
  %s3 = inlined_call_operand.vmem [shape: f32[3,32], index: 3, kind: input, shape index: {}]
  %s4 = inlined_call_operand.vmem [shape: f32[1,32], index: 4, kind: input, shape index: {}]
  %s5 = inlined_call_operand.vmem [shape: f32[1,32], index: 5, kind: input, shape index: {}]
  %s6 = inlined_call_operand.vmem [shape: f32[32,32], index: 6, kind: input, shape index: {}]
  %s7 = inlined_call_operand.vmem [shape: f32[2,32], index: 7, kind: input, shape index: {}]
  %s8 = inlined_call_operand.vmem [shape: f32[32,32], index: 8, kind: input, shape index: {}]
  %s9 = inlined_call_operand.<no memory space> [shape: f32[1,1], index: 9, kind: input, shape index: {}]
  %s10 = inlined_call_operand.vmem [shape: f32[16,128], index: 10, kind: input, shape index: {}]
  %s11 = inlined_call_operand.vmem [shape: f32[16,128], index: 11, kind: output, shape index: {}]
  %s12 = sld [smem:[#allocation0]]
  $region54: #{xdecoder_forward.6} parent=0
    _
  %s14 = ssub.s32 1, %s12
  %s15 = scalar_select 0, %s14, %s12
  %v16 = vstv %s9
  %17 = vst [vmem:[#allocation2] sm:$0x1] %v16
  // Predicated region
  $region2: #{xdecoder_forward.6} parent=0 // pred_check
    _
  $region3: #{xdecoder_forward.6} parent=0 // pred_check_branch
    %19 = sbr.rel (0) target = $region5
  $region4: #{xdecoder_forward.6} parent=0 // pred_region
    _
  $region5: #{xdecoder_forward.6} parent=0 // pred_fallthru
    _
  // Predicated region
  $region6: #{xdecoder_forward.6} parent=0 // pred_check
    _
  $region7: #{xdecoder_forward.6} parent=0 // pred_check_branch
    %21 = sbr.rel (0) target = $region9
  $region8: #{xdecoder_forward.6} parent=0 // pred_region
    _
  $region9: #{xdecoder_forward.6} parent=0 // pred_fallthru
    _
  // Predicated region
  $region10: #{xdecoder_forward.6} parent=0 // pred_check
    _
  $region11: #{xdecoder_forward.6} parent=0 // pred_check_branch
    %23 = sbr.rel (0) target = $region13
  $region12: #{xdecoder_forward.6} parent=0 // pred_region
    _
  $region13: #{xdecoder_forward.6} parent=0 // pred_fallthru
    _
  // Predicated region
  $region14: #{xdecoder_forward.6} parent=0 // pred_check
    _
  $region15: #{xdecoder_forward.6} parent=0 // pred_check_branch
    %25 = sbr.rel (0) target = $region17
  $region16: #{xdecoder_forward.6} parent=0 // pred_region
    _
  $region17: #{xdecoder_forward.6} parent=0 // pred_fallthru
    _
  // Predicated region
  $region18: #{xdecoder_forward.6} parent=0 // pred_check
    _
  $region19: #{xdecoder_forward.6} parent=0 // pred_check_branch
    %27 = sbr.rel (0) target = $region21
  $region20: #{xdecoder_forward.6} parent=0 // pred_region
    _
  $region21: #{xdecoder_forward.6} parent=0 // pred_fallthru
    _
  // Predicated region
  $region22: #{xdecoder_forward.6} parent=0 // pred_check
    _
  $region23: #{xdecoder_forward.6} parent=0 // pred_check_branch
    %29 = sbr.rel (0) target = $region25
  $region24: #{xdecoder_forward.6} parent=0 // pred_region
    _
  $region25: #{xdecoder_forward.6} parent=0 // pred_fallthru
    _
  // Predicated region
  $region26: #{xdecoder_forward.6} parent=0 // pred_check
    _
  $region27: #{xdecoder_forward.6} parent=0 // pred_check_branch
    %31 = sbr.rel (0) target = $region29
  $region28: #{xdecoder_forward.6} parent=0 // pred_region
    _
  $region29: #{xdecoder_forward.6} parent=0 // pred_fallthru
    _
  // Predicated region
  $region30: #{xdecoder_forward.6} parent=0 // pred_check
    _
  $region31: #{xdecoder_forward.6} parent=0 // pred_check_branch
    %33 = sbr.rel (0) target = $region33
  $region32: #{xdecoder_forward.6} parent=0 // pred_region
    _
  $region33: #{xdecoder_forward.6} parent=0 // pred_fallthru
    _
  // Predicated region
  $region34: #{xdecoder_forward.6} parent=0 // pred_check
    _
  $region35: #{xdecoder_forward.6} parent=0 // pred_check_branch
    %35 = sbr.rel (0) target = $region37
  $region36: #{xdecoder_forward.6} parent=0 // pred_region
    _
  $region37: #{xdecoder_forward.6} parent=0 // pred_fallthru
    _
  // Predicated region
  $region38: #{xdecoder_forward.6} parent=0 // pred_check
    _
  $region39: #{xdecoder_forward.6} parent=0 // pred_check_branch
    %37 = sbr.rel (0) target = $region41
  $region40: #{xdecoder_forward.6} parent=0 // pred_region
    _
  $region41: #{xdecoder_forward.6} parent=0 // pred_fallthru
    _
  // Predicated region
  $region42: #{xdecoder_forward.6} parent=0 // pred_check
    _
  $region43: #{xdecoder_forward.6} parent=0 // pred_check_branch
    %39 = sbr.rel (0) target = $region45
  $region44: #{xdecoder_forward.6} parent=0 // pred_region
    _
  $region45: #{xdecoder_forward.6} parent=0 // pred_fallthru
    _
  %v41 = vld [vmem:[%s5] sm:$0x1]
  %v42 = vld [vmem:[%s6] sm:$0xff]
  %v43 = vld [vmem:[%s6 + $0x8] sm:$0xff]
  %v44 = vld [vmem:[%s6 + $0x10] sm:$0xff]
  %v45 = vld [vmem:[%s6 + $0x18] sm:$0xff]
  %vm46 = vcmask 261120
  %v48 = vsel %vm46, %v41, 0
  %50 = vmatprep.subr.mxu0 0.0
  %51 = vmatpush1.msra.mxu0 %v42
  %52 = vmatprep.subr.mxu0 0.0
  %53 = vmatpush1.msra.mxu0 %v43
  %54 = vmatprep.subr.mxu0 0.0
  %55 = vmatpush1.msra.mxu0 %v44
  %56 = vmatprep.subr.mxu0 0.0
  %57 = vmatpush1.msra.mxu0 %v45
  %58 = vmatprep.subr.mxu0 0.0
  %59 = vmatpush1.msra.mxu0 0.0
  %60 = vmatprep.subr.mxu0 0.0
  %61 = vmatpush1.msra.mxu0 0.0
  %62 = vmatprep.subr.mxu0 0.0
  %63 = vmatpush1.msra.mxu0 0.0
  %64 = vmatprep.subr.mxu0 0.0
  %65 = vmatpush1.msra.mxu0 0.0
  %66 = vmatprep.subr.mxu0 0.0
  %67 = vmatpush1.msra.mxu0 0.0
  %68 = vmatprep.subr.mxu0 0.0
  %69 = vmatpush1.msra.mxu0 0.0
  %70 = vmatprep.subr.mxu0 0.0
  %71 = vmatpush1.msra.mxu0 0.0
  %72 = vmatprep.subr.mxu0 0.0
  %73 = vmatpush1.msra.mxu0 0.0
  %74 = vmatprep.subr.mxu0 0.0
  %75 = vmatpush1.msra.mxu0 0.0
  %76 = vmatprep.subr.mxu0 0.0
  %77 = vmatpush1.msra.mxu0 0.0
  %78 = vmatprep.subr.mxu0 0.0
  %79 = vmatpush1.msra.mxu0 0.0
  %80 = vmatprep.subr.mxu0 0.0
  %81 = vmatpush1.msra.mxu0 0.0
  %82 = vmatprep.subr.mxu0 0.0
  %83 = vmatpush1.msra.mxu0 0.0
  %84 = vmatprep.subr.mxu0 0.0
  %85 = vmatpush1.msra.mxu0 0.0
  %86 = vmatprep.subr.mxu0 0.0
  %87 = vmatpush1.msra.mxu0 0.0
  %88 = vmatprep.subr.mxu0 0.0
  %89 = vmatpush1.msra.mxu0 0.0
  %90 = vmatprep.subr.mxu0 0.0
  %91 = vmatpush1.msra.mxu0 0.0
  %92 = vmatprep.subr.mxu0 0.0
  %93 = vmatpush1.msra.mxu0 0.0
  %94 = vmatprep.subr.mxu0 0.0
  %95 = vmatpush1.msra.mxu0 0.0
  %96 = vmatprep.subr.mxu0 0.0
  %97 = vmatpush1.msra.mxu0 0.0
  %98 = vmatprep.subr.mxu0 0.0
  %99 = vmatpush1.msra.mxu0 0.0
  %100 = vmatprep.subr.mxu0 0.0
  %101 = vmatpush1.msra.mxu0 0.0
  %102 = vmatprep.subr.mxu0 0.0
  %103 = vmatpush1.msra.mxu0 0.0
  %104 = vmatprep.subr.mxu0 0.0
  %105 = vmatpush1.msra.mxu0 0.0
  %106 = vmatprep.subr.mxu0 0.0
  %107 = vmatpush1.msra.mxu0 0.0
  %108 = vmatprep.subr.mxu0 0.0
  %109 = vmatpush1.msra.mxu0 0.0
  %110 = vmatprep.subr.mxu0 0.0
  %111 = vmatpush1.msra.mxu0 0.0
  %112 = vmatprep.subr.mxu0 0.0
  %113 = vmatpush1.msra.mxu0 0.0
  %114 = vmatprep.mubr.f32.mxu0 0.0
  %115 = vmatmul.mubr.f32.gmra.mrb[0].mxu0 %v48
  %v116 = vpop.f32.mrb[0].mxu0
  %v117 = vadd.f32 0.0, %v116
  %v118 = vpop.f32.mrb[0].mxu0
  %119 = vdwg.mxu0
  %v120 = vld [vmem:[%s7] sm:$0x3]
  %v121 = vlaneseq
  %v122 = vshrl.u32 %v121, 7
  %v123 = vsub.s32 0, %v122
  %v124 = vrot.slane %v117, %v123
  %v125 = vadd.f32 %v120, %v124
  %v126 = vld [vmem:[%s8] sm:$0xff]
  %v127 = vld [vmem:[%s8 + $0x8] sm:$0xff]
  %v128 = vld [vmem:[%s8 + $0x10] sm:$0xff]
  %v129 = vld [vmem:[%s8 + $0x18] sm:$0xff]
  %v131 = vsel %vm46, %v125, 0
  %133 = vmatprep.subr.mxu0 0.0
  %134 = vmatpush1.msra.mxu0 %v126
  %135 = vmatprep.subr.mxu0 0.0
  %136 = vmatpush1.msra.mxu0 %v127
  %137 = vmatprep.subr.mxu0 0.0
  %138 = vmatpush1.msra.mxu0 %v128
  %139 = vmatprep.subr.mxu0 0.0
  %140 = vmatpush1.msra.mxu0 %v129
  %141 = vmatprep.subr.mxu0 0.0
  %142 = vmatpush1.msra.mxu0 0.0
  %143 = vmatprep.subr.mxu0 0.0
  %144 = vmatpush1.msra.mxu0 0.0
  %145 = vmatprep.subr.mxu0 0.0
  %146 = vmatpush1.msra.mxu0 0.0
  %147 = vmatprep.subr.mxu0 0.0
  %148 = vmatpush1.msra.mxu0 0.0
  %149 = vmatprep.subr.mxu0 0.0
  %150 = vmatpush1.msra.mxu0 0.0
  %151 = vmatprep.subr.mxu0 0.0
  %152 = vmatpush1.msra.mxu0 0.0
  %153 = vmatprep.subr.mxu0 0.0
  %154 = vmatpush1.msra.mxu0 0.0
  %155 = vmatprep.subr.mxu0 0.0
  %156 = vmatpush1.msra.mxu0 0.0
  %157 = vmatprep.subr.mxu0 0.0
  %158 = vmatpush1.msra.mxu0 0.0
  %159 = vmatprep.subr.mxu0 0.0
  %160 = vmatpush1.msra.mxu0 0.0
  %161 = vmatprep.subr.mxu0 0.0
  %162 = vmatpush1.msra.mxu0 0.0
  %163 = vmatprep.subr.mxu0 0.0
  %164 = vmatpush1.msra.mxu0 0.0
  %165 = vmatprep.subr.mxu0 0.0
  %166 = vmatpush1.msra.mxu0 0.0
  %167 = vmatprep.subr.mxu0 0.0
  %168 = vmatpush1.msra.mxu0 0.0
  %169 = vmatprep.subr.mxu0 0.0
  %170 = vmatpush1.msra.mxu0 0.0
  %171 = vmatprep.subr.mxu0 0.0
  %172 = vmatpush1.msra.mxu0 0.0
  %173 = vmatprep.subr.mxu0 0.0
  %174 = vmatpush1.msra.mxu0 0.0
  %175 = vmatprep.subr.mxu0 0.0
  %176 = vmatpush1.msra.mxu0 0.0
  %177 = vmatprep.subr.mxu0 0.0
  %178 = vmatpush1.msra.mxu0 0.0
  %179 = vmatprep.subr.mxu0 0.0
  %180 = vmatpush1.msra.mxu0 0.0
  %181 = vmatprep.subr.mxu0 0.0
  %182 = vmatpush1.msra.mxu0 0.0
  %183 = vmatprep.subr.mxu0 0.0
  %184 = vmatpush1.msra.mxu0 0.0
  %185 = vmatprep.subr.mxu0 0.0
  %186 = vmatpush1.msra.mxu0 0.0
  %187 = vmatprep.subr.mxu0 0.0
  %188 = vmatpush1.msra.mxu0 0.0
  %189 = vmatprep.subr.mxu0 0.0
  %190 = vmatpush1.msra.mxu0 0.0
  %191 = vmatprep.subr.mxu0 0.0
  %192 = vmatpush1.msra.mxu0 0.0
  %193 = vmatprep.subr.mxu0 0.0
  %194 = vmatpush1.msra.mxu0 0.0
  %195 = vmatprep.subr.mxu0 0.0
  %196 = vmatpush1.msra.mxu0 0.0
  %197 = vmatprep.mubr.f32.mxu0 0.0
  %198 = vmatmul.mubr.f32.gmra.mrb[0].mxu0 %v131
  %v199 = vpop.f32.mrb[0].mxu0
  %v200 = vadd.f32 0.0, %v199
  %v201 = vpop.f32.mrb[0].mxu0
  %202 = vdwg.mxu0
  %v203 = vmul.f32 %v200, %v200
  %vm204 = vcmask 254976
  %v205 = vsel %vm204, %v203, 0.0
  %206 = vadd.xlane.f32.xlu0 %v205
  %v207 = vpop.xlane.xlu0 %206
  %v208 = vrsqrt.pop %v207
  %v209 = vmul.f32 %v207, %v208
  %vm210 = vcmp.eq.f32.partialorder %v207, inf
  %v211 = vsel %vm210, %v207, %v209
  %vm212 = vcmp.eq.f32.partialorder %v207, 0.0
  %v213 = vand.u32 %v207, 2147483648
  %v214 = vsel %vm212, %v213, %v211
  %v215 = vadd.f32 %v214, 1e-07
  %v216 = vrcp.pop %v215
  %v217 = vmul.f32 %v200, %v216
  %v218 = vmul.f32 %v41, %v41
  %vm219 = vcmask 253952
  %v220 = vsel %vm219, %v218, 0.0
  %221 = vadd.xlane.f32.xlu0 %v220
  %v222 = vpop.xlane.xlu0 %221
  %v223 = vrsqrt.pop %v222
  %v224 = vmul.f32 %v222, %v223
  %vm225 = vcmp.eq.f32.partialorder %v222, inf
  %v226 = vsel %vm225, %v222, %v224
  %vm227 = vcmp.eq.f32.partialorder %v222, 0.0
  %v228 = vand.u32 %v222, 2147483648
  %v229 = vsel %vm227, %v228, %v226
  %v230 = vadd.f32 %v229, 1e-07
  %v231 = vrcp.pop %v230
  %v232 = vmul.f32 %v41, %v231
  %v233 = vld [vmem:[#allocation2] sm:$0x1]
  %v234 = vmul.f32 %v233, 1.442695
  %v235 = vpow.pop %v234
  %v236 = vmin.f32 %v235, 100.0
  %v238 = vlaneseq
  %v239 = vshrl.u32 %v238, 7
  %v240 = vsub.s32 0, %v239
  %v241 = vrot.slane %v232, %v240
  %v243 = vmul.f32 %v217, %v241
  %v244 = vsel %vm204, %v243, 0.0
  %245 = vadd.xlane.f32.xlu0 %v244
  %v246 = vpop.xlane.xlu0 %245
  %v248 = vlaneseq
  %v249 = vshrl.u32 %v248, 7
  %v250 = vsub.s32 0, %v249
  %v251 = vrot.slane %v236, %v250
  %v253 = vmul.f32 %v246, %v251
  %v254 = vlaneseq
  %v255 = vshrl.u32 %v254, 7
  %vm256 = vcmask 1024
  %v257 = vsel %vm256, %v253, -inf
  %258 = vmax.xlane.f32.xlu0 %v257
  %v259 = vpop.xlane.xlu0 %258
  %v260 = vrot.slane %v259, 4
  %v261 = vmax.f32 %v259, %v260
  %v262 = vrot.slane %v261, 2
  %v263 = vmax.f32 %v261, %v262
  %v264 = vrot.slane %v263, 1
  %v265 = vmax.f32 %v263, %v264
  %s266 = vtos %v265
  %v267 = vstv %s266
  %vm268 = vcmp.eq.f32.partialorder %v253, %v267
  %v269 = vsel %vm268, %v255, 2
  %v270 = vsel %vm256, %v269, 2147483647
  %v271 = vand.u32 %v270, 65535
  %v272 = vshra.s32 %v270, 16
  %v273 = vcvt.s32.f32 %v271
  %v274 = vcvt.s32.f32 %v272
  %275 = vmin.xlane.f32.xlu0 %v274
  %v276 = vpop.xlane.xlu0 %275
  %vm277 = vcmp.eq.f32.partialorder %v274, %v276
  %v278 = vsel %vm277, %v273, inf
  %279 = vmin.xlane.f32.xlu0 %v278
  %v280 = vpop.xlane.xlu0 %279
  %v281 = vcvt.f32.s32 %v280
  %v282 = vcvt.f32.s32 %v276
  %v283 = vshll.u32 %v282, 16
  %v284 = vadd.s32 %v283, %v281
  %v285 = vrot.slane %v284, 4
  %vm286 = vcmp.lt.s32.totalorder %v284, %v285
  %v287 = vsel %vm286, %v284, %v285
  %v288 = vrot.slane %v287, 2
  %vm289 = vcmp.lt.s32.totalorder %v287, %v288
  %v290 = vsel %vm289, %v287, %v288
  %v291 = vrot.slane %v290, 1
  %vm292 = vcmp.lt.s32.totalorder %v290, %v291
  %v293 = vsel %vm292, %v290, %v291
  %s294 = vtos %v293
  %v295 = vstv %s294
  %vm296 = vcmp.eq.s32.totalorder %v255, %v295
  %v297 = vsel %vm296, 1, 0
  %v298 = vcvt.s32.f32 %v297
  %v299 = vmul.f32 %v125, %v298
  %v300 = vsel %vm204, %v299, 0.0
  %v301 = vrot.slane %v300, 4
  %v302 = vadd.f32 %v300, %v301
  %v303 = vrot.slane %v302, 2
  %v304 = vadd.f32 %v302, %v303
  %v305 = vrot.slane %v304, 1
  %v306 = vadd.f32 %v304, %v305
  %v307 = vld [vmem:[%s3] sm:$0x1]
  %v308 = vmul.f32 %v306, %v307
  %v309 = vsel %vm219, %v308, 0.0
  %310 = vadd.xlane.f32.xlu0 %v309
  %v311 = vpop.xlane.xlu0 %310
  %v312 = vld [vmem:[%s0] sm:$0xff]
  %v313 = vld [vmem:[%s0 + $0x8] sm:$0xff]
  %v314 = vld [vmem:[%s0 + $0x10] sm:$0xff]
  %v315 = vld [vmem:[%s0 + $0x18] sm:$0xff]
  %v316 = vlaneseq
  %v317 = vshrl.u32 %v316, 7
  %v318 = vsub.s32 0, %v317
  %v319 = vrot.slane %v311, %v318
  %v320 = vmul.f32 %v319, %v312
  %v321 = vmul.f32 %v319, %v313
  %v322 = vmul.f32 %v319, %v314
  %v323 = vmul.f32 %v319, %v315
  %v324 = vld [vmem:[%s3 + $0x1] sm:$0x1]
  %v325 = vmul.f32 %v306, %v324
  %v326 = vsel %vm219, %v325, 0.0
  %327 = vadd.xlane.f32.xlu0 %v326
  %v328 = vpop.xlane.xlu0 %327
  %s329 = scalar_lea.vmem %s0, 32
  %v330 = vld [vmem:[%s329] sm:$0xff]
  %v331 = vld [vmem:[%s329 + $0x8] sm:$0xff]
  %v332 = vld [vmem:[%s329 + $0x10] sm:$0xff]
  %v333 = vld [vmem:[%s329 + $0x18] sm:$0xff]
  %v334 = vlaneseq
  %v335 = vshrl.u32 %v334, 7
  %v336 = vsub.s32 0, %v335
  %v337 = vrot.slane %v328, %v336
  %v338 = vmul.f32 %v337, %v330
  %v339 = vmul.f32 %v337, %v331
  %v340 = vmul.f32 %v337, %v332
  %v341 = vmul.f32 %v337, %v333
  %v342 = vadd.f32 %v320, %v338
  %v343 = vadd.f32 %v321, %v339
  %v344 = vadd.f32 %v322, %v340
  %v345 = vadd.f32 %v323, %v341
  %v346 = vld [vmem:[%s3 + $0x2] sm:$0x1]
  %v347 = vmul.f32 %v306, %v346
  %v348 = vsel %vm219, %v347, 0.0
  %349 = vadd.xlane.f32.xlu0 %v348
  %v350 = vpop.xlane.xlu0 %349
  %s351 = scalar_lea.vmem %s0, 64
  %v352 = vld [vmem:[%s351] sm:$0xff]
  %v353 = vld [vmem:[%s351 + $0x8] sm:$0xff]
  %v354 = vld [vmem:[%s351 + $0x10] sm:$0xff]
  %v355 = vld [vmem:[%s351 + $0x18] sm:$0xff]
  %v356 = vlaneseq
  %v357 = vshrl.u32 %v356, 7
  %v358 = vsub.s32 0, %v357
  %v359 = vrot.slane %v350, %v358
  %v360 = vmul.f32 %v359, %v352
  %v361 = vmul.f32 %v359, %v353
  %v362 = vmul.f32 %v359, %v354
  %v363 = vmul.f32 %v359, %v355
  %v364 = vadd.f32 %v342, %v360
  %v365 = vadd.f32 %v343, %v361
  %v366 = vadd.f32 %v344, %v362
  %v367 = vadd.f32 %v345, %v363
  %v368 = vld [vmem:[%s4] sm:$0x1]
  %v369 = vmul.f32 %v306, %v368
  %v370 = vsel %vm219, %v369, 0.0
  %371 = vadd.xlane.f32.xlu0 %v370
  %v372 = vpop.xlane.xlu0 %371
  %v373 = vpack.c.bf16 %v365, %v364
  %v374 = vpack.c.bf16 %v367, %v366
  %v375 = vld [vmem:[%s2] sm:$0xf]
  %v376 = vld [vmem:[%s2 + $0x4] sm:$0xf]
  %v377 = vld [vmem:[%s2 + $0x8] sm:$0xf]
  %v378 = vld [vmem:[%s2 + $0xc] sm:$0xf]
  %v383 = vunpack.c.l.b16 %v375
  %v384 = vunpack.c.l.b16 %v376
  %v385 = vunpack.c.l.b16 %v377
  %v386 = vunpack.c.l.b16 %v378
  %v387 = vpack.c.b16 %v384, %v383
  %v388 = vpack.c.b16 %v386, %v385
  %v392 = vsel %vm46, %v373, 0
  %v395 = vsel %vm46, %v374, 0
  %397 = vmatprep.subr.bf16.mxu0 0
  %398 = vmatpush1.bf16.msra.mxu0 %v387
  %399 = vmatprep.subr.bf16.mxu0 0
  %400 = vmatpush1.bf16.msra.mxu0 %v388
  %401 = vmatprep.subr.bf16.mxu0 0
  %402 = vmatpush1.bf16.msra.mxu0 0
  %403 = vmatprep.subr.bf16.mxu0 0
  %404 = vmatpush1.bf16.msra.mxu0 0
  %405 = vmatprep.subr.bf16.mxu0 0
  %406 = vmatpush1.bf16.msra.mxu0 0
  %407 = vmatprep.subr.bf16.mxu0 0
  %408 = vmatpush1.bf16.msra.mxu0 0
  %409 = vmatprep.subr.bf16.mxu0 0
  %410 = vmatpush1.bf16.msra.mxu0 0
  %411 = vmatprep.subr.bf16.mxu0 0
  %412 = vmatpush1.bf16.msra.mxu0 0
  %413 = vmatprep.subr.bf16.mxu0 0
  %414 = vmatpush1.bf16.msra.mxu0 0
  %415 = vmatprep.subr.bf16.mxu0 0
  %416 = vmatpush1.bf16.msra.mxu0 0
  %417 = vmatprep.subr.bf16.mxu0 0
  %418 = vmatpush1.bf16.msra.mxu0 0
  %419 = vmatprep.subr.bf16.mxu0 0
  %420 = vmatpush1.bf16.msra.mxu0 0
  %421 = vmatprep.subr.bf16.mxu0 0
  %422 = vmatpush1.bf16.msra.mxu0 0
  %423 = vmatprep.subr.bf16.mxu0 0
  %424 = vmatpush1.bf16.msra.mxu0 0
  %425 = vmatprep.subr.bf16.mxu0 0
  %426 = vmatpush1.bf16.msra.mxu0 0
  %427 = vmatprep.subr.bf16.mxu0 0
  %428 = vmatpush1.bf16.msra.mxu0 0
  %429 = vmatprep.mubr.bf16.mxu0 0
  %430 = vmatmul.mubr.bf16.gmra.mrb[0].mxu0 %v392
  %v431 = vpop.f32.mrb[0].mxu0
  %v432 = vadd.f32 0.0, %v431
  %v433 = vpop.f32.mrb[0].mxu0
  %v434 = vpop.f32.mrb[0].mxu0
  %v435 = vadd.f32 0.0, %v434
  %v436 = vpop.f32.mrb[0].mxu0
  %437 = vmatprep.mubr.bf16.mxu0 0
  %438 = vmatmul.mubr.bf16.gmra.mrb[0].mxu0 %v395
  %v439 = vpop.f32.mrb[0].mxu0
  %v440 = vadd.f32 0.0, %v439
  %v441 = vpop.f32.mrb[0].mxu0
  %v442 = vpop.f32.mrb[0].mxu0
  %v443 = vadd.f32 0.0, %v442
  %v444 = vpop.f32.mrb[0].mxu0
  %445 = vdwg.mxu0
  %v446 = vld [vmem:[%s1] sm:$0xf]
  %v447 = vld [vmem:[%s1 + $0x4] sm:$0xf]
  %v448 = vpack.c.bf16 %v435, %v432
  %v449 = vpack.c.bf16 %v443, %v440
  %v450 = vlaneseq
  %v451 = vshrl.u32 %v450, 7
  %v452 = vsub.s32 0, %v451
  %v453 = vrot.slane %v372, %v452
  %v456 = vunpack.c.l.b16 %v446
  %v457 = vunpack.c.l.b16 %v447
  %v458 = vpack.c.b16 %v457, %v456
  %v460 = vsel %vm46, %v458, 0
  %462 = vmatprep.subr.bf16.mxu0 0
  %463 = vmatpush1.bf16.msra.mxu0 %v448
  %464 = vmatprep.subr.bf16.mxu0 0
  %465 = vmatpush1.bf16.msra.mxu0 %v449
  %466 = vmatprep.subr.bf16.mxu0 0
  %467 = vmatpush1.bf16.msra.mxu0 0
  %468 = vmatprep.subr.bf16.mxu0 0
  %469 = vmatpush1.bf16.msra.mxu0 0
  %470 = vmatprep.subr.bf16.mxu0 0
  %471 = vmatpush1.bf16.msra.mxu0 0
  %472 = vmatprep.subr.bf16.mxu0 0
  %473 = vmatpush1.bf16.msra.mxu0 0
  %474 = vmatprep.subr.bf16.mxu0 0
  %475 = vmatpush1.bf16.msra.mxu0 0
  %476 = vmatprep.subr.bf16.mxu0 0
  %477 = vmatpush1.bf16.msra.mxu0 0
  %478 = vmatprep.subr.bf16.mxu0 0
  %479 = vmatpush1.bf16.msra.mxu0 0
  %480 = vmatprep.subr.bf16.mxu0 0
  %481 = vmatpush1.bf16.msra.mxu0 0
  %482 = vmatprep.subr.bf16.mxu0 0
  %483 = vmatpush1.bf16.msra.mxu0 0
  %484 = vmatprep.subr.bf16.mxu0 0
  %485 = vmatpush1.bf16.msra.mxu0 0
  %486 = vmatprep.subr.bf16.mxu0 0
  %487 = vmatpush1.bf16.msra.mxu0 0
  %488 = vmatprep.subr.bf16.mxu0 0
  %489 = vmatpush1.bf16.msra.mxu0 0
  %490 = vmatprep.subr.bf16.mxu0 0
  %491 = vmatpush1.bf16.msra.mxu0 0
  %492 = vmatprep.subr.bf16.mxu0 0
  %493 = vmatpush1.bf16.msra.mxu0 0
  %494 = vmatprep.mubr.bf16.mxu0 0
  %495 = vmatmul.mubr.bf16.gmra.mrb[0].mxu0 %v460
  %v496 = vpop.f32.mrb[0].mxu0
  %v497 = vadd.f32 %v453, %v496
  %v498 = vpop.f32.mrb[0].mxu0
  %v499 = vpop.f32.mrb[0].mxu0
  %v500 = vadd.f32 %v453, %v499
  %v501 = vpop.f32.mrb[0].mxu0
  %502 = vdwg.mxu0
  %v503 = vld [vmem:[%s10] sm:$0xff]
  %v504 = vld [vmem:[%s10 + $0x8] sm:$0xff]
  %vm505 = vcmask 130048
  %v507 = vsel %vm505, %v497, 0
  %v510 = vsel %vm505, %v500, 0
  %512 = vmatprep.subr.mxu0 0.0
  %513 = vmatpush1.msra.mxu0 %v503
  %514 = vmatprep.subr.mxu0 0.0
  %515 = vmatpush1.msra.mxu0 %v504
  %516 = vmatprep.subr.mxu0 0.0
  %517 = vmatpush1.msra.mxu0 0.0
  %518 = vmatprep.subr.mxu0 0.0
  %519 = vmatpush1.msra.mxu0 0.0
  %520 = vmatprep.subr.mxu0 0.0
  %521 = vmatpush1.msra.mxu0 0.0
  %522 = vmatprep.subr.mxu0 0.0
  %523 = vmatpush1.msra.mxu0 0.0
  %524 = vmatprep.subr.mxu0 0.0
  %525 = vmatpush1.msra.mxu0 0.0
  %526 = vmatprep.subr.mxu0 0.0
  %527 = vmatpush1.msra.mxu0 0.0
  %528 = vmatprep.subr.mxu0 0.0
  %529 = vmatpush1.msra.mxu0 0.0
  %530 = vmatprep.subr.mxu0 0.0
  %531 = vmatpush1.msra.mxu0 0.0
  %532 = vmatprep.subr.mxu0 0.0
  %533 = vmatpush1.msra.mxu0 0.0
  %534 = vmatprep.subr.mxu0 0.0
  %535 = vmatpush1.msra.mxu0 0.0
  %536 = vmatprep.subr.mxu0 0.0
  %537 = vmatpush1.msra.mxu0 0.0
  %538 = vmatprep.subr.mxu0 0.0
  %539 = vmatpush1.msra.mxu0 0.0
  %540 = vmatprep.subr.mxu0 0.0
  %541 = vmatpush1.msra.mxu0 0.0
  %542 = vmatprep.subr.mxu0 0.0
  %543 = vmatpush1.msra.mxu0 0.0
  %544 = vmatprep.subr.mxu0 0.0
  %545 = vmatpush1.msra.mxu0 0.0
  %546 = vmatprep.subr.mxu0 0.0
  %547 = vmatpush1.msra.mxu0 0.0
  %548 = vmatprep.subr.mxu0 0.0
  %549 = vmatpush1.msra.mxu0 0.0
  %550 = vmatprep.subr.mxu0 0.0
  %551 = vmatpush1.msra.mxu0 0.0
  %552 = vmatprep.subr.mxu0 0.0
  %553 = vmatpush1.msra.mxu0 0.0
  %554 = vmatprep.subr.mxu0 0.0
  %555 = vmatpush1.msra.mxu0 0.0
  %556 = vmatprep.subr.mxu0 0.0
  %557 = vmatpush1.msra.mxu0 0.0
  %558 = vmatprep.subr.mxu0 0.0
  %559 = vmatpush1.msra.mxu0 0.0
  %560 = vmatprep.subr.mxu0 0.0
  %561 = vmatpush1.msra.mxu0 0.0
  %562 = vmatprep.subr.mxu0 0.0
  %563 = vmatpush1.msra.mxu0 0.0
  %564 = vmatprep.subr.mxu0 0.0
  %565 = vmatpush1.msra.mxu0 0.0
  %566 = vmatprep.subr.mxu0 0.0
  %567 = vmatpush1.msra.mxu0 0.0
  %568 = vmatprep.subr.mxu0 0.0
  %569 = vmatpush1.msra.mxu0 0.0
  %570 = vmatprep.subr.mxu0 0.0
  %571 = vmatpush1.msra.mxu0 0.0
  %572 = vmatprep.subr.mxu0 0.0
  %573 = vmatpush1.msra.mxu0 0.0
  %574 = vmatprep.subr.mxu0 0.0
  %575 = vmatpush1.msra.mxu0 0.0
  %576 = vmatprep.mubr.f32.mxu0 0.0
  %577 = vmatmul.mubr.f32.gmra.mrb[0].mxu0 %v507
  %v578 = vpop.f32.mrb[0].mxu0
  %v579 = vadd.f32 0.0, %v578
  %v580 = vpop.f32.mrb[0].mxu0
  %581 = vmatprep.mubr.f32.mxu0 0.0
  %582 = vmatmul.mubr.f32.gmra.mrb[0].mxu0 %v510
  %v583 = vpop.f32.mrb[0].mxu0
  %v584 = vadd.f32 0.0, %v583
  %v585 = vpop.f32.mrb[0].mxu0
  %586 = vdwg.mxu0
  %587 = vst [vmem:[%s11] sm:$0xff] %v579
  %588 = vst [vmem:[%s11 + $0x8] sm:$0xff] %v584
  // Predicated region
  $region46: #{xdecoder_forward.6} parent=0 // pred_check
    _
  $region47: #{xdecoder_forward.6} parent=0 // pred_check_branch
    %590 = sbr.rel (0) target = $region49
  $region48: #{xdecoder_forward.6} parent=0 // pred_region
    _
  $region49: #{xdecoder_forward.6} parent=0 // pred_fallthru
    _
  // Predicated region
  $region50: #{xdecoder_forward.6} parent=0 // pred_check
    _
  $region51: #{xdecoder_forward.6} parent=0 // pred_check_branch
    %592 = sbr.rel (0) target = $region53
  $region52: #{xdecoder_forward.6} parent=0 // pred_region
    _
  $region53: #{xdecoder_forward.6} parent=0 // pred_fallthru
    _

</llo_original>
